<compile_context>
chip_gen: v5e
topology: v5e:2x2
jax: 0.10.0
libtpu: 0.0.40
codegen_flags: <defaults>
</compile_context>

<pallas_src>
import jax
import jax.numpy as jnp
from jax import lax
from jax.experimental import pallas as pl
from jax.experimental.pallas import tpu as pltpu


def _up_conv_kernel(x_body_ref, x_top_ref, x_bot_ref, w_ref, b_ref, o_ref):
    # x_body_ref: (1, TH, W, Cin)  input rows of this tile (NHWC view in VMEM)
    # x_top_ref : (1, 1,  W, Cin)  input row just above the tile (clamped at the edge)
    # x_bot_ref : (1, 1,  W, Cin)  input row just below the tile (clamped at the edge)
    # w_ref     : (9, Cout, Cin)   conv weights, tap-major (ky*3 + kx)
    # b_ref     : (Cout, 1)        bias (f32)
    # o_ref     : (1, Cout, S)     output tile, S = THo*Wo flattened spatial (lanes)
    TH, W, Cin = x_body_ref.shape[1], x_body_ref.shape[2], x_body_ref.shape[3]
    Cout = o_ref.shape[1]
    THo, Wo = 2 * TH, 2 * W
    S = THo * Wo
    dt = x_body_ref.dtype            # upsample/shift chain dtype (v5e-safe: input dtype)
    mxu_dt = w_ref.dtype             # MXU operand dtype (bf16 fast path on v6e/v7x)

    t = pl.program_id(1)
    nt = pl.num_programs(1)

    body = x_body_ref[0]             # (TH, W, Cin)
    top = x_top_ref[0]               # (1, W, Cin)
    bot = x_bot_ref[0]               # (1, W, Cin)
    # The halo rows alias clamped real rows at the image boundary; there they must act
    # as the conv's zero padding.
    top = jnp.where(t == 0, jnp.zeros_like(top), top)
    bot = jnp.where(t == nt - 1, jnp.zeros_like(bot), bot)

    # Fused nearest x2 upsample along rows (+ the 1-row halo on each side).
    rows = jnp.concatenate([top, jnp.repeat(body, 2, axis=0), bot], axis=0)  # (THo+2, W, Cin)
    # Fused nearest x2 upsample along columns.
    u = jnp.repeat(rows, 2, axis=1)                                          # (THo+2, Wo, Cin)
    # The three column-tap variants (kx = 0, 1, 2) are 1-column shifts of `u` with zero
    # fill, built once each, so every tap slice below is a free outer-axis slice.
    zcol = jnp.zeros((THo + 2, 1, Cin), dt)
    v0 = jnp.concatenate([zcol, u[:, :Wo - 1, :]], axis=1)   # kx = 0 (left neighbour)
    v2 = jnp.concatenate([u[:, 1:, :], zcol], axis=1)        # kx = 2 (right neighbour)
    variants = (v0, u, v2)

    # One (Cout, Cin) x (S, Cin)^T MXU pass per tap with f32 accumulation.  The result
    # comes out directly as (Cout, S) - S on the lane axis - so there is no transpose
    # pass, no im2col scratch and the output stores are fully lane-dense.
    acc = jnp.zeros((Cout, S), jnp.float32)
    for ky in range(3):
        for kx in range(3):
            tap = variants[kx][ky:ky + THo].reshape(S, Cin).astype(mxu_dt)
            acc = acc + lax.dot_general(
                w_ref[ky * 3 + kx], tap,
                dimension_numbers=(((1,), (1,)), ((), ())),
                preferred_element_type=jnp.float32)

    acc = acc + b_ref[...]                   # bias (f32), broadcast over the lane axis
    acc = jnp.maximum(acc, 0.0)              # ReLU (f32)
    o_ref[0] = acc.astype(o_ref.dtype)


def _vmem_config():
    """Per-generation (tile budget, vmem_limit_bytes)."""
    cap = 0
    try:
        info = pltpu.get_tpu_info()
        cap = int(getattr(info, "vmem_capacity_bytes", 0) or 0)
    except Exception:
        cap = 0
    if cap >= 100 * 1024 * 1024:           # v5e / v6e class: 128 MiB physical VMEM
        return 40 * 1024 * 1024, 64 * 1024 * 1024
    # v7x class (64 MiB) or unknown: stay conservative.
    return 20 * 1024 * 1024, 32 * 1024 * 1024


def _pick_tile_rows(H, W, Cin, Cout, x_bytes, mxu_bytes, out_bytes, budget):
    """Largest row tile (a divisor of H) whose per-step working set fits `budget`.

    Keeps the flattened output tile (4*TH*W) a multiple of 128 lanes unless the whole
    image is a single tile, and prefers >= 2 row tiles so both v7x TensorCores get
    work even at batch 1.
    """
    cin_pad = -(-Cin // 128) * 128          # lane-padded channel footprint in VMEM

    def est(th):
        tho, wo = 2 * th, 2 * W
        s = tho * wo
        inp = 2 * (th + 2) * W * cin_pad * x_bytes            # body + halos, double buffered
        chain = (tho + 2) * (W + 4 * wo) * cin_pad * x_bytes  # rows, u and the 2 shifted variants
        taps = 2 * s * cin_pad * max(x_bytes, mxu_bytes)      # live tap operands
        acc = Cout * s * 4                                    # f32 accumulator
        outb = 2 * Cout * s * out_bytes                       # double-buffered output block
        wgt = 2 * (9 * Cout * cin_pad * mxu_bytes + Cout * 4)
        return inp + chain + taps + acc + outb + wgt

    divisors = [d for d in range(1, H + 1) if H % d == 0]
    legal = [d for d in divisors if d == H or (4 * d * W) % 128 == 0]
    fits = [d for d in legal if est(d) <= budget]
    multi = [d for d in fits if d < H]      # >= 2 row tiles (megacore-friendly)
    if multi:
        return max(multi)
    if fits:
        return max(fits)
    # Nothing fits the budget: take the smallest legal tile and rely on vmem_limit.
    # TODO(synk): allow TH that does not divide H (cdiv grid + in-kernel tail masking).
    return min(legal) if legal else H


def up_conv_forward(x_nchw, weight_oihw, bias, *, compute_dtype=None):
    """(N, Cin, H, W) -> (N, Cout, 2H, 2W): Upsample(x2, nearest) + Conv2d(3x3, p=1) + ReLU.

    compute_dtype selects the MXU-operand dtype only (default: x.dtype).  Pass
    jnp.bfloat16 on v6e/v7x for 2x MXU throughput; the upsample chain, accumulation,
    bias and ReLU stay in the input dtype / f32 (operand-quantized, not accumulation-
    relaxed).
    """
    N, Cin, H, W = x_nchw.shape
    Cout = weight_oihw.shape[0]
    Ho, Wo = 2 * H, 2 * W
    out_dtype = x_nchw.dtype
    mxu_dt = jnp.dtype(compute_dtype) if compute_dtype is not None else jnp.dtype(x_nchw.dtype)

    # NHWC so channels sit on the lane axis of the GEMM operands; x (pre-upsample) is
    # the small side of this op and the upsampled/padded tensors never touch HBM.
    # TODO(synk): an NCHW in-kernel path for Cin < 128 would waste fewer lanes in the
    # upsample chain; a single robust layout is kept here.
    x = jnp.transpose(x_nchw, (0, 2, 3, 1))                            # (N, H, W, Cin)

    # (Cout, Cin, 3, 3) -> (3, 3, Cout, Cin) -> (9, Cout, Cin), tap-major (ky*3 + kx).
    w9 = jnp.transpose(weight_oihw, (2, 3, 0, 1)).reshape(9, Cout, Cin).astype(mxu_dt)
    b2 = bias.reshape(Cout, 1).astype(jnp.float32)

    budget, vmem_limit = _vmem_config()
    TH = _pick_tile_rows(H, W, Cin, Cout,
                         jnp.dtype(x.dtype).itemsize, jnp.dtype(mxu_dt).itemsize,
                         jnp.dtype(out_dtype).itemsize, budget)
    T = H // TH
    S = 4 * TH * W                     # flattened output spatial per tile (lane axis)

    out_flat = pl.pallas_call(
        _up_conv_kernel,
        out_shape=jax.ShapeDtypeStruct((N, Cout, Ho * Wo), out_dtype),
        grid_spec=pltpu.PrefetchScalarGridSpec(
            num_scalar_prefetch=0,
            grid=(N, T),
            in_specs=[
                # body rows of this tile
                pl.BlockSpec((1, TH, W, Cin), lambda n, t: (n, t, 0, 0)),
                # 1-row halo above (clamped; zero-masked in-kernel at the top edge)
                pl.BlockSpec((1, 1, W, Cin),
                             lambda n, t: (n, jnp.maximum(t * TH - 1, 0), 0, 0)),
                # 1-row halo below (clamped; zero-masked in-kernel at the bottom edge)
                pl.BlockSpec((1, 1, W, Cin),
                             lambda n, t: (n, jnp.minimum((t + 1) * TH, H - 1), 0, 0)),
                # grid-invariant operands: constant index maps => no re-DMA across steps
                pl.BlockSpec((9, Cout, Cin), lambda n, t: (0, 0, 0)),
                pl.BlockSpec((Cout, 1), lambda n, t: (0, 0)),
            ],
            out_specs=pl.BlockSpec((1, Cout, S), lambda n, t: (n, 0, t)),
        ),
        compiler_params=pltpu.CompilerParams(
            dimension_semantics=("parallel", "parallel"),
            vmem_limit_bytes=vmem_limit),
    )(x, x, x, w9, b2)

    # (N, Cout, Ho*Wo) -> (N, Cout, Ho, Wo): contiguous reshape, no data movement.
    return out_flat.reshape(N, Cout, Ho, Wo)


def _reference(x_nchw, weight_oihw, bias):
    # Pure-JAX reference: nearest upsample x2 + conv2d(p=1) + bias + ReLU, in NCHW.
    x_up = jnp.repeat(jnp.repeat(x_nchw, 2, axis=2), 2, axis=3)
    y = lax.conv_general_dilated(
        x_up, weight_oihw, window_strides=(1, 1), padding=((1, 1), (1, 1)),
        dimension_numbers=("NCHW", "OIHW", "NCHW"))
    y = y + bias.reshape(1, -1, 1, 1)
    return jnp.maximum(y, 0.0)


if __name__ == "__main__":
    key = jax.random.PRNGKey(0)
    k_x, k_w, k_b = jax.random.split(key, 3)

    N, Cin, H, W = 2, 4, 16, 16
    Cout = 8

    x = jax.random.normal(k_x, (N, Cin, H, W), dtype=jnp.float32)
    # Deterministic synthetic Conv2d(in_ch=4, out_ch=8, k=3) parameters.
    fan_in = Cin * 3 * 3
    bound = 1.0 / (fan_in ** 0.5)
    weight = jax.random.uniform(k_w, (Cout, Cin, 3, 3), jnp.float32, -bound, bound)
    bias = jax.random.uniform(k_b, (Cout,), jnp.float32, -bound, bound)

    ref = _reference(x, weight, bias)

    # f32 path: matches the PyTorch module's f32 forward.
    out = jax.block_until_ready(up_conv_forward(x, weight, bias))
    assert out.shape == (N, Cout, 2 * H, 2 * W)
    assert jnp.allclose(out, ref, atol=5e-4, rtol=5e-4)

    # bf16 MXU-operand fast path (v6e/v7x); f32 chain + accumulation, looser tolerance.
    out_bf16 = jax.block_until_ready(
        up_conv_forward(x, weight, bias, compute_dtype=jnp.bfloat16))
    assert jnp.allclose(out_bf16, ref, atol=5e-2, rtol=5e-2)

    print("KERNEL_OK")
</pallas_src>

<mosaic_0001>
module attributes {stable_mosaic.version = 11 : i64} {
  func.func @_up_conv_kernel(%arg0: i32, %arg1: i32, %arg2: memref<1x8x16x4xf32, #tpu.memory_space<vmem>>, %arg3: memref<1x1x16x4xf32, #tpu.memory_space<vmem>>, %arg4: memref<1x1x16x4xf32, #tpu.memory_space<vmem>>, %arg5: memref<9x8x4xf32, #tpu.memory_space<vmem>>, %arg6: memref<8x1xf32, #tpu.memory_space<vmem>>, %arg7: memref<1x8x512xf32, #tpu.memory_space<vmem>>) attributes {dimension_semantics = [#tpu.dimension_semantics<parallel>, #tpu.dimension_semantics<parallel>], iteration_bounds = array<i64: 2, 2>, scalar_prefetch = 0 : i64, scratch_operands = 0 : i64, tpu.core_type = #tpu.core_type<tc>, window_params = [{transform_indices = @transform_0, window_bounds = array<i64: 1, 8, 16, 4>}, {transform_indices = @transform_1, window_bounds = array<i64: 1, 1, 16, 4>}, {transform_indices = @transform_2, window_bounds = array<i64: 1, 1, 16, 4>}, {pipeline_mode = #tpu.pipeline_mode<synchronous>, transform_indices = @transform_3, window_bounds = array<i64: 9, 8, 4>}, {pipeline_mode = #tpu.pipeline_mode<synchronous>, transform_indices = @transform_4, window_bounds = array<i64: 8, 1>}, {transform_indices = @transform_5, window_bounds = array<i64: 1, 8, 512>}]} {
    %c0 = arith.constant 0 : index
    %c0_0 = arith.constant 0 : index
    %c0_1 = arith.constant 0 : index
    %c0_2 = arith.constant 0 : index
    %0 = vector.load %arg2[%c0, %c0_0, %c0_1, %c0_2] : memref<1x8x16x4xf32, #tpu.memory_space<vmem>>, vector<1x8x16x4xf32>
    %1 = vector.shape_cast %0 : vector<1x8x16x4xf32> to vector<8x16x4xf32>
    %c0_3 = arith.constant 0 : index
    %c0_4 = arith.constant 0 : index
    %c0_5 = arith.constant 0 : index
    %c0_6 = arith.constant 0 : index
    %2 = vector.load %arg3[%c0_3, %c0_4, %c0_5, %c0_6] : memref<1x1x16x4xf32, #tpu.memory_space<vmem>>, vector<1x1x16x4xf32>
    %3 = vector.shape_cast %2 : vector<1x1x16x4xf32> to vector<1x16x4xf32>
    %c0_7 = arith.constant 0 : index
    %c0_8 = arith.constant 0 : index
    %c0_9 = arith.constant 0 : index
    %c0_10 = arith.constant 0 : index
    %4 = vector.load %arg4[%c0_7, %c0_8, %c0_9, %c0_10] : memref<1x1x16x4xf32, #tpu.memory_space<vmem>>, vector<1x1x16x4xf32>
    %5 = vector.shape_cast %4 : vector<1x1x16x4xf32> to vector<1x16x4xf32>
    %c0_i32 = arith.constant 0 : i32
    %6 = arith.cmpi eq, %arg1, %c0_i32 : i32
    %cst = arith.constant 0.000000e+00 : f32
    %7 = vector.broadcast %cst : f32 to vector<1x16x4xf32>
    %8 = arith.select %6, %7, %3 : vector<1x16x4xf32>
    %c1_i32 = arith.constant 1 : i32
    %9 = arith.cmpi eq, %arg1, %c1_i32 : i32
    %cst_11 = arith.constant 0.000000e+00 : f32
    %10 = vector.broadcast %cst_11 : f32 to vector<1x16x4xf32>
    %11 = arith.select %9, %10, %5 : vector<1x16x4xf32>
    %12 = vector.shape_cast %1 : vector<8x16x4xf32> to vector<8x1x16x4xf32>
    %13 = vector.broadcast %12 : vector<8x1x16x4xf32> to vector<8x2x16x4xf32>
    %14 = vector.shape_cast %13 : vector<8x2x16x4xf32> to vector<16x16x4xf32>
    %15 = tpu.concatenate %8, %14, %11 in 0 : vector<1x16x4xf32>, vector<16x16x4xf32>, vector<1x16x4xf32> -> vector<18x16x4xf32>
    %16 = vector.shape_cast %15 : vector<18x16x4xf32> to vector<18x16x1x4xf32>
    %17 = vector.broadcast %16 : vector<18x16x1x4xf32> to vector<18x16x2x4xf32>
    %18 = vector.shape_cast %17 : vector<18x16x2x4xf32> to vector<18x32x4xf32>
    %cst_12 = arith.constant 0.000000e+00 : f32
    %19 = vector.broadcast %cst_12 : f32 to vector<18x1x4xf32>
    %20 = vector.extract_strided_slice %18 {offsets = [0, 0, 0], sizes = [18, 31, 4], strides = [1, 1, 1]} : vector<18x32x4xf32> to vector<18x31x4xf32>
    %21 = tpu.concatenate %19, %20 in 1 : vector<18x1x4xf32>, vector<18x31x4xf32> -> vector<18x32x4xf32>
    %22 = vector.extract_strided_slice %18 {offsets = [0, 1, 0], sizes = [18, 31, 4], strides = [1, 1, 1]} : vector<18x32x4xf32> to vector<18x31x4xf32>
    %23 = tpu.concatenate %22, %19 in 1 : vector<18x31x4xf32>, vector<18x1x4xf32> -> vector<18x32x4xf32>
    %cst_13 = arith.constant 0.000000e+00 : f32
    %24 = vector.broadcast %cst_13 : f32 to vector<8x512xf32>
    %25 = vector.extract_strided_slice %21 {offsets = [0, 0, 0], sizes = [16, 32, 4], strides = [1, 1, 1]} : vector<18x32x4xf32> to vector<16x32x4xf32>
    %26 = vector.shape_cast %25 : vector<16x32x4xf32> to vector<512x4xf32>
    %c0_14 = arith.constant 0 : index
    %c0_15 = arith.constant 0 : index
    %c0_16 = arith.constant 0 : index
    %27 = vector.load %arg5[%c0_14, %c0_15, %c0_16] : memref<9x8x4xf32, #tpu.memory_space<vmem>>, vector<1x8x4xf32>
    %28 = vector.shape_cast %27 : vector<1x8x4xf32> to vector<8x4xf32>
    %cst_17 = arith.constant dense<0.000000e+00> : vector<8x512xf32>
    %29 = tpu.matmul %28, %26, %cst_17 {dimension_numbers = #tpu.dot_dimension_numbers<[1], [1], [0], [0], [0, 0, 1, 0], [], []>} : vector<8x4xf32>, vector<512x4xf32>, vector<8x512xf32> -> vector<8x512xf32>
    %30 = arith.addf %24, %29 : vector<8x512xf32>
    %31 = vector.extract_strided_slice %18 {offsets = [0, 0, 0], sizes = [16, 32, 4], strides = [1, 1, 1]} : vector<18x32x4xf32> to vector<16x32x4xf32>
    %32 = vector.shape_cast %31 : vector<16x32x4xf32> to vector<512x4xf32>
    %c1 = arith.constant 1 : index
    %c0_18 = arith.constant 0 : index
    %c0_19 = arith.constant 0 : index
    %33 = vector.load %arg5[%c1, %c0_18, %c0_19] : memref<9x8x4xf32, #tpu.memory_space<vmem>>, vector<1x8x4xf32>
    %34 = vector.shape_cast %33 : vector<1x8x4xf32> to vector<8x4xf32>
    %cst_20 = arith.constant dense<0.000000e+00> : vector<8x512xf32>
    %35 = tpu.matmul %34, %32, %cst_20 {dimension_numbers = #tpu.dot_dimension_numbers<[1], [1], [0], [0], [0, 0, 1, 0], [], []>} : vector<8x4xf32>, vector<512x4xf32>, vector<8x512xf32> -> vector<8x512xf32>
    %36 = arith.addf %30, %35 : vector<8x512xf32>
    %37 = vector.extract_strided_slice %23 {offsets = [0, 0, 0], sizes = [16, 32, 4], strides = [1, 1, 1]} : vector<18x32x4xf32> to vector<16x32x4xf32>
    %38 = vector.shape_cast %37 : vector<16x32x4xf32> to vector<512x4xf32>
    %c2 = arith.constant 2 : index
    %c0_21 = arith.constant 0 : index
    %c0_22 = arith.constant 0 : index
    %39 = vector.load %arg5[%c2, %c0_21, %c0_22] : memref<9x8x4xf32, #tpu.memory_space<vmem>>, vector<1x8x4xf32>
    %40 = vector.shape_cast %39 : vector<1x8x4xf32> to vector<8x4xf32>
    %cst_23 = arith.constant dense<0.000000e+00> : vector<8x512xf32>
    %41 = tpu.matmul %40, %38, %cst_23 {dimension_numbers = #tpu.dot_dimension_numbers<[1], [1], [0], [0], [0, 0, 1, 0], [], []>} : vector<8x4xf32>, vector<512x4xf32>, vector<8x512xf32> -> vector<8x512xf32>
    %42 = arith.addf %36, %41 : vector<8x512xf32>
    %43 = vector.extract_strided_slice %21 {offsets = [1, 0, 0], sizes = [16, 32, 4], strides = [1, 1, 1]} : vector<18x32x4xf32> to vector<16x32x4xf32>
    %44 = vector.shape_cast %43 : vector<16x32x4xf32> to vector<512x4xf32>
    %c3 = arith.constant 3 : index
    %c0_24 = arith.constant 0 : index
    %c0_25 = arith.constant 0 : index
    %45 = vector.load %arg5[%c3, %c0_24, %c0_25] : memref<9x8x4xf32, #tpu.memory_space<vmem>>, vector<1x8x4xf32>
    %46 = vector.shape_cast %45 : vector<1x8x4xf32> to vector<8x4xf32>
    %cst_26 = arith.constant dense<0.000000e+00> : vector<8x512xf32>
    %47 = tpu.matmul %46, %44, %cst_26 {dimension_numbers = #tpu.dot_dimension_numbers<[1], [1], [0], [0], [0, 0, 1, 0], [], []>} : vector<8x4xf32>, vector<512x4xf32>, vector<8x512xf32> -> vector<8x512xf32>
    %48 = arith.addf %42, %47 : vector<8x512xf32>
    %49 = vector.extract_strided_slice %18 {offsets = [1, 0, 0], sizes = [16, 32, 4], strides = [1, 1, 1]} : vector<18x32x4xf32> to vector<16x32x4xf32>
    %50 = vector.shape_cast %49 : vector<16x32x4xf32> to vector<512x4xf32>
    %c4 = arith.constant 4 : index
    %c0_27 = arith.constant 0 : index
    %c0_28 = arith.constant 0 : index
    %51 = vector.load %arg5[%c4, %c0_27, %c0_28] : memref<9x8x4xf32, #tpu.memory_space<vmem>>, vector<1x8x4xf32>
    %52 = vector.shape_cast %51 : vector<1x8x4xf32> to vector<8x4xf32>
    %cst_29 = arith.constant dense<0.000000e+00> : vector<8x512xf32>
    %53 = tpu.matmul %52, %50, %cst_29 {dimension_numbers = #tpu.dot_dimension_numbers<[1], [1], [0], [0], [0, 0, 1, 0], [], []>} : vector<8x4xf32>, vector<512x4xf32>, vector<8x512xf32> -> vector<8x512xf32>
    %54 = arith.addf %48, %53 : vector<8x512xf32>
    %55 = vector.extract_strided_slice %23 {offsets = [1, 0, 0], sizes = [16, 32, 4], strides = [1, 1, 1]} : vector<18x32x4xf32> to vector<16x32x4xf32>
    %56 = vector.shape_cast %55 : vector<16x32x4xf32> to vector<512x4xf32>
    %c5 = arith.constant 5 : index
    %c0_30 = arith.constant 0 : index
    %c0_31 = arith.constant 0 : index
    %57 = vector.load %arg5[%c5, %c0_30, %c0_31] : memref<9x8x4xf32, #tpu.memory_space<vmem>>, vector<1x8x4xf32>
    %58 = vector.shape_cast %57 : vector<1x8x4xf32> to vector<8x4xf32>
    %cst_32 = arith.constant dense<0.000000e+00> : vector<8x512xf32>
    %59 = tpu.matmul %58, %56, %cst_32 {dimension_numbers = #tpu.dot_dimension_numbers<[1], [1], [0], [0], [0, 0, 1, 0], [], []>} : vector<8x4xf32>, vector<512x4xf32>, vector<8x512xf32> -> vector<8x512xf32>
    %60 = arith.addf %54, %59 : vector<8x512xf32>
    %61 = vector.extract_strided_slice %21 {offsets = [2, 0, 0], sizes = [16, 32, 4], strides = [1, 1, 1]} : vector<18x32x4xf32> to vector<16x32x4xf32>
    %62 = vector.shape_cast %61 : vector<16x32x4xf32> to vector<512x4xf32>
    %c6 = arith.constant 6 : index
    %c0_33 = arith.constant 0 : index
    %c0_34 = arith.constant 0 : index
    %63 = vector.load %arg5[%c6, %c0_33, %c0_34] : memref<9x8x4xf32, #tpu.memory_space<vmem>>, vector<1x8x4xf32>
    %64 = vector.shape_cast %63 : vector<1x8x4xf32> to vector<8x4xf32>
    %cst_35 = arith.constant dense<0.000000e+00> : vector<8x512xf32>
    %65 = tpu.matmul %64, %62, %cst_35 {dimension_numbers = #tpu.dot_dimension_numbers<[1], [1], [0], [0], [0, 0, 1, 0], [], []>} : vector<8x4xf32>, vector<512x4xf32>, vector<8x512xf32> -> vector<8x512xf32>
    %66 = arith.addf %60, %65 : vector<8x512xf32>
    %67 = vector.extract_strided_slice %18 {offsets = [2, 0, 0], sizes = [16, 32, 4], strides = [1, 1, 1]} : vector<18x32x4xf32> to vector<16x32x4xf32>
    %68 = vector.shape_cast %67 : vector<16x32x4xf32> to vector<512x4xf32>
    %c7 = arith.constant 7 : index
    %c0_36 = arith.constant 0 : index
    %c0_37 = arith.constant 0 : index
    %69 = vector.load %arg5[%c7, %c0_36, %c0_37] : memref<9x8x4xf32, #tpu.memory_space<vmem>>, vector<1x8x4xf32>
    %70 = vector.shape_cast %69 : vector<1x8x4xf32> to vector<8x4xf32>
    %cst_38 = arith.constant dense<0.000000e+00> : vector<8x512xf32>
    %71 = tpu.matmul %70, %68, %cst_38 {dimension_numbers = #tpu.dot_dimension_numbers<[1], [1], [0], [0], [0, 0, 1, 0], [], []>} : vector<8x4xf32>, vector<512x4xf32>, vector<8x512xf32> -> vector<8x512xf32>
    %72 = arith.addf %66, %71 : vector<8x512xf32>
    %73 = vector.extract_strided_slice %23 {offsets = [2, 0, 0], sizes = [16, 32, 4], strides = [1, 1, 1]} : vector<18x32x4xf32> to vector<16x32x4xf32>
    %74 = vector.shape_cast %73 : vector<16x32x4xf32> to vector<512x4xf32>
    %c8 = arith.constant 8 : index
    %c0_39 = arith.constant 0 : index
    %c0_40 = arith.constant 0 : index
    %75 = vector.load %arg5[%c8, %c0_39, %c0_40] : memref<9x8x4xf32, #tpu.memory_space<vmem>>, vector<1x8x4xf32>
    %76 = vector.shape_cast %75 : vector<1x8x4xf32> to vector<8x4xf32>
    %cst_41 = arith.constant dense<0.000000e+00> : vector<8x512xf32>
    %77 = tpu.matmul %76, %74, %cst_41 {dimension_numbers = #tpu.dot_dimension_numbers<[1], [1], [0], [0], [0, 0, 1, 0], [], []>} : vector<8x4xf32>, vector<512x4xf32>, vector<8x512xf32> -> vector<8x512xf32>
    %78 = arith.addf %72, %77 : vector<8x512xf32>
    %c0_42 = arith.constant 0 : index
    %c0_43 = arith.constant 0 : index
    %79 = vector.load %arg6[%c0_42, %c0_43] : memref<8x1xf32, #tpu.memory_space<vmem>>, vector<8x1xf32>
    %80 = vector.broadcast %79 : vector<8x1xf32> to vector<8x512xf32>
    %81 = arith.addf %78, %80 : vector<8x512xf32>
    %cst_44 = arith.constant 0.000000e+00 : f32
    %82 = vector.broadcast %cst_44 : f32 to vector<8x512xf32>
    %83 = arith.maximumf %81, %82 : vector<8x512xf32>
    %c0_45 = arith.constant 0 : index
    %c0_46 = arith.constant 0 : index
    %c0_47 = arith.constant 0 : index
    %84 = vector.load %arg7[%c0_45, %c0_46, %c0_47] : memref<1x8x512xf32, #tpu.memory_space<vmem>>, vector<1x8x512xf32>
    %85 = vector.shape_cast %84 : vector<1x8x512xf32> to vector<8x512xf32>
    %86 = vector.shape_cast %83 : vector<8x512xf32> to vector<1x8x512xf32>
    tpu.vector_store %arg7[%c0_45, %c0_46, %c0_47], %86 {strides = array<i32>} : memref<1x8x512xf32, #tpu.memory_space<vmem>>, vector<1x8x512xf32>,
    return
  }
  func.func @transform_0(%arg0: i32, %arg1: i32) -> (i32, i32, i32, i32) {
    %c0_i32 = arith.constant 0 : i32
    %c0_i32_0 = arith.constant 0 : i32
    %c0_i32_1 = arith.constant 0 : i32
    return %arg0, %arg1, %c0_i32, %c0_i32_0 : i32, i32, i32, i32
  }
  func.func @transform_1(%arg0: i32, %arg1: i32) -> (i32, i32, i32, i32) {
    %c8_i32 = arith.constant 8 : i32
    %0 = arith.muli %arg1, %c8_i32 : i32
    %c1_i32 = arith.constant 1 : i32
    %1 = arith.subi %0, %c1_i32 : i32
    %c0_i32 = arith.constant 0 : i32
    %2 = arith.maxsi %1, %c0_i32 : i32
    %c0_i32_0 = arith.constant 0 : i32
    %c0_i32_1 = arith.constant 0 : i32
    %c0_i32_2 = arith.constant 0 : i32
    return %arg0, %2, %c0_i32_0, %c0_i32_1 : i32, i32, i32, i32
  }
  func.func @transform_2(%arg0: i32, %arg1: i32) -> (i32, i32, i32, i32) {
    %c1_i32 = arith.constant 1 : i32
    %0 = arith.addi %arg1, %c1_i32 : i32
    %c8_i32 = arith.constant 8 : i32
    %1 = arith.muli %0, %c8_i32 : i32
    %c15_i32 = arith.constant 15 : i32
    %2 = arith.minsi %1, %c15_i32 : i32
    %c0_i32 = arith.constant 0 : i32
    %c0_i32_0 = arith.constant 0 : i32
    %c0_i32_1 = arith.constant 0 : i32
    return %arg0, %2, %c0_i32, %c0_i32_0 : i32, i32, i32, i32
  }
  func.func @transform_3(%arg0: i32, %arg1: i32) -> (i32, i32, i32) {
    %c0_i32 = arith.constant 0 : i32
    %c0_i32_0 = arith.constant 0 : i32
    %c0_i32_1 = arith.constant 0 : i32
    %c0_i32_2 = arith.constant 0 : i32
    return %c0_i32, %c0_i32_0, %c0_i32_1 : i32, i32, i32
  }
  func.func @transform_4(%arg0: i32, %arg1: i32) -> (i32, i32) {
    %c0_i32 = arith.constant 0 : i32
    %c0_i32_0 = arith.constant 0 : i32
    %c0_i32_1 = arith.constant 0 : i32
    return %c0_i32, %c0_i32_0 : i32, i32
  }
  func.func @transform_5(%arg0: i32, %arg1: i32) -> (i32, i32, i32) {
    %c0_i32 = arith.constant 0 : i32
    %c0_i32_0 = arith.constant 0 : i32
    return %arg0, %c0_i32, %arg1 : i32, i32, i32
  }
}

</mosaic_0001>

<llo_original>
// kernel: tpu_custom_call.1
$region0: #{tpu_custom_call.1}
  #allocation0 [shape = 'u32[]', space=smem, size = 0x4, offset = 0x4, fixed_abs, tag = 'smem constant byte address 0x4 - core index']
  #allocation1 [shape = 'u32[72,128]{1,0:T(1,128)}', space=vmem, size = 0x9000, scoped, tag = 'internal scratch']
  %s0 = inlined_call_operand.vmem [shape: f32[2,16,16,4], index: 0, kind: input, shape index: {}]
  %s1 = inlined_call_operand.vmem [shape: f32[2,16,16,4], index: 1, kind: input, shape index: {}]
  %s2 = inlined_call_operand.vmem [shape: f32[2,16,16,4], index: 2, kind: input, shape index: {}]
  %s3 = inlined_call_operand.vmem [shape: f32[9,8,4], index: 3, kind: input, shape index: {}]
  %s4 = inlined_call_operand.vmem [shape: f32[8,1], index: 4, kind: input, shape index: {}]
  %s5 = inlined_call_operand.hbm [shape: f32[2,8,1024], index: 5, kind: output, shape index: {}]
  %s6 = sld [smem:[#allocation0]]
  $region53: #{tpu_custom_call.1} parent=0
    _
  %s8 = ssub.s32 1, %s6
  %s9 = scalar_select 0, %s8, %s6
  $region1: #{tpu_custom_call.1} parent=0
    #allocation2 [shape = 'u8[32768]{0}', space=vmem, size = 0x8000, scoped, tag = 'output window, operand 0']
    #allocation3 [shape = 's32[2]{0}', space=sflag, size = 0x8, scoped, tag = 'scoped memory for tpu_custom_call.1']
    %10 = vsyncpa [#allocation3], 0
    %s11 = scalar_lea.sflag [#allocation3], 1
    %12 = vsyncpa %s11, 0
    loop: start=0, step=1, limit=6
    $region2: #{tpu_custom_call.1} parent=1 // loop_pre_header
      _
    $region3: #{tpu_custom_call.1} parent=1 // loop_header
      %s14 = sphi 0, %s18
      %p15 = scmp.ge.s32.totalorder %s14, 6
      %s21 = sphi 0, %s33
      %s22 = sphi 0, %s29
      %s23 = sphi 0, %s21
      %s24 = sphi 0, %s22
      %s25 = sphi 0, %s23
      %s26 = sphi 0, %s24
      %s38 = sphi 0, %s40
      %s41 = sphi 0, %s38
      %s42 = sphi 0, %s41
      %s58 = sphi 0, %s42
      %s74 = sphi 0, %s76
      %s77 = sphi 0, %s74
      %s78 = sphi 0, %s77
      %s94 = sphi 0, %s78
      %s110 = sphi 0, %s112
      %s113 = sphi 0, %s110
      %s114 = sphi 0, %s113
      %s130 = sphi 0, %s114
      %s134 = sphi 0, %s134
      %s136 = sphi 0, %s134
      %s137 = sphi 0, %s136
      %s151 = sphi 0, %s137
      %s155 = sphi 0, %s155
      %s157 = sphi 0, %s155
      %s158 = sphi 0, %s157
      %s172 = sphi 0, %s158
      %s180 = sphi 0, %s182
      %s183 = sphi 0, %s180
      %s184 = sphi 0, %s183
      %s200 = sphi 0, %s184
    $region4: #{tpu_custom_call.1} parent=1 // loop_header_branch
      %17 = sbr.rel (%p15) target = $region8
    $region5: #{tpu_custom_call.1} parent=1 // loop_body
      %s19 = ssub.s32 %s14, 1
      %s20 = ssub.s32 %s14, 2
      %s27 = sadd.s32 1, %s22
      %p28 = scmp.ge.s32.totalorder %s27, 2
      %s29 = scalar_select %p28, 0, %s27
      %s30 = sadd.s32 1, %s21
      %s31 = scalar_select %p28, %s30, %s21
      %p32 = scmp.ge.s32.totalorder %s31, 2
      %s33 = scalar_select %p32, 0, %s31
      %s34 = ssub.s32 %s21, %s33
      %s35 = ssub.s32 %s22, %s29
      %s36 = sor.u32 %s34, %s35
      %p37 = scmp.eq.s32.totalorder %s36, 0
      %s39 = sadd.s32 %s38, 1
      %s40 = scalar_select %p37, %s38, %s39
      %p43 = pneg %p37
      %p44 = scmp.eq.s32.totalorder %s14, 3
      %p45 = por %p43, %p44
      %p46 = scmp.ne.s32.totalorder %s38, %s41
      %p47 = scmp.eq.s32.totalorder %s14, 0
      %p48 = por %p46, %p47
      %p49 = scmp.ne.s32.totalorder %s38, %s41
      %p50 = scmp.eq.s32.totalorder %s19, 3
      %p51 = por %p49, %p50
      %p52 = scmp.ne.s32.totalorder %s41, %s42
      %p53 = scmp.eq.s32.totalorder %s19, 0
      %p54 = por %p52, %p53
      %p55 = scmp.ne.s32.totalorder %s41, %s42
      %p56 = scmp.eq.s32.totalorder %s20, 3
      %p57 = por %p55, %p56
      %p59 = scmp.ne.s32.totalorder %s42, %s58
      %p60 = scmp.eq.s32.totalorder %s20, 0
      %p61 = por %p59, %p60
      %s62 = smul.u32 %s22, 8
      %s63 = ssub.s32 %s62, 1
      %p64 = scmp.gt.s32.totalorder %s63, 0
      %s65 = scalar_select %p64, %s63, 0
      %s66 = smul.u32 %s29, 8
      %s67 = ssub.s32 %s66, 1
      %p68 = scmp.gt.s32.totalorder %s67, 0
      %s69 = scalar_select %p68, %s67, 0
      %s70 = ssub.s32 %s21, %s33
      %s71 = ssub.s32 %s65, %s69
      %s72 = sor.u32 %s70, %s71
      %p73 = scmp.eq.s32.totalorder %s72, 0
      %s75 = sadd.s32 %s74, 1
      %s76 = scalar_select %p73, %s74, %s75
      %p79 = pneg %p73
      %p80 = scmp.eq.s32.totalorder %s14, 3
      %p81 = por %p79, %p80
      %p82 = scmp.ne.s32.totalorder %s74, %s77
      %p83 = scmp.eq.s32.totalorder %s14, 0
      %p84 = por %p82, %p83
      %p85 = scmp.ne.s32.totalorder %s74, %s77
      %p86 = scmp.eq.s32.totalorder %s19, 3
      %p87 = por %p85, %p86
      %p88 = scmp.ne.s32.totalorder %s77, %s78
      %p89 = scmp.eq.s32.totalorder %s19, 0
      %p90 = por %p88, %p89
      %p91 = scmp.ne.s32.totalorder %s77, %s78
      %p92 = scmp.eq.s32.totalorder %s20, 3
      %p93 = por %p91, %p92
      %p95 = scmp.ne.s32.totalorder %s78, %s94
      %p96 = scmp.eq.s32.totalorder %s20, 0
      %p97 = por %p95, %p96
      %s98 = sadd.s32 %s22, 1
      %s99 = smul.u32 %s98, 8
      %p100 = scmp.lt.s32.totalorder %s99, 15
      %s101 = scalar_select %p100, %s99, 15
      %s102 = sadd.s32 %s29, 1
      %s103 = smul.u32 %s102, 8
      %p104 = scmp.lt.s32.totalorder %s103, 15
      %s105 = scalar_select %p104, %s103, 15
      %s106 = ssub.s32 %s21, %s33
      %s107 = ssub.s32 %s101, %s105
      %s108 = sor.u32 %s106, %s107
      %p109 = scmp.eq.s32.totalorder %s108, 0
      %s111 = sadd.s32 %s110, 1
      %s112 = scalar_select %p109, %s110, %s111
      %p115 = pneg %p109
      %p116 = scmp.eq.s32.totalorder %s14, 3
      %p117 = por %p115, %p116
      %p118 = scmp.ne.s32.totalorder %s110, %s113
      %p119 = scmp.eq.s32.totalorder %s14, 0
      %p120 = por %p118, %p119
      %p121 = scmp.ne.s32.totalorder %s110, %s113
      %p122 = scmp.eq.s32.totalorder %s19, 3
      %p123 = por %p121, %p122
      %p124 = scmp.ne.s32.totalorder %s113, %s114
      %p125 = scmp.eq.s32.totalorder %s19, 0
      %p126 = por %p124, %p125
      %p127 = scmp.ne.s32.totalorder %s113, %s114
      %p128 = scmp.eq.s32.totalorder %s20, 3
      %p129 = por %p127, %p128
      %p131 = scmp.ne.s32.totalorder %s114, %s130
      %p132 = scmp.eq.s32.totalorder %s20, 0
      %p133 = por %p131, %p132
      %s135 = sadd.s32 %s134, 1
      %p138 = scmp.eq.s32.totalorder %s14, 3
      %p139 = scmp.ne.s32.totalorder %s134, %s136
      %p140 = scmp.eq.s32.totalorder %s14, 0
      %p141 = por %p139, %p140
      %p142 = scmp.ne.s32.totalorder %s134, %s136
      %p143 = scmp.eq.s32.totalorder %s19, 3
      %p144 = por %p142, %p143
      %p145 = scmp.ne.s32.totalorder %s136, %s137
      %p146 = scmp.eq.s32.totalorder %s19, 0
      %p147 = por %p145, %p146
      %p148 = scmp.ne.s32.totalorder %s136, %s137
      %p149 = scmp.eq.s32.totalorder %s20, 3
      %p150 = por %p148, %p149
      %p152 = scmp.ne.s32.totalorder %s137, %s151
      %p153 = scmp.eq.s32.totalorder %s20, 0
      %p154 = por %p152, %p153
      %s156 = sadd.s32 %s155, 1
      %p159 = scmp.eq.s32.totalorder %s14, 3
      %p160 = scmp.ne.s32.totalorder %s155, %s157
      %p161 = scmp.eq.s32.totalorder %s14, 0
      %p162 = por %p160, %p161
      %p163 = scmp.ne.s32.totalorder %s155, %s157
      %p164 = scmp.eq.s32.totalorder %s19, 3
      %p165 = por %p163, %p164
      %p166 = scmp.ne.s32.totalorder %s157, %s158
      %p167 = scmp.eq.s32.totalorder %s19, 0
      %p168 = por %p166, %p167
      %p169 = scmp.ne.s32.totalorder %s157, %s158
      %p170 = scmp.eq.s32.totalorder %s20, 3
      %p171 = por %p169, %p170
      %p173 = scmp.ne.s32.totalorder %s158, %s172
      %p174 = scmp.eq.s32.totalorder %s20, 0
      %p175 = por %p173, %p174
      %s176 = ssub.s32 %s21, %s33
      %s177 = ssub.s32 %s22, %s29
      %s178 = sor.u32 %s176, %s177
      %p179 = scmp.eq.s32.totalorder %s178, 0
      %s181 = sadd.s32 %s180, 1
      %s182 = scalar_select %p179, %s180, %s181
      %p185 = pneg %p179
      %p186 = scmp.eq.s32.totalorder %s14, 3
      %p187 = por %p185, %p186
      %p188 = scmp.ne.s32.totalorder %s180, %s183
      %p189 = scmp.eq.s32.totalorder %s14, 0
      %p190 = por %p188, %p189
      %p191 = scmp.ne.s32.totalorder %s180, %s183
      %p192 = scmp.eq.s32.totalorder %s19, 3
      %p193 = por %p191, %p192
      %p194 = scmp.ne.s32.totalorder %s183, %s184
      %p195 = scmp.eq.s32.totalorder %s19, 0
      %p196 = por %p194, %p195
      %p197 = scmp.ne.s32.totalorder %s183, %s184
      %p198 = scmp.eq.s32.totalorder %s20, 3
      %p199 = por %p197, %p198
      %p201 = scmp.ne.s32.totalorder %s184, %s200
      %p202 = scmp.eq.s32.totalorder %s20, 0
      %p203 = por %p201, %p202
      %p204 = scmp.le.s32.totalorder 1, %s14
      %p205 = scmp.lt.s32.totalorder %s14, 5
      %p206 = pnand %p204, %p205
      %p207 = pneg %p206
      // Predicated region
      $region9: #{tpu_custom_call.1} parent=5 // pred_check
        _
      $region10: #{tpu_custom_call.1} parent=5 // pred_check_branch
        %209 = sbr.rel (%p206) target = $region12
      $region11: #{tpu_custom_call.1} parent=5 // pred_region
        %s210 = ssub.s32 %s14, 1
        // Predicated region
        $region13: #{tpu_custom_call.1} parent=11 // pred_check
          %p211 = pneg %p147
        $region14: #{tpu_custom_call.1} parent=11 // pred_check_branch
          %213 = sbr.rel (%p211) target = $region16
        $region15: #{tpu_custom_call.1} parent=11 // pred_region
          _
        $region16: #{tpu_custom_call.1} parent=11 // pred_fallthru
          _
        // Predicated region
        $region17: #{tpu_custom_call.1} parent=11 // pred_check
          %p214 = pneg %p168
        $region18: #{tpu_custom_call.1} parent=11 // pred_check_branch
          %216 = sbr.rel (%p214) target = $region20
        $region19: #{tpu_custom_call.1} parent=11 // pred_region
          _
        $region20: #{tpu_custom_call.1} parent=11 // pred_fallthru
          _
      $region12: #{tpu_custom_call.1} parent=5 // pred_fallthru
        _
      %p217 = scmp.lt.s32.totalorder %s14, 4
      // Predicated region
      $region21: #{tpu_custom_call.1} parent=5 // pred_check
        %p218 = pneg %p217
      $region22: #{tpu_custom_call.1} parent=5 // pred_check_branch
        %220 = sbr.rel (%p218) target = $region24
      $region23: #{tpu_custom_call.1} parent=5 // pred_region
        // Predicated region
        $region25: #{tpu_custom_call.1} parent=23 // pred_check
          %p221 = pneg %p48
        $region26: #{tpu_custom_call.1} parent=23 // pred_check_branch
          %223 = sbr.rel (%p221) target = $region28
        $region27: #{tpu_custom_call.1} parent=23 // pred_region
          %s224 = smul.u32 8, %s22
          %p225 = scmp.lt.s32.totalorder %s21, 1
          %s226 = scalar_select %p225, %s21, 1
          %p227 = scmp.lt.s32.totalorder %s224, 15
          %s228 = scalar_select %p227, %s224, 15
          %s229 = smul.addr %s228, 2
          %s230 = smul.addr %s226, 32
          %s231 = sadd.s32 %s229, %s230
          %s232 = smul.addr %s231, 8
          %s233 = scalar_lea.vmem %s0, %s232
          %s234 = smul.u32 8, %s22
        $region28: #{tpu_custom_call.1} parent=23 // pred_fallthru
          _
        // Predicated region
        $region29: #{tpu_custom_call.1} parent=23 // pred_check
          %p235 = pneg %p84
        $region30: #{tpu_custom_call.1} parent=23 // pred_check_branch
          %237 = sbr.rel (%p235) target = $region32
        $region31: #{tpu_custom_call.1} parent=23 // pred_region
          %s238 = smul.u32 %s22, 8
          %s239 = ssub.s32 %s238, 1
          %p240 = scmp.gt.s32.totalorder %s239, 0
          %s241 = scalar_select %p240, %s239, 0
          %p242 = scmp.lt.s32.totalorder %s21, 1
          %s243 = scalar_select %p242, %s21, 1
          %p244 = scmp.lt.s32.totalorder %s241, 15
          %s245 = scalar_select %p244, %s241, 15
          %s246 = smul.addr %s245, 2
          %s247 = smul.addr %s243, 32
          %s248 = sadd.s32 %s246, %s247
          %s249 = smul.addr %s248, 8
          %s250 = scalar_lea.vmem %s1, %s249
          %s251 = smul.u32 %s22, 8
          %s252 = ssub.s32 %s251, 1
          %p253 = scmp.gt.s32.totalorder %s252, 0
          %s254 = scalar_select %p253, %s252, 0
        $region32: #{tpu_custom_call.1} parent=23 // pred_fallthru
          _
        // Predicated region
        $region33: #{tpu_custom_call.1} parent=23 // pred_check
          %p255 = pneg %p120
        $region34: #{tpu_custom_call.1} parent=23 // pred_check_branch
          %257 = sbr.rel (%p255) target = $region36
        $region35: #{tpu_custom_call.1} parent=23 // pred_region
          %s258 = sadd.s32 %s22, 1
          %s259 = smul.u32 %s258, 8
          %p260 = scmp.lt.s32.totalorder %s259, 15
          %s261 = scalar_select %p260, %s259, 15
          %p262 = scmp.lt.s32.totalorder %s21, 1
          %s263 = scalar_select %p262, %s21, 1
          %p264 = scmp.lt.s32.totalorder %s261, 15
          %s265 = scalar_select %p264, %s261, 15
          %s266 = smul.addr %s265, 2
          %s267 = smul.addr %s263, 32
          %s268 = sadd.s32 %s266, %s267
          %s269 = smul.addr %s268, 8
          %s270 = scalar_lea.vmem %s2, %s269
          %s271 = sadd.s32 %s22, 1
          %s272 = smul.u32 %s271, 8
          %p273 = scmp.lt.s32.totalorder %s272, 15
          %s274 = scalar_select %p273, %s272, 15
        $region36: #{tpu_custom_call.1} parent=23 // pred_fallthru
          _
      $region24: #{tpu_custom_call.1} parent=5 // pred_fallthru
        _
      %p275 = scmp.le.s32.totalorder 1, %s14
      %p276 = scmp.lt.s32.totalorder %s14, 5
      %p277 = pnand %p275, %p276
      %p278 = pneg %p277
      // Predicated region
      $region37: #{tpu_custom_call.1} parent=5 // pred_check
        _
      $region38: #{tpu_custom_call.1} parent=5 // pred_check_branch
        %280 = sbr.rel (%p277) target = $region40
      $region39: #{tpu_custom_call.1} parent=5 // pred_region
        %s281 = ssub.s32 %s14, 1
        %s282 = smul.u32 8, %s24
        %p283 = scmp.lt.s32.totalorder %s23, 1
        %s284 = scalar_select %p283, %s23, 1
        %p285 = scmp.lt.s32.totalorder %s282, 15
        %s286 = scalar_select %p285, %s282, 15
        %s287 = smul.addr %s286, 2
        %s288 = smul.addr %s284, 32
        %s289 = sadd.s32 %s287, %s288
        %s290 = smul.addr %s289, 8
        %s291 = scalar_lea.vmem %s0, %s290
        %p292 = pneg %p54
        %p293 = pneg %p51
        %s294 = smul.u32 %s24, 8
        %s295 = ssub.s32 %s294, 1
        %p296 = scmp.gt.s32.totalorder %s295, 0
        %s297 = scalar_select %p296, %s295, 0
        %p298 = scmp.lt.s32.totalorder %s23, 1
        %s299 = scalar_select %p298, %s23, 1
        %p300 = scmp.lt.s32.totalorder %s297, 15
        %s301 = scalar_select %p300, %s297, 15
        %s302 = smul.addr %s301, 2
        %s303 = smul.addr %s299, 32
        %s304 = sadd.s32 %s302, %s303
        %s305 = smul.addr %s304, 8
        %s306 = scalar_lea.vmem %s1, %s305
        %p307 = pneg %p90
        %p308 = pneg %p87
        %s309 = sadd.s32 %s24, 1
        %s310 = smul.u32 %s309, 8
        %p311 = scmp.lt.s32.totalorder %s310, 15
        %s312 = scalar_select %p311, %s310, 15
        %p313 = scmp.lt.s32.totalorder %s23, 1
        %s314 = scalar_select %p313, %s23, 1
        %p315 = scmp.lt.s32.totalorder %s312, 15
        %s316 = scalar_select %p315, %s312, 15
        %s317 = smul.addr %s316, 2
        %s318 = smul.addr %s314, 32
        %s319 = sadd.s32 %s317, %s318
        %s320 = smul.addr %s319, 8
        %s321 = scalar_lea.vmem %s2, %s320
        %p322 = pneg %p126
        %p323 = pneg %p123
        %p324 = pneg %p147
        %p325 = pneg %p144
        %p326 = pneg %p168
        %p327 = pneg %p165
        %p328 = pneg %p196
        %p329 = pneg %p193
        %s330 = sand.u32 %s183, 1
        %s331 = scalar_lea.sflag [#allocation3], %s330
        %s332 = sand.u32 %s183, 1
        %s333 = smul.addr %s332, 32
        %s334 = scalar_lea.vmem [#allocation2], %s333
        %s335 = smul.u32 8, %s24
        %p336 = scmp.lt.s32.totalorder %s23, 1
        %s337 = scalar_select %p336, %s23, 1
        %p338 = scmp.lt.s32.totalorder %s335, 15
        %s339 = scalar_select %p338, %s335, 15
        %s340 = smul.addr %s339, 2
        %s341 = smul.addr %s337, 32
        %s342 = sadd.s32 %s340, %s341
        %s343 = smul.addr %s342, 8
        %s344 = scalar_lea.vmem %s0, %s343
        %s345 = smul.u32 8, %s24
        %s346 = smul.u32 %s24, 8
        %s347 = ssub.s32 %s346, 1
        %p348 = scmp.gt.s32.totalorder %s347, 0
        %s349 = scalar_select %p348, %s347, 0
        %p350 = scmp.lt.s32.totalorder %s23, 1
        %s351 = scalar_select %p350, %s23, 1
        %p352 = scmp.lt.s32.totalorder %s349, 15
        %s353 = scalar_select %p352, %s349, 15
        %s354 = smul.addr %s353, 2
        %s355 = smul.addr %s351, 32
        %s356 = sadd.s32 %s354, %s355
        %s357 = smul.addr %s356, 8
        %s358 = scalar_lea.vmem %s1, %s357
        %s359 = smul.u32 %s24, 8
        %s360 = ssub.s32 %s359, 1
        %p361 = scmp.gt.s32.totalorder %s360, 0
        %s362 = scalar_select %p361, %s360, 0
        %s363 = sadd.s32 %s24, 1
        %s364 = smul.u32 %s363, 8
        %p365 = scmp.lt.s32.totalorder %s364, 15
        %s366 = scalar_select %p365, %s364, 15
        %p367 = scmp.lt.s32.totalorder %s23, 1
        %s368 = scalar_select %p367, %s23, 1
        %p369 = scmp.lt.s32.totalorder %s366, 15
        %s370 = scalar_select %p369, %s366, 15
        %s371 = smul.addr %s370, 2
        %s372 = smul.addr %s368, 32
        %s373 = sadd.s32 %s371, %s372
        %s374 = smul.addr %s373, 8
        %s375 = scalar_lea.vmem %s2, %s374
        %s376 = sadd.s32 %s24, 1
        %s377 = smul.u32 %s376, 8
        %p378 = scmp.lt.s32.totalorder %s377, 15
        %s379 = scalar_select %p378, %s377, 15
        %s380 = smul.u32 4, %s24
        %v381 = vld [vmem:[%s344] sm:$0xff]
        %v382 = vld [vmem:[%s344 + $0x8] sm:$0xff]
        %v383 = vld [vmem:[%s344 + $0x10] sm:$0xff]
        %v384 = vld [vmem:[%s344 + $0x18] sm:$0xff]
        %v385 = vld [vmem:[%s344 + $0x20] sm:$0xff]
        %v386 = vld [vmem:[%s344 + $0x28] sm:$0xff]
        %v387 = vld [vmem:[%s344 + $0x30] sm:$0xff]
        %v388 = vld [vmem:[%s344 + $0x38] sm:$0xff]
        %v389 = vld [vmem:[%s344 + $0x40] sm:$0xff]
        %v390 = vld [vmem:[%s344 + $0x48] sm:$0xff]
        %v391 = vld [vmem:[%s344 + $0x50] sm:$0xff]
        %v392 = vld [vmem:[%s344 + $0x58] sm:$0xff]
        %v393 = vld [vmem:[%s344 + $0x60] sm:$0xff]
        %v394 = vld [vmem:[%s344 + $0x68] sm:$0xff]
        %v395 = vld [vmem:[%s344 + $0x70] sm:$0xff]
        %v396 = vld [vmem:[%s344 + $0x78] sm:$0xff]
        %v397 = vld [vmem:[%s358] sm:$0xff]
        %v398 = vld [vmem:[%s358 + $0x8] sm:$0xff]
        %v399 = vld [vmem:[%s375] sm:$0xff]
        %v400 = vld [vmem:[%s375 + $0x8] sm:$0xff]
        %p401 = scmp.eq.s32.totalorder %s24, 0
        %s402 = scalar_select %p401, 1, 0
        %v403 = vstv %s402
        %vm404 = vcmp.eq.s32.totalorder %v403, 1
        %v405 = vsel %vm404, 0.0, %v397
        %v406 = vsel %vm404, 0.0, %v398
        %p407 = scmp.eq.s32.totalorder %s24, 1
        %s408 = scalar_select %p407, 1, 0
        %v409 = vstv %s408
        %vm410 = vcmp.eq.s32.totalorder %v409, 1
        %v411 = vsel %vm410, 0.0, %v399
        %v412 = vsel %vm410, 0.0, %v400
        %v433 = vrot.slane %v405, 1
        %v434 = vrot.slane %v405, 2
        %v435 = vrot.slane %v405, 3
        %v436 = vrot.slane %v405, 4
        %v437 = vrot.slane %v405, 5
        %v438 = vrot.slane %v405, 6
        %v439 = vrot.slane %v405, 7
        %v440 = vrot.slane %v406, 1
        %v441 = vrot.slane %v406, 2
        %v442 = vrot.slane %v406, 3
        %v443 = vrot.slane %v406, 4
        %v444 = vrot.slane %v406, 5
        %v445 = vrot.slane %v406, 6
        %v446 = vrot.slane %v406, 7
        %v447 = vrot.slane %v381, 1
        %v448 = vrot.slane %v381, 2
        %v449 = vrot.slane %v381, 3
        %v450 = vrot.slane %v381, 4
        %v451 = vrot.slane %v381, 5
        %v452 = vrot.slane %v381, 6
        %v453 = vrot.slane %v381, 7
        %v454 = vrot.slane %v382, 1
        %v455 = vrot.slane %v382, 2
        %v456 = vrot.slane %v382, 3
        %v457 = vrot.slane %v382, 4
        %v458 = vrot.slane %v382, 5
        %v459 = vrot.slane %v382, 6
        %v460 = vrot.slane %v382, 7
        %v461 = vrot.slane %v383, 1
        %v462 = vrot.slane %v383, 2
        %v463 = vrot.slane %v383, 3
        %v464 = vrot.slane %v383, 4
        %v465 = vrot.slane %v383, 5
        %v466 = vrot.slane %v383, 6
        %v467 = vrot.slane %v383, 7
        %v468 = vrot.slane %v384, 1
        %v469 = vrot.slane %v384, 2
        %v470 = vrot.slane %v384, 3
        %v471 = vrot.slane %v384, 4
        %v472 = vrot.slane %v384, 5
        %v473 = vrot.slane %v384, 6
        %v474 = vrot.slane %v384, 7
        %v475 = vrot.slane %v385, 1
        %v476 = vrot.slane %v385, 2
        %v477 = vrot.slane %v385, 3
        %v478 = vrot.slane %v385, 4
        %v479 = vrot.slane %v385, 5
        %v480 = vrot.slane %v385, 6
        %v481 = vrot.slane %v385, 7
        %v482 = vrot.slane %v386, 1
        %v483 = vrot.slane %v386, 2
        %v484 = vrot.slane %v386, 3
        %v485 = vrot.slane %v386, 4
        %v486 = vrot.slane %v386, 5
        %v487 = vrot.slane %v386, 6
        %v488 = vrot.slane %v386, 7
        %v489 = vrot.slane %v387, 1
        %v490 = vrot.slane %v387, 2
        %v491 = vrot.slane %v387, 3
        %v492 = vrot.slane %v387, 4
        %v493 = vrot.slane %v387, 5
        %v494 = vrot.slane %v387, 6
        %v495 = vrot.slane %v387, 7
        %v496 = vrot.slane %v388, 1
        %v497 = vrot.slane %v388, 2
        %v498 = vrot.slane %v388, 3
        %v499 = vrot.slane %v388, 4
        %v500 = vrot.slane %v388, 5
        %v501 = vrot.slane %v388, 6
        %v502 = vrot.slane %v388, 7
        %v503 = vrot.slane %v389, 1
        %v504 = vrot.slane %v389, 2
        %v505 = vrot.slane %v389, 3
        %v506 = vrot.slane %v389, 4
        %v507 = vrot.slane %v389, 5
        %v508 = vrot.slane %v389, 6
        %v509 = vrot.slane %v389, 7
        %v510 = vrot.slane %v390, 1
        %v511 = vrot.slane %v390, 2
        %v512 = vrot.slane %v390, 3
        %v513 = vrot.slane %v390, 4
        %v514 = vrot.slane %v390, 5
        %v515 = vrot.slane %v390, 6
        %v516 = vrot.slane %v390, 7
        %v517 = vrot.slane %v391, 1
        %v518 = vrot.slane %v391, 2
        %v519 = vrot.slane %v391, 3
        %v520 = vrot.slane %v391, 4
        %v521 = vrot.slane %v391, 5
        %v522 = vrot.slane %v391, 6
        %v523 = vrot.slane %v391, 7
        %v524 = vrot.slane %v392, 1
        %v525 = vrot.slane %v392, 2
        %v526 = vrot.slane %v392, 3
        %v527 = vrot.slane %v392, 4
        %v528 = vrot.slane %v392, 5
        %v529 = vrot.slane %v392, 6
        %v530 = vrot.slane %v392, 7
        %v531 = vrot.slane %v393, 1
        %v532 = vrot.slane %v393, 2
        %v533 = vrot.slane %v393, 3
        %v534 = vrot.slane %v393, 4
        %v535 = vrot.slane %v393, 5
        %v536 = vrot.slane %v393, 6
        %v537 = vrot.slane %v393, 7
        %v538 = vrot.slane %v394, 1
        %v539 = vrot.slane %v394, 2
        %v540 = vrot.slane %v394, 3
        %v541 = vrot.slane %v394, 4
        %v542 = vrot.slane %v394, 5
        %v543 = vrot.slane %v394, 6
        %v544 = vrot.slane %v394, 7
        %v545 = vrot.slane %v395, 1
        %v546 = vrot.slane %v395, 2
        %v547 = vrot.slane %v395, 3
        %v548 = vrot.slane %v395, 4
        %v549 = vrot.slane %v395, 5
        %v550 = vrot.slane %v395, 6
        %v551 = vrot.slane %v395, 7
        %v552 = vrot.slane %v396, 1
        %v553 = vrot.slane %v396, 2
        %v554 = vrot.slane %v396, 3
        %v555 = vrot.slane %v396, 4
        %v556 = vrot.slane %v396, 5
        %v557 = vrot.slane %v396, 6
        %v558 = vrot.slane %v396, 7
        %v559 = vrot.slane %v411, 1
        %v560 = vrot.slane %v411, 2
        %v561 = vrot.slane %v411, 3
        %v562 = vrot.slane %v411, 4
        %v563 = vrot.slane %v411, 5
        %v564 = vrot.slane %v411, 6
        %v565 = vrot.slane %v411, 7
        %v566 = vrot.slane %v412, 1
        %v567 = vrot.slane %v412, 2
        %v568 = vrot.slane %v412, 3
        %v569 = vrot.slane %v412, 4
        %v570 = vrot.slane %v412, 5
        %v571 = vrot.slane %v412, 6
        %v572 = vrot.slane %v412, 7
        %v573 = vperm.slane %v405, 0
        %v574 = vperm.slane %v433, 0
        %v575 = vperm.slane %v434, 0
        %v576 = vperm.slane %v435, 0
        %v577 = vperm.slane %v436, 0
        %v578 = vperm.slane %v437, 0
        %v579 = vperm.slane %v438, 0
        %v580 = vperm.slane %v439, 0
        %v581 = vperm.slane %v406, 0
        %v582 = vperm.slane %v440, 0
        %v583 = vperm.slane %v441, 0
        %v584 = vperm.slane %v442, 0
        %v585 = vperm.slane %v443, 0
        %v586 = vperm.slane %v444, 0
        %v587 = vperm.slane %v445, 0
        %v588 = vperm.slane %v446, 0
        %v589 = vperm.slane %v381, 0
        %v590 = vperm.slane %v447, 0
        %v591 = vperm.slane %v448, 0
        %v592 = vperm.slane %v449, 0
        %v593 = vperm.slane %v450, 0
        %v594 = vperm.slane %v451, 0
        %v595 = vperm.slane %v452, 0
        %v596 = vperm.slane %v453, 0
        %v597 = vperm.slane %v382, 0
        %v598 = vperm.slane %v454, 0
        %v599 = vperm.slane %v455, 0
        %v600 = vperm.slane %v456, 0
        %v601 = vperm.slane %v457, 0
        %v602 = vperm.slane %v458, 0
        %v603 = vperm.slane %v459, 0
        %v604 = vperm.slane %v460, 0
        %v605 = vperm.slane %v383, 0
        %v606 = vperm.slane %v461, 0
        %v607 = vperm.slane %v462, 0
        %v608 = vperm.slane %v463, 0
        %v609 = vperm.slane %v464, 0
        %v610 = vperm.slane %v465, 0
        %v611 = vperm.slane %v466, 0
        %v612 = vperm.slane %v467, 0
        %v613 = vperm.slane %v384, 0
        %v614 = vperm.slane %v468, 0
        %v615 = vperm.slane %v469, 0
        %v616 = vperm.slane %v470, 0
        %v617 = vperm.slane %v471, 0
        %v618 = vperm.slane %v472, 0
        %v619 = vperm.slane %v473, 0
        %v620 = vperm.slane %v474, 0
        %v621 = vperm.slane %v385, 0
        %v622 = vperm.slane %v475, 0
        %v623 = vperm.slane %v476, 0
        %v624 = vperm.slane %v477, 0
        %v625 = vperm.slane %v478, 0
        %v626 = vperm.slane %v479, 0
        %v627 = vperm.slane %v480, 0
        %v628 = vperm.slane %v481, 0
        %v629 = vperm.slane %v386, 0
        %v630 = vperm.slane %v482, 0
        %v631 = vperm.slane %v483, 0
        %v632 = vperm.slane %v484, 0
        %v633 = vperm.slane %v485, 0
        %v634 = vperm.slane %v486, 0
        %v635 = vperm.slane %v487, 0
        %v636 = vperm.slane %v488, 0
        %v637 = vperm.slane %v387, 0
        %v638 = vperm.slane %v489, 0
        %v639 = vperm.slane %v490, 0
        %v640 = vperm.slane %v491, 0
        %v641 = vperm.slane %v492, 0
        %v642 = vperm.slane %v493, 0
        %v643 = vperm.slane %v494, 0
        %v644 = vperm.slane %v495, 0
        %v645 = vperm.slane %v388, 0
        %v646 = vperm.slane %v496, 0
        %v647 = vperm.slane %v497, 0
        %v648 = vperm.slane %v498, 0
        %v649 = vperm.slane %v499, 0
        %v650 = vperm.slane %v500, 0
        %v651 = vperm.slane %v501, 0
        %v652 = vperm.slane %v502, 0
        %v653 = vperm.slane %v389, 0
        %v654 = vperm.slane %v503, 0
        %v655 = vperm.slane %v504, 0
        %v656 = vperm.slane %v505, 0
        %v657 = vperm.slane %v506, 0
        %v658 = vperm.slane %v507, 0
        %v659 = vperm.slane %v508, 0
        %v660 = vperm.slane %v509, 0
        %v661 = vperm.slane %v390, 0
        %v662 = vperm.slane %v510, 0
        %v663 = vperm.slane %v511, 0
        %v664 = vperm.slane %v512, 0
        %v665 = vperm.slane %v513, 0
        %v666 = vperm.slane %v514, 0
        %v667 = vperm.slane %v515, 0
        %v668 = vperm.slane %v516, 0
        %v669 = vperm.slane %v391, 0
        %v670 = vperm.slane %v517, 0
        %v671 = vperm.slane %v518, 0
        %v672 = vperm.slane %v519, 0
        %v673 = vperm.slane %v520, 0
        %v674 = vperm.slane %v521, 0
        %v675 = vperm.slane %v522, 0
        %v676 = vperm.slane %v523, 0
        %v677 = vperm.slane %v392, 0
        %v678 = vperm.slane %v524, 0
        %v679 = vperm.slane %v525, 0
        %v680 = vperm.slane %v526, 0
        %v681 = vperm.slane %v527, 0
        %v682 = vperm.slane %v528, 0
        %v683 = vperm.slane %v529, 0
        %v684 = vperm.slane %v530, 0
        %v685 = vperm.slane %v393, 0
        %v686 = vperm.slane %v531, 0
        %v687 = vperm.slane %v532, 0
        %v688 = vperm.slane %v533, 0
        %v689 = vperm.slane %v534, 0
        %v690 = vperm.slane %v535, 0
        %v691 = vperm.slane %v536, 0
        %v692 = vperm.slane %v537, 0
        %v693 = vperm.slane %v394, 0
        %v694 = vperm.slane %v538, 0
        %v695 = vperm.slane %v539, 0
        %v696 = vperm.slane %v540, 0
        %v697 = vperm.slane %v541, 0
        %v698 = vperm.slane %v542, 0
        %v699 = vperm.slane %v543, 0
        %v700 = vperm.slane %v544, 0
        %v701 = vperm.slane %v395, 0
        %v702 = vperm.slane %v545, 0
        %v703 = vperm.slane %v546, 0
        %v704 = vperm.slane %v547, 0
        %v705 = vperm.slane %v548, 0
        %v706 = vperm.slane %v549, 0
        %v707 = vperm.slane %v550, 0
        %v708 = vperm.slane %v551, 0
        %v709 = vperm.slane %v396, 0
        %v710 = vperm.slane %v552, 0
        %v711 = vperm.slane %v553, 0
        %v712 = vperm.slane %v554, 0
        %v713 = vperm.slane %v555, 0
        %v714 = vperm.slane %v556, 0
        %v715 = vperm.slane %v557, 0
        %v716 = vperm.slane %v558, 0
        %v717 = vperm.slane %v411, 0
        %v718 = vperm.slane %v559, 0
        %v719 = vperm.slane %v560, 0
        %v720 = vperm.slane %v561, 0
        %v721 = vperm.slane %v562, 0
        %v722 = vperm.slane %v563, 0
        %v723 = vperm.slane %v564, 0
        %v724 = vperm.slane %v565, 0
        %v725 = vperm.slane %v412, 0
        %v726 = vperm.slane %v566, 0
        %v727 = vperm.slane %v567, 0
        %v728 = vperm.slane %v568, 0
        %v729 = vperm.slane %v569, 0
        %v730 = vperm.slane %v570, 0
        %v731 = vperm.slane %v571, 0
        %v732 = vperm.slane %v572, 0
        %733 = vst [vmem:[#allocation1] ss:$4 sm:$0xff] %v573
        %s734 = scalar_lea.vmem [#allocation1], 1
        %735 = vst [vmem:[%s734] ss:$4 sm:$0xff] %v574
        %s736 = scalar_lea.vmem [#allocation1], 2
        %737 = vst [vmem:[%s736] ss:$4 sm:$0xff] %v575
        %s738 = scalar_lea.vmem [#allocation1], 3
        %739 = vst [vmem:[%s738] ss:$4 sm:$0xff] %v576
        %s740 = scalar_lea.vmem [#allocation1], 32
        %741 = vst [vmem:[%s740] ss:$4 sm:$0xff] %v577
        %s742 = scalar_lea.vmem [#allocation1], 33
        %743 = vst [vmem:[%s742] ss:$4 sm:$0xff] %v578
        %s744 = scalar_lea.vmem [#allocation1], 34
        %745 = vst [vmem:[%s744] ss:$4 sm:$0xff] %v579
        %s746 = scalar_lea.vmem [#allocation1], 35
        %747 = vst [vmem:[%s746] ss:$4 sm:$0xff] %v580
        %v748 = vld.sshfl [vmem:[#allocation1] sm:$0xff pattern:$0x73625140]
        %v749 = vld.sshfl [vmem:[#allocation1 + $0x20] sm:$0xff pattern:$0x73625140]
        %750 = vst [vmem:[#allocation1] ss:$4 sm:$0xff] %v581
        %751 = vst [vmem:[%s734] ss:$4 sm:$0xff] %v582
        %752 = vst [vmem:[%s736] ss:$4 sm:$0xff] %v583
        %753 = vst [vmem:[%s738] ss:$4 sm:$0xff] %v584
        %754 = vst [vmem:[%s740] ss:$4 sm:$0xff] %v585
        %755 = vst [vmem:[%s742] ss:$4 sm:$0xff] %v586
        %756 = vst [vmem:[%s744] ss:$4 sm:$0xff] %v587
        %757 = vst [vmem:[%s746] ss:$4 sm:$0xff] %v588
        %v758 = vld.sshfl [vmem:[#allocation1] sm:$0xff pattern:$0x73625140]
        %v759 = vld.sshfl [vmem:[#allocation1 + $0x20] sm:$0xff pattern:$0x73625140]
        %760 = vst [vmem:[#allocation1] ss:$4 sm:$0xff] %v589
        %761 = vst [vmem:[%s734] ss:$4 sm:$0xff] %v590
        %762 = vst [vmem:[%s736] ss:$4 sm:$0xff] %v591
        %763 = vst [vmem:[%s738] ss:$4 sm:$0xff] %v592
        %764 = vst [vmem:[%s740] ss:$4 sm:$0xff] %v593
        %765 = vst [vmem:[%s742] ss:$4 sm:$0xff] %v594
        %766 = vst [vmem:[%s744] ss:$4 sm:$0xff] %v595
        %767 = vst [vmem:[%s746] ss:$4 sm:$0xff] %v596
        %v768 = vld.sshfl [vmem:[#allocation1] sm:$0xff pattern:$0x73625140]
        %v769 = vld.sshfl [vmem:[#allocation1 + $0x20] sm:$0xff pattern:$0x73625140]
        %770 = vst [vmem:[#allocation1] ss:$4 sm:$0xff] %v597
        %771 = vst [vmem:[%s734] ss:$4 sm:$0xff] %v598
        %772 = vst [vmem:[%s736] ss:$4 sm:$0xff] %v599
        %773 = vst [vmem:[%s738] ss:$4 sm:$0xff] %v600
        %774 = vst [vmem:[%s740] ss:$4 sm:$0xff] %v601
        %775 = vst [vmem:[%s742] ss:$4 sm:$0xff] %v602
        %776 = vst [vmem:[%s744] ss:$4 sm:$0xff] %v603
        %777 = vst [vmem:[%s746] ss:$4 sm:$0xff] %v604
        %v778 = vld.sshfl [vmem:[#allocation1] sm:$0xff pattern:$0x73625140]
        %v779 = vld.sshfl [vmem:[#allocation1 + $0x20] sm:$0xff pattern:$0x73625140]
        %780 = vst [vmem:[#allocation1] ss:$4 sm:$0xff] %v589
        %781 = vst [vmem:[%s734] ss:$4 sm:$0xff] %v590
        %782 = vst [vmem:[%s736] ss:$4 sm:$0xff] %v591
        %783 = vst [vmem:[%s738] ss:$4 sm:$0xff] %v592
        %784 = vst [vmem:[%s740] ss:$4 sm:$0xff] %v593
        %785 = vst [vmem:[%s742] ss:$4 sm:$0xff] %v594
        %786 = vst [vmem:[%s744] ss:$4 sm:$0xff] %v595
        %787 = vst [vmem:[%s746] ss:$4 sm:$0xff] %v596
        %v788 = vld.sshfl [vmem:[#allocation1] sm:$0xff pattern:$0x73625140]
        %v789 = vld.sshfl [vmem:[#allocation1 + $0x20] sm:$0xff pattern:$0x73625140]
        %790 = vst [vmem:[#allocation1] ss:$4 sm:$0xff] %v597
        %791 = vst [vmem:[%s734] ss:$4 sm:$0xff] %v598
        %792 = vst [vmem:[%s736] ss:$4 sm:$0xff] %v599
        %793 = vst [vmem:[%s738] ss:$4 sm:$0xff] %v600
        %794 = vst [vmem:[%s740] ss:$4 sm:$0xff] %v601
        %795 = vst [vmem:[%s742] ss:$4 sm:$0xff] %v602
        %796 = vst [vmem:[%s744] ss:$4 sm:$0xff] %v603
        %797 = vst [vmem:[%s746] ss:$4 sm:$0xff] %v604
        %v798 = vld.sshfl [vmem:[#allocation1] sm:$0xff pattern:$0x73625140]
        %v799 = vld.sshfl [vmem:[#allocation1 + $0x20] sm:$0xff pattern:$0x73625140]
        %800 = vst [vmem:[#allocation1] ss:$4 sm:$0xff] %v605
        %801 = vst [vmem:[%s734] ss:$4 sm:$0xff] %v606
        %802 = vst [vmem:[%s736] ss:$4 sm:$0xff] %v607
        %803 = vst [vmem:[%s738] ss:$4 sm:$0xff] %v608
        %804 = vst [vmem:[%s740] ss:$4 sm:$0xff] %v609
        %805 = vst [vmem:[%s742] ss:$4 sm:$0xff] %v610
        %806 = vst [vmem:[%s744] ss:$4 sm:$0xff] %v611
        %807 = vst [vmem:[%s746] ss:$4 sm:$0xff] %v612
        %v808 = vld.sshfl [vmem:[#allocation1] sm:$0xff pattern:$0x73625140]
        %v809 = vld.sshfl [vmem:[#allocation1 + $0x20] sm:$0xff pattern:$0x73625140]
        %810 = vst [vmem:[#allocation1] ss:$4 sm:$0xff] %v613
        %811 = vst [vmem:[%s734] ss:$4 sm:$0xff] %v614
        %812 = vst [vmem:[%s736] ss:$4 sm:$0xff] %v615
        %813 = vst [vmem:[%s738] ss:$4 sm:$0xff] %v616
        %814 = vst [vmem:[%s740] ss:$4 sm:$0xff] %v617
        %815 = vst [vmem:[%s742] ss:$4 sm:$0xff] %v618
        %816 = vst [vmem:[%s744] ss:$4 sm:$0xff] %v619
        %817 = vst [vmem:[%s746] ss:$4 sm:$0xff] %v620
        %v818 = vld.sshfl [vmem:[#allocation1] sm:$0xff pattern:$0x73625140]
        %v819 = vld.sshfl [vmem:[#allocation1 + $0x20] sm:$0xff pattern:$0x73625140]
        %820 = vst [vmem:[#allocation1] ss:$4 sm:$0xff] %v605
        %821 = vst [vmem:[%s734] ss:$4 sm:$0xff] %v606
        %822 = vst [vmem:[%s736] ss:$4 sm:$0xff] %v607
        %823 = vst [vmem:[%s738] ss:$4 sm:$0xff] %v608
        %824 = vst [vmem:[%s740] ss:$4 sm:$0xff] %v609
        %825 = vst [vmem:[%s742] ss:$4 sm:$0xff] %v610
        %826 = vst [vmem:[%s744] ss:$4 sm:$0xff] %v611
        %827 = vst [vmem:[%s746] ss:$4 sm:$0xff] %v612
        %v828 = vld.sshfl [vmem:[#allocation1] sm:$0xff pattern:$0x73625140]
        %v829 = vld.sshfl [vmem:[#allocation1 + $0x20] sm:$0xff pattern:$0x73625140]
        %830 = vst [vmem:[#allocation1] ss:$4 sm:$0xff] %v613
        %831 = vst [vmem:[%s734] ss:$4 sm:$0xff] %v614
        %832 = vst [vmem:[%s736] ss:$4 sm:$0xff] %v615
        %833 = vst [vmem:[%s738] ss:$4 sm:$0xff] %v616
        %834 = vst [vmem:[%s740] ss:$4 sm:$0xff] %v617
        %835 = vst [vmem:[%s742] ss:$4 sm:$0xff] %v618
        %836 = vst [vmem:[%s744] ss:$4 sm:$0xff] %v619
        %837 = vst [vmem:[%s746] ss:$4 sm:$0xff] %v620
        %v838 = vld.sshfl [vmem:[#allocation1] sm:$0xff pattern:$0x73625140]
        %v839 = vld.sshfl [vmem:[#allocation1 + $0x20] sm:$0xff pattern:$0x73625140]
        %840 = vst [vmem:[#allocation1] ss:$4 sm:$0xff] %v621
        %841 = vst [vmem:[%s734] ss:$4 sm:$0xff] %v622
        %842 = vst [vmem:[%s736] ss:$4 sm:$0xff] %v623
        %843 = vst [vmem:[%s738] ss:$4 sm:$0xff] %v624
        %844 = vst [vmem:[%s740] ss:$4 sm:$0xff] %v625
        %845 = vst [vmem:[%s742] ss:$4 sm:$0xff] %v626
        %846 = vst [vmem:[%s744] ss:$4 sm:$0xff] %v627
        %847 = vst [vmem:[%s746] ss:$4 sm:$0xff] %v628
        %v848 = vld.sshfl [vmem:[#allocation1] sm:$0xff pattern:$0x73625140]
        %v849 = vld.sshfl [vmem:[#allocation1 + $0x20] sm:$0xff pattern:$0x73625140]
        %850 = vst [vmem:[#allocation1] ss:$4 sm:$0xff] %v629
        %851 = vst [vmem:[%s734] ss:$4 sm:$0xff] %v630
        %852 = vst [vmem:[%s736] ss:$4 sm:$0xff] %v631
        %853 = vst [vmem:[%s738] ss:$4 sm:$0xff] %v632
        %854 = vst [vmem:[%s740] ss:$4 sm:$0xff] %v633
        %855 = vst [vmem:[%s742] ss:$4 sm:$0xff] %v634
        %856 = vst [vmem:[%s744] ss:$4 sm:$0xff] %v635
        %857 = vst [vmem:[%s746] ss:$4 sm:$0xff] %v636
        %v858 = vld.sshfl [vmem:[#allocation1] sm:$0xff pattern:$0x73625140]
        %v859 = vld.sshfl [vmem:[#allocation1 + $0x20] sm:$0xff pattern:$0x73625140]
        %860 = vst [vmem:[#allocation1] ss:$4 sm:$0xff] %v621
        %861 = vst [vmem:[%s734] ss:$4 sm:$0xff] %v622
        %862 = vst [vmem:[%s736] ss:$4 sm:$0xff] %v623
        %863 = vst [vmem:[%s738] ss:$4 sm:$0xff] %v624
        %864 = vst [vmem:[%s740] ss:$4 sm:$0xff] %v625
        %865 = vst [vmem:[%s742] ss:$4 sm:$0xff] %v626
        %866 = vst [vmem:[%s744] ss:$4 sm:$0xff] %v627
        %867 = vst [vmem:[%s746] ss:$4 sm:$0xff] %v628
        %v868 = vld.sshfl [vmem:[#allocation1] sm:$0xff pattern:$0x73625140]
        %v869 = vld.sshfl [vmem:[#allocation1 + $0x20] sm:$0xff pattern:$0x73625140]
        %870 = vst [vmem:[#allocation1] ss:$4 sm:$0xff] %v629
        %871 = vst [vmem:[%s734] ss:$4 sm:$0xff] %v630
        %872 = vst [vmem:[%s736] ss:$4 sm:$0xff] %v631
        %873 = vst [vmem:[%s738] ss:$4 sm:$0xff] %v632
        %874 = vst [vmem:[%s740] ss:$4 sm:$0xff] %v633
        %875 = vst [vmem:[%s742] ss:$4 sm:$0xff] %v634
        %876 = vst [vmem:[%s744] ss:$4 sm:$0xff] %v635
        %877 = vst [vmem:[%s746] ss:$4 sm:$0xff] %v636
        %v878 = vld.sshfl [vmem:[#allocation1] sm:$0xff pattern:$0x73625140]
        %v879 = vld.sshfl [vmem:[#allocation1 + $0x20] sm:$0xff pattern:$0x73625140]
        %880 = vst [vmem:[#allocation1] ss:$4 sm:$0xff] %v637
        %881 = vst [vmem:[%s734] ss:$4 sm:$0xff] %v638
        %882 = vst [vmem:[%s736] ss:$4 sm:$0xff] %v639
        %883 = vst [vmem:[%s738] ss:$4 sm:$0xff] %v640
        %884 = vst [vmem:[%s740] ss:$4 sm:$0xff] %v641
        %885 = vst [vmem:[%s742] ss:$4 sm:$0xff] %v642
        %886 = vst [vmem:[%s744] ss:$4 sm:$0xff] %v643
        %887 = vst [vmem:[%s746] ss:$4 sm:$0xff] %v644
        %v888 = vld.sshfl [vmem:[#allocation1] sm:$0xff pattern:$0x73625140]
        %v889 = vld.sshfl [vmem:[#allocation1 + $0x20] sm:$0xff pattern:$0x73625140]
        %890 = vst [vmem:[#allocation1] ss:$4 sm:$0xff] %v645
        %891 = vst [vmem:[%s734] ss:$4 sm:$0xff] %v646
        %892 = vst [vmem:[%s736] ss:$4 sm:$0xff] %v647
        %893 = vst [vmem:[%s738] ss:$4 sm:$0xff] %v648
        %894 = vst [vmem:[%s740] ss:$4 sm:$0xff] %v649
        %895 = vst [vmem:[%s742] ss:$4 sm:$0xff] %v650
        %896 = vst [vmem:[%s744] ss:$4 sm:$0xff] %v651
        %897 = vst [vmem:[%s746] ss:$4 sm:$0xff] %v652
        %v898 = vld.sshfl [vmem:[#allocation1] sm:$0xff pattern:$0x73625140]
        %v899 = vld.sshfl [vmem:[#allocation1 + $0x20] sm:$0xff pattern:$0x73625140]
        %900 = vst [vmem:[#allocation1] ss:$4 sm:$0xff] %v637
        %901 = vst [vmem:[%s734] ss:$4 sm:$0xff] %v638
        %902 = vst [vmem:[%s736] ss:$4 sm:$0xff] %v639
        %903 = vst [vmem:[%s738] ss:$4 sm:$0xff] %v640
        %904 = vst [vmem:[%s740] ss:$4 sm:$0xff] %v641
        %905 = vst [vmem:[%s742] ss:$4 sm:$0xff] %v642
        %906 = vst [vmem:[%s744] ss:$4 sm:$0xff] %v643
        %907 = vst [vmem:[%s746] ss:$4 sm:$0xff] %v644
        %v908 = vld.sshfl [vmem:[#allocation1] sm:$0xff pattern:$0x73625140]
        %v909 = vld.sshfl [vmem:[#allocation1 + $0x20] sm:$0xff pattern:$0x73625140]
        %910 = vst [vmem:[#allocation1] ss:$4 sm:$0xff] %v645
        %911 = vst [vmem:[%s734] ss:$4 sm:$0xff] %v646
        %912 = vst [vmem:[%s736] ss:$4 sm:$0xff] %v647
        %913 = vst [vmem:[%s738] ss:$4 sm:$0xff] %v648
        %914 = vst [vmem:[%s740] ss:$4 sm:$0xff] %v649
        %915 = vst [vmem:[%s742] ss:$4 sm:$0xff] %v650
        %916 = vst [vmem:[%s744] ss:$4 sm:$0xff] %v651
        %917 = vst [vmem:[%s746] ss:$4 sm:$0xff] %v652
        %v918 = vld.sshfl [vmem:[#allocation1] sm:$0xff pattern:$0x73625140]
        %v919 = vld.sshfl [vmem:[#allocation1 + $0x20] sm:$0xff pattern:$0x73625140]
        %920 = vst [vmem:[#allocation1] ss:$4 sm:$0xff] %v653
        %921 = vst [vmem:[%s734] ss:$4 sm:$0xff] %v654
        %922 = vst [vmem:[%s736] ss:$4 sm:$0xff] %v655
        %923 = vst [vmem:[%s738] ss:$4 sm:$0xff] %v656
        %924 = vst [vmem:[%s740] ss:$4 sm:$0xff] %v657
        %925 = vst [vmem:[%s742] ss:$4 sm:$0xff] %v658
        %926 = vst [vmem:[%s744] ss:$4 sm:$0xff] %v659
        %927 = vst [vmem:[%s746] ss:$4 sm:$0xff] %v660
        %v928 = vld.sshfl [vmem:[#allocation1] sm:$0xff pattern:$0x73625140]
        %v929 = vld.sshfl [vmem:[#allocation1 + $0x20] sm:$0xff pattern:$0x73625140]
        %930 = vst [vmem:[#allocation1] ss:$4 sm:$0xff] %v661
        %931 = vst [vmem:[%s734] ss:$4 sm:$0xff] %v662
        %932 = vst [vmem:[%s736] ss:$4 sm:$0xff] %v663
        %933 = vst [vmem:[%s738] ss:$4 sm:$0xff] %v664
        %934 = vst [vmem:[%s740] ss:$4 sm:$0xff] %v665
        %935 = vst [vmem:[%s742] ss:$4 sm:$0xff] %v666
        %936 = vst [vmem:[%s744] ss:$4 sm:$0xff] %v667
        %937 = vst [vmem:[%s746] ss:$4 sm:$0xff] %v668
        %v938 = vld.sshfl [vmem:[#allocation1] sm:$0xff pattern:$0x73625140]
        %v939 = vld.sshfl [vmem:[#allocation1 + $0x20] sm:$0xff pattern:$0x73625140]
        %940 = vst [vmem:[#allocation1] ss:$4 sm:$0xff] %v653
        %941 = vst [vmem:[%s734] ss:$4 sm:$0xff] %v654
        %942 = vst [vmem:[%s736] ss:$4 sm:$0xff] %v655
        %943 = vst [vmem:[%s738] ss:$4 sm:$0xff] %v656
        %944 = vst [vmem:[%s740] ss:$4 sm:$0xff] %v657
        %945 = vst [vmem:[%s742] ss:$4 sm:$0xff] %v658
        %946 = vst [vmem:[%s744] ss:$4 sm:$0xff] %v659
        %947 = vst [vmem:[%s746] ss:$4 sm:$0xff] %v660
        %v948 = vld.sshfl [vmem:[#allocation1] sm:$0xff pattern:$0x73625140]
        %v949 = vld.sshfl [vmem:[#allocation1 + $0x20] sm:$0xff pattern:$0x73625140]
        %950 = vst [vmem:[#allocation1] ss:$4 sm:$0xff] %v661
        %951 = vst [vmem:[%s734] ss:$4 sm:$0xff] %v662
        %952 = vst [vmem:[%s736] ss:$4 sm:$0xff] %v663
        %953 = vst [vmem:[%s738] ss:$4 sm:$0xff] %v664
        %954 = vst [vmem:[%s740] ss:$4 sm:$0xff] %v665
        %955 = vst [vmem:[%s742] ss:$4 sm:$0xff] %v666
        %956 = vst [vmem:[%s744] ss:$4 sm:$0xff] %v667
        %957 = vst [vmem:[%s746] ss:$4 sm:$0xff] %v668
        %v958 = vld.sshfl [vmem:[#allocation1] sm:$0xff pattern:$0x73625140]
        %v959 = vld.sshfl [vmem:[#allocation1 + $0x20] sm:$0xff pattern:$0x73625140]
        %960 = vst [vmem:[#allocation1] ss:$4 sm:$0xff] %v669
        %961 = vst [vmem:[%s734] ss:$4 sm:$0xff] %v670
        %962 = vst [vmem:[%s736] ss:$4 sm:$0xff] %v671
        %963 = vst [vmem:[%s738] ss:$4 sm:$0xff] %v672
        %964 = vst [vmem:[%s740] ss:$4 sm:$0xff] %v673
        %965 = vst [vmem:[%s742] ss:$4 sm:$0xff] %v674
        %966 = vst [vmem:[%s744] ss:$4 sm:$0xff] %v675
        %967 = vst [vmem:[%s746] ss:$4 sm:$0xff] %v676
        %v968 = vld.sshfl [vmem:[#allocation1] sm:$0xff pattern:$0x73625140]
        %v969 = vld.sshfl [vmem:[#allocation1 + $0x20] sm:$0xff pattern:$0x73625140]
        %970 = vst [vmem:[#allocation1] ss:$4 sm:$0xff] %v677
        %971 = vst [vmem:[%s734] ss:$4 sm:$0xff] %v678
        %972 = vst [vmem:[%s736] ss:$4 sm:$0xff] %v679
        %973 = vst [vmem:[%s738] ss:$4 sm:$0xff] %v680
        %974 = vst [vmem:[%s740] ss:$4 sm:$0xff] %v681
        %975 = vst [vmem:[%s742] ss:$4 sm:$0xff] %v682
        %976 = vst [vmem:[%s744] ss:$4 sm:$0xff] %v683
        %977 = vst [vmem:[%s746] ss:$4 sm:$0xff] %v684
        %v978 = vld.sshfl [vmem:[#allocation1] sm:$0xff pattern:$0x73625140]
        %v979 = vld.sshfl [vmem:[#allocation1 + $0x20] sm:$0xff pattern:$0x73625140]
        %980 = vst [vmem:[#allocation1] ss:$4 sm:$0xff] %v669
        %981 = vst [vmem:[%s734] ss:$4 sm:$0xff] %v670
        %982 = vst [vmem:[%s736] ss:$4 sm:$0xff] %v671
        %983 = vst [vmem:[%s738] ss:$4 sm:$0xff] %v672
        %984 = vst [vmem:[%s740] ss:$4 sm:$0xff] %v673
        %985 = vst [vmem:[%s742] ss:$4 sm:$0xff] %v674
        %986 = vst [vmem:[%s744] ss:$4 sm:$0xff] %v675
        %987 = vst [vmem:[%s746] ss:$4 sm:$0xff] %v676
        %v988 = vld.sshfl [vmem:[#allocation1] sm:$0xff pattern:$0x73625140]
        %v989 = vld.sshfl [vmem:[#allocation1 + $0x20] sm:$0xff pattern:$0x73625140]
        %990 = vst [vmem:[#allocation1] ss:$4 sm:$0xff] %v677
        %991 = vst [vmem:[%s734] ss:$4 sm:$0xff] %v678
        %992 = vst [vmem:[%s736] ss:$4 sm:$0xff] %v679
        %993 = vst [vmem:[%s738] ss:$4 sm:$0xff] %v680
        %994 = vst [vmem:[%s740] ss:$4 sm:$0xff] %v681
        %995 = vst [vmem:[%s742] ss:$4 sm:$0xff] %v682
        %996 = vst [vmem:[%s744] ss:$4 sm:$0xff] %v683
        %997 = vst [vmem:[%s746] ss:$4 sm:$0xff] %v684
        %v998 = vld.sshfl [vmem:[#allocation1] sm:$0xff pattern:$0x73625140]
        %v999 = vld.sshfl [vmem:[#allocation1 + $0x20] sm:$0xff pattern:$0x73625140]
        %1000 = vst [vmem:[#allocation1] ss:$4 sm:$0xff] %v685
        %1001 = vst [vmem:[%s734] ss:$4 sm:$0xff] %v686
        %1002 = vst [vmem:[%s736] ss:$4 sm:$0xff] %v687
        %1003 = vst [vmem:[%s738] ss:$4 sm:$0xff] %v688
        %1004 = vst [vmem:[%s740] ss:$4 sm:$0xff] %v689
        %1005 = vst [vmem:[%s742] ss:$4 sm:$0xff] %v690
        %1006 = vst [vmem:[%s744] ss:$4 sm:$0xff] %v691
        %1007 = vst [vmem:[%s746] ss:$4 sm:$0xff] %v692
        %v1008 = vld.sshfl [vmem:[#allocation1] sm:$0xff pattern:$0x73625140]
        %v1009 = vld.sshfl [vmem:[#allocation1 + $0x20] sm:$0xff pattern:$0x73625140]
        %1010 = vst [vmem:[#allocation1] ss:$4 sm:$0xff] %v693
        %1011 = vst [vmem:[%s734] ss:$4 sm:$0xff] %v694
        %1012 = vst [vmem:[%s736] ss:$4 sm:$0xff] %v695
        %1013 = vst [vmem:[%s738] ss:$4 sm:$0xff] %v696
        %1014 = vst [vmem:[%s740] ss:$4 sm:$0xff] %v697
        %1015 = vst [vmem:[%s742] ss:$4 sm:$0xff] %v698
        %1016 = vst [vmem:[%s744] ss:$4 sm:$0xff] %v699
        %1017 = vst [vmem:[%s746] ss:$4 sm:$0xff] %v700
        %v1018 = vld.sshfl [vmem:[#allocation1] sm:$0xff pattern:$0x73625140]
        %v1019 = vld.sshfl [vmem:[#allocation1 + $0x20] sm:$0xff pattern:$0x73625140]
        %1020 = vst [vmem:[#allocation1] ss:$4 sm:$0xff] %v685
        %1021 = vst [vmem:[%s734] ss:$4 sm:$0xff] %v686
        %1022 = vst [vmem:[%s736] ss:$4 sm:$0xff] %v687
        %1023 = vst [vmem:[%s738] ss:$4 sm:$0xff] %v688
        %1024 = vst [vmem:[%s740] ss:$4 sm:$0xff] %v689
        %1025 = vst [vmem:[%s742] ss:$4 sm:$0xff] %v690
        %1026 = vst [vmem:[%s744] ss:$4 sm:$0xff] %v691
        %1027 = vst [vmem:[%s746] ss:$4 sm:$0xff] %v692
        %v1028 = vld.sshfl [vmem:[#allocation1] sm:$0xff pattern:$0x73625140]
        %v1029 = vld.sshfl [vmem:[#allocation1 + $0x20] sm:$0xff pattern:$0x73625140]
        %1030 = vst [vmem:[#allocation1] ss:$4 sm:$0xff] %v693
        %1031 = vst [vmem:[%s734] ss:$4 sm:$0xff] %v694
        %1032 = vst [vmem:[%s736] ss:$4 sm:$0xff] %v695
        %1033 = vst [vmem:[%s738] ss:$4 sm:$0xff] %v696
        %1034 = vst [vmem:[%s740] ss:$4 sm:$0xff] %v697
        %1035 = vst [vmem:[%s742] ss:$4 sm:$0xff] %v698
        %1036 = vst [vmem:[%s744] ss:$4 sm:$0xff] %v699
        %1037 = vst [vmem:[%s746] ss:$4 sm:$0xff] %v700
        %v1038 = vld.sshfl [vmem:[#allocation1] sm:$0xff pattern:$0x73625140]
        %v1039 = vld.sshfl [vmem:[#allocation1 + $0x20] sm:$0xff pattern:$0x73625140]
        %1040 = vst [vmem:[#allocation1] ss:$4 sm:$0xff] %v701
        %1041 = vst [vmem:[%s734] ss:$4 sm:$0xff] %v702
        %1042 = vst [vmem:[%s736] ss:$4 sm:$0xff] %v703
        %1043 = vst [vmem:[%s738] ss:$4 sm:$0xff] %v704
        %1044 = vst [vmem:[%s740] ss:$4 sm:$0xff] %v705
        %1045 = vst [vmem:[%s742] ss:$4 sm:$0xff] %v706
        %1046 = vst [vmem:[%s744] ss:$4 sm:$0xff] %v707
        %1047 = vst [vmem:[%s746] ss:$4 sm:$0xff] %v708
        %v1048 = vld.sshfl [vmem:[#allocation1] sm:$0xff pattern:$0x73625140]
        %v1049 = vld.sshfl [vmem:[#allocation1 + $0x20] sm:$0xff pattern:$0x73625140]
        %1050 = vst [vmem:[#allocation1] ss:$4 sm:$0xff] %v709
        %1051 = vst [vmem:[%s734] ss:$4 sm:$0xff] %v710
        %1052 = vst [vmem:[%s736] ss:$4 sm:$0xff] %v711
        %1053 = vst [vmem:[%s738] ss:$4 sm:$0xff] %v712
        %1054 = vst [vmem:[%s740] ss:$4 sm:$0xff] %v713
        %1055 = vst [vmem:[%s742] ss:$4 sm:$0xff] %v714
        %1056 = vst [vmem:[%s744] ss:$4 sm:$0xff] %v715
        %1057 = vst [vmem:[%s746] ss:$4 sm:$0xff] %v716
        %v1058 = vld.sshfl [vmem:[#allocation1] sm:$0xff pattern:$0x73625140]
        %v1059 = vld.sshfl [vmem:[#allocation1 + $0x20] sm:$0xff pattern:$0x73625140]
        %1060 = vst [vmem:[#allocation1] ss:$4 sm:$0xff] %v701
        %1061 = vst [vmem:[%s734] ss:$4 sm:$0xff] %v702
        %1062 = vst [vmem:[%s736] ss:$4 sm:$0xff] %v703
        %1063 = vst [vmem:[%s738] ss:$4 sm:$0xff] %v704
        %1064 = vst [vmem:[%s740] ss:$4 sm:$0xff] %v705
        %1065 = vst [vmem:[%s742] ss:$4 sm:$0xff] %v706
        %1066 = vst [vmem:[%s744] ss:$4 sm:$0xff] %v707
        %1067 = vst [vmem:[%s746] ss:$4 sm:$0xff] %v708
        %v1068 = vld.sshfl [vmem:[#allocation1] sm:$0xff pattern:$0x73625140]
        %v1069 = vld.sshfl [vmem:[#allocation1 + $0x20] sm:$0xff pattern:$0x73625140]
        %1070 = vst [vmem:[#allocation1] ss:$4 sm:$0xff] %v709
        %1071 = vst [vmem:[%s734] ss:$4 sm:$0xff] %v710
        %1072 = vst [vmem:[%s736] ss:$4 sm:$0xff] %v711
        %1073 = vst [vmem:[%s738] ss:$4 sm:$0xff] %v712
        %1074 = vst [vmem:[%s740] ss:$4 sm:$0xff] %v713
        %1075 = vst [vmem:[%s742] ss:$4 sm:$0xff] %v714
        %1076 = vst [vmem:[%s744] ss:$4 sm:$0xff] %v715
        %1077 = vst [vmem:[%s746] ss:$4 sm:$0xff] %v716
        %v1078 = vld.sshfl [vmem:[#allocation1] sm:$0xff pattern:$0x73625140]
        %v1079 = vld.sshfl [vmem:[#allocation1 + $0x20] sm:$0xff pattern:$0x73625140]
        %1080 = vst [vmem:[#allocation1] ss:$4 sm:$0xff] %v717
        %1081 = vst [vmem:[%s734] ss:$4 sm:$0xff] %v718
        %1082 = vst [vmem:[%s736] ss:$4 sm:$0xff] %v719
        %1083 = vst [vmem:[%s738] ss:$4 sm:$0xff] %v720
        %1084 = vst [vmem:[%s740] ss:$4 sm:$0xff] %v721
        %1085 = vst [vmem:[%s742] ss:$4 sm:$0xff] %v722
        %1086 = vst [vmem:[%s744] ss:$4 sm:$0xff] %v723
        %1087 = vst [vmem:[%s746] ss:$4 sm:$0xff] %v724
        %v1088 = vld.sshfl [vmem:[#allocation1] sm:$0xff pattern:$0x73625140]
        %v1089 = vld.sshfl [vmem:[#allocation1 + $0x20] sm:$0xff pattern:$0x73625140]
        %1090 = vst [vmem:[#allocation1] ss:$4 sm:$0xff] %v725
        %1091 = vst [vmem:[%s734] ss:$4 sm:$0xff] %v726
        %1092 = vst [vmem:[%s736] ss:$4 sm:$0xff] %v727
        %1093 = vst [vmem:[%s738] ss:$4 sm:$0xff] %v728
        %1094 = vst [vmem:[%s740] ss:$4 sm:$0xff] %v729
        %1095 = vst [vmem:[%s742] ss:$4 sm:$0xff] %v730
        %1096 = vst [vmem:[%s744] ss:$4 sm:$0xff] %v731
        %1097 = vst [vmem:[%s746] ss:$4 sm:$0xff] %v732
        %v1098 = vld.sshfl [vmem:[#allocation1] sm:$0xff pattern:$0x73625140]
        %v1099 = vld.sshfl [vmem:[#allocation1 + $0x20] sm:$0xff pattern:$0x73625140]
        %vm1100 = vcmask 1040384
        %v1101 = vrot.slane %v748, 7
        %v1102 = vrot.slane %v749, 7
        %v1103 = vsel %vm1100, %v1101, %v1102
        %v1104 = vrot.slane %v758, 7
        %v1105 = vsel %vm1100, %v1102, %v1104
        %v1106 = vrot.slane %v759, 7
        %v1107 = vsel %vm1100, %v1104, %v1106
        %v1108 = vrot.slane %v768, 7
        %v1109 = vrot.slane %v769, 7
        %v1110 = vsel %vm1100, %v1108, %v1109
        %v1111 = vrot.slane %v778, 7
        %v1112 = vsel %vm1100, %v1109, %v1111
        %v1113 = vrot.slane %v779, 7
        %v1114 = vsel %vm1100, %v1111, %v1113
        %v1115 = vrot.slane %v788, 7
        %v1116 = vrot.slane %v789, 7
        %v1117 = vsel %vm1100, %v1115, %v1116
        %v1118 = vrot.slane %v798, 7
        %v1119 = vsel %vm1100, %v1116, %v1118
        %v1120 = vrot.slane %v799, 7
        %v1121 = vsel %vm1100, %v1118, %v1120
        %v1122 = vrot.slane %v808, 7
        %v1123 = vrot.slane %v809, 7
        %v1124 = vsel %vm1100, %v1122, %v1123
        %v1125 = vrot.slane %v818, 7
        %v1126 = vsel %vm1100, %v1123, %v1125
        %v1127 = vrot.slane %v819, 7
        %v1128 = vsel %vm1100, %v1125, %v1127
        %v1129 = vrot.slane %v828, 7
        %v1130 = vrot.slane %v829, 7
        %v1131 = vsel %vm1100, %v1129, %v1130
        %v1132 = vrot.slane %v838, 7
        %v1133 = vsel %vm1100, %v1130, %v1132
        %v1134 = vrot.slane %v839, 7
        %v1135 = vsel %vm1100, %v1132, %v1134
        %v1136 = vrot.slane %v848, 7
        %v1137 = vrot.slane %v849, 7
        %v1138 = vsel %vm1100, %v1136, %v1137
        %v1139 = vrot.slane %v858, 7
        %v1140 = vsel %vm1100, %v1137, %v1139
        %v1141 = vrot.slane %v859, 7
        %v1142 = vsel %vm1100, %v1139, %v1141
        %v1143 = vrot.slane %v868, 7
        %v1144 = vrot.slane %v869, 7
        %v1145 = vsel %vm1100, %v1143, %v1144
        %v1146 = vrot.slane %v878, 7
        %v1147 = vsel %vm1100, %v1144, %v1146
        %v1148 = vrot.slane %v879, 7
        %v1149 = vsel %vm1100, %v1146, %v1148
        %v1150 = vrot.slane %v888, 7
        %v1151 = vrot.slane %v889, 7
        %v1152 = vsel %vm1100, %v1150, %v1151
        %v1153 = vrot.slane %v898, 7
        %v1154 = vsel %vm1100, %v1151, %v1153
        %v1155 = vrot.slane %v899, 7
        %v1156 = vsel %vm1100, %v1153, %v1155
        %v1157 = vrot.slane %v908, 7
        %v1158 = vrot.slane %v909, 7
        %v1159 = vsel %vm1100, %v1157, %v1158
        %v1160 = vrot.slane %v918, 7
        %v1161 = vsel %vm1100, %v1158, %v1160
        %v1162 = vrot.slane %v919, 7
        %v1163 = vsel %vm1100, %v1160, %v1162
        %v1164 = vrot.slane %v928, 7
        %v1165 = vrot.slane %v929, 7
        %v1166 = vsel %vm1100, %v1164, %v1165
        %v1167 = vrot.slane %v938, 7
        %v1168 = vsel %vm1100, %v1165, %v1167
        %v1169 = vrot.slane %v939, 7
        %v1170 = vsel %vm1100, %v1167, %v1169
        %v1171 = vrot.slane %v948, 7
        %v1172 = vrot.slane %v949, 7
        %v1173 = vsel %vm1100, %v1171, %v1172
        %v1174 = vrot.slane %v958, 7
        %v1175 = vsel %vm1100, %v1172, %v1174
        %v1176 = vrot.slane %v959, 7
        %v1177 = vsel %vm1100, %v1174, %v1176
        %v1178 = vrot.slane %v968, 7
        %v1179 = vrot.slane %v969, 7
        %v1180 = vsel %vm1100, %v1178, %v1179
        %v1181 = vrot.slane %v978, 7
        %v1182 = vsel %vm1100, %v1179, %v1181
        %v1183 = vrot.slane %v979, 7
        %v1184 = vsel %vm1100, %v1181, %v1183
        %v1185 = vrot.slane %v988, 7
        %v1186 = vrot.slane %v989, 7
        %v1187 = vsel %vm1100, %v1185, %v1186
        %v1188 = vrot.slane %v998, 7
        %v1189 = vsel %vm1100, %v1186, %v1188
        %v1190 = vrot.slane %v999, 7
        %v1191 = vsel %vm1100, %v1188, %v1190
        %v1192 = vrot.slane %v1008, 7
        %v1193 = vrot.slane %v1009, 7
        %v1194 = vsel %vm1100, %v1192, %v1193
        %v1195 = vrot.slane %v1018, 7
        %v1196 = vsel %vm1100, %v1193, %v1195
        %v1197 = vrot.slane %v1019, 7
        %v1198 = vsel %vm1100, %v1195, %v1197
        %v1199 = vrot.slane %v1028, 7
        %v1200 = vrot.slane %v1029, 7
        %v1201 = vsel %vm1100, %v1199, %v1200
        %v1202 = vrot.slane %v1038, 7
        %v1203 = vsel %vm1100, %v1200, %v1202
        %v1204 = vrot.slane %v1039, 7
        %v1205 = vsel %vm1100, %v1202, %v1204
        %v1206 = vrot.slane %v1048, 7
        %v1207 = vrot.slane %v1049, 7
        %v1208 = vsel %vm1100, %v1206, %v1207
        %v1209 = vrot.slane %v1058, 7
        %v1210 = vsel %vm1100, %v1207, %v1209
        %v1211 = vrot.slane %v1059, 7
        %v1212 = vsel %vm1100, %v1209, %v1211
        %v1213 = vrot.slane %v1068, 7
        %v1214 = vrot.slane %v1069, 7
        %v1215 = vsel %vm1100, %v1213, %v1214
        %v1216 = vrot.slane %v1078, 7
        %v1217 = vsel %vm1100, %v1214, %v1216
        %v1218 = vrot.slane %v1079, 7
        %v1219 = vsel %vm1100, %v1216, %v1218
        %v1220 = vrot.slane %v1088, 7
        %v1221 = vrot.slane %v1089, 7
        %v1222 = vsel %vm1100, %v1220, %v1221
        %v1223 = vrot.slane %v1098, 7
        %v1224 = vsel %vm1100, %v1221, %v1223
        %v1225 = vrot.slane %v1099, 7
        %v1226 = vsel %vm1100, %v1223, %v1225
        %v1245 = vsel %vm1100, 0.0, %v1101
        %v1246 = vsel %vm1100, 0.0, %v1108
        %v1247 = vsel %vm1100, 0.0, %v1115
        %v1248 = vsel %vm1100, 0.0, %v1122
        %v1249 = vsel %vm1100, 0.0, %v1129
        %v1250 = vsel %vm1100, 0.0, %v1136
        %v1251 = vsel %vm1100, 0.0, %v1143
        %v1252 = vsel %vm1100, 0.0, %v1150
        %v1253 = vsel %vm1100, 0.0, %v1157
        %v1254 = vsel %vm1100, 0.0, %v1164
        %v1255 = vsel %vm1100, 0.0, %v1171
        %v1256 = vsel %vm1100, 0.0, %v1178
        %v1257 = vsel %vm1100, 0.0, %v1185
        %v1258 = vsel %vm1100, 0.0, %v1192
        %v1259 = vsel %vm1100, 0.0, %v1199
        %v1260 = vsel %vm1100, 0.0, %v1206
        %v1261 = vsel %vm1100, 0.0, %v1213
        %v1262 = vsel %vm1100, 0.0, %v1220
        %1263 = vst [vmem:[#allocation1] ss:$4 sm:$0xff] %v573
        %s1264 = scalar_lea.vmem [#allocation1], 1
        %1265 = vst [vmem:[%s1264] ss:$4 sm:$0xff] %v574
        %s1266 = scalar_lea.vmem [#allocation1], 2
        %1267 = vst [vmem:[%s1266] ss:$4 sm:$0xff] %v575
        %s1268 = scalar_lea.vmem [#allocation1], 3
        %1269 = vst [vmem:[%s1268] ss:$4 sm:$0xff] %v576
        %s1270 = scalar_lea.vmem [#allocation1], 32
        %1271 = vst [vmem:[%s1270] ss:$4 sm:$0xff] %v577
        %s1272 = scalar_lea.vmem [#allocation1], 33
        %1273 = vst [vmem:[%s1272] ss:$4 sm:$0xff] %v578
        %s1274 = scalar_lea.vmem [#allocation1], 34
        %1275 = vst [vmem:[%s1274] ss:$4 sm:$0xff] %v579
        %s1276 = scalar_lea.vmem [#allocation1], 35
        %1277 = vst [vmem:[%s1276] ss:$4 sm:$0xff] %v580
        %v1278 = vld.sshfl [vmem:[#allocation1] sm:$0xff pattern:$0x73625140]
        %v1279 = vld.sshfl [vmem:[#allocation1 + $0x20] sm:$0xff pattern:$0x73625140]
        %1280 = vst [vmem:[#allocation1] ss:$4 sm:$0xff] %v581
        %1281 = vst [vmem:[%s1264] ss:$4 sm:$0xff] %v582
        %1282 = vst [vmem:[%s1266] ss:$4 sm:$0xff] %v583
        %1283 = vst [vmem:[%s1268] ss:$4 sm:$0xff] %v584
        %1284 = vst [vmem:[%s1270] ss:$4 sm:$0xff] %v585
        %1285 = vst [vmem:[%s1272] ss:$4 sm:$0xff] %v586
        %1286 = vst [vmem:[%s1274] ss:$4 sm:$0xff] %v587
        %1287 = vst [vmem:[%s1276] ss:$4 sm:$0xff] %v588
        %v1288 = vld.sshfl [vmem:[#allocation1] sm:$0xff pattern:$0x73625140]
        %v1289 = vld.sshfl [vmem:[#allocation1 + $0x20] sm:$0xff pattern:$0x73625140]
        %1290 = vst [vmem:[#allocation1] ss:$4 sm:$0xff] %v589
        %1291 = vst [vmem:[%s1264] ss:$4 sm:$0xff] %v590
        %1292 = vst [vmem:[%s1266] ss:$4 sm:$0xff] %v591
        %1293 = vst [vmem:[%s1268] ss:$4 sm:$0xff] %v592
        %1294 = vst [vmem:[%s1270] ss:$4 sm:$0xff] %v593
        %1295 = vst [vmem:[%s1272] ss:$4 sm:$0xff] %v594
        %1296 = vst [vmem:[%s1274] ss:$4 sm:$0xff] %v595
        %1297 = vst [vmem:[%s1276] ss:$4 sm:$0xff] %v596
        %v1298 = vld.sshfl [vmem:[#allocation1] sm:$0xff pattern:$0x73625140]
        %v1299 = vld.sshfl [vmem:[#allocation1 + $0x20] sm:$0xff pattern:$0x73625140]
        %1300 = vst [vmem:[#allocation1] ss:$4 sm:$0xff] %v597
        %1301 = vst [vmem:[%s1264] ss:$4 sm:$0xff] %v598
        %1302 = vst [vmem:[%s1266] ss:$4 sm:$0xff] %v599
        %1303 = vst [vmem:[%s1268] ss:$4 sm:$0xff] %v600
        %1304 = vst [vmem:[%s1270] ss:$4 sm:$0xff] %v601
        %1305 = vst [vmem:[%s1272] ss:$4 sm:$0xff] %v602
        %1306 = vst [vmem:[%s1274] ss:$4 sm:$0xff] %v603
        %1307 = vst [vmem:[%s1276] ss:$4 sm:$0xff] %v604
        %v1308 = vld.sshfl [vmem:[#allocation1] sm:$0xff pattern:$0x73625140]
        %v1309 = vld.sshfl [vmem:[#allocation1 + $0x20] sm:$0xff pattern:$0x73625140]
        %1310 = vst [vmem:[#allocation1] ss:$4 sm:$0xff] %v589
        %1311 = vst [vmem:[%s1264] ss:$4 sm:$0xff] %v590
        %1312 = vst [vmem:[%s1266] ss:$4 sm:$0xff] %v591
        %1313 = vst [vmem:[%s1268] ss:$4 sm:$0xff] %v592
        %1314 = vst [vmem:[%s1270] ss:$4 sm:$0xff] %v593
        %1315 = vst [vmem:[%s1272] ss:$4 sm:$0xff] %v594
        %1316 = vst [vmem:[%s1274] ss:$4 sm:$0xff] %v595
        %1317 = vst [vmem:[%s1276] ss:$4 sm:$0xff] %v596
        %v1318 = vld.sshfl [vmem:[#allocation1] sm:$0xff pattern:$0x73625140]
        %v1319 = vld.sshfl [vmem:[#allocation1 + $0x20] sm:$0xff pattern:$0x73625140]
        %1320 = vst [vmem:[#allocation1] ss:$4 sm:$0xff] %v597
        %1321 = vst [vmem:[%s1264] ss:$4 sm:$0xff] %v598
        %1322 = vst [vmem:[%s1266] ss:$4 sm:$0xff] %v599
        %1323 = vst [vmem:[%s1268] ss:$4 sm:$0xff] %v600
        %1324 = vst [vmem:[%s1270] ss:$4 sm:$0xff] %v601
        %1325 = vst [vmem:[%s1272] ss:$4 sm:$0xff] %v602
        %1326 = vst [vmem:[%s1274] ss:$4 sm:$0xff] %v603
        %1327 = vst [vmem:[%s1276] ss:$4 sm:$0xff] %v604
        %v1328 = vld.sshfl [vmem:[#allocation1] sm:$0xff pattern:$0x73625140]
        %v1329 = vld.sshfl [vmem:[#allocation1 + $0x20] sm:$0xff pattern:$0x73625140]
        %1330 = vst [vmem:[#allocation1] ss:$4 sm:$0xff] %v605
        %1331 = vst [vmem:[%s1264] ss:$4 sm:$0xff] %v606
        %1332 = vst [vmem:[%s1266] ss:$4 sm:$0xff] %v607
        %1333 = vst [vmem:[%s1268] ss:$4 sm:$0xff] %v608
        %1334 = vst [vmem:[%s1270] ss:$4 sm:$0xff] %v609
        %1335 = vst [vmem:[%s1272] ss:$4 sm:$0xff] %v610
        %1336 = vst [vmem:[%s1274] ss:$4 sm:$0xff] %v611
        %1337 = vst [vmem:[%s1276] ss:$4 sm:$0xff] %v612
        %v1338 = vld.sshfl [vmem:[#allocation1] sm:$0xff pattern:$0x73625140]
        %v1339 = vld.sshfl [vmem:[#allocation1 + $0x20] sm:$0xff pattern:$0x73625140]
        %1340 = vst [vmem:[#allocation1] ss:$4 sm:$0xff] %v613
        %1341 = vst [vmem:[%s1264] ss:$4 sm:$0xff] %v614
        %1342 = vst [vmem:[%s1266] ss:$4 sm:$0xff] %v615
        %1343 = vst [vmem:[%s1268] ss:$4 sm:$0xff] %v616
        %1344 = vst [vmem:[%s1270] ss:$4 sm:$0xff] %v617
        %1345 = vst [vmem:[%s1272] ss:$4 sm:$0xff] %v618
        %1346 = vst [vmem:[%s1274] ss:$4 sm:$0xff] %v619
        %1347 = vst [vmem:[%s1276] ss:$4 sm:$0xff] %v620
        %v1348 = vld.sshfl [vmem:[#allocation1] sm:$0xff pattern:$0x73625140]
        %v1349 = vld.sshfl [vmem:[#allocation1 + $0x20] sm:$0xff pattern:$0x73625140]
        %1350 = vst [vmem:[#allocation1] ss:$4 sm:$0xff] %v605
        %1351 = vst [vmem:[%s1264] ss:$4 sm:$0xff] %v606
        %1352 = vst [vmem:[%s1266] ss:$4 sm:$0xff] %v607
        %1353 = vst [vmem:[%s1268] ss:$4 sm:$0xff] %v608
        %1354 = vst [vmem:[%s1270] ss:$4 sm:$0xff] %v609
        %1355 = vst [vmem:[%s1272] ss:$4 sm:$0xff] %v610
        %1356 = vst [vmem:[%s1274] ss:$4 sm:$0xff] %v611
        %1357 = vst [vmem:[%s1276] ss:$4 sm:$0xff] %v612
        %v1358 = vld.sshfl [vmem:[#allocation1] sm:$0xff pattern:$0x73625140]
        %v1359 = vld.sshfl [vmem:[#allocation1 + $0x20] sm:$0xff pattern:$0x73625140]
        %1360 = vst [vmem:[#allocation1] ss:$4 sm:$0xff] %v613
        %1361 = vst [vmem:[%s1264] ss:$4 sm:$0xff] %v614
        %1362 = vst [vmem:[%s1266] ss:$4 sm:$0xff] %v615
        %1363 = vst [vmem:[%s1268] ss:$4 sm:$0xff] %v616
        %1364 = vst [vmem:[%s1270] ss:$4 sm:$0xff] %v617
        %1365 = vst [vmem:[%s1272] ss:$4 sm:$0xff] %v618
        %1366 = vst [vmem:[%s1274] ss:$4 sm:$0xff] %v619
        %1367 = vst [vmem:[%s1276] ss:$4 sm:$0xff] %v620
        %v1368 = vld.sshfl [vmem:[#allocation1] sm:$0xff pattern:$0x73625140]
        %v1369 = vld.sshfl [vmem:[#allocation1 + $0x20] sm:$0xff pattern:$0x73625140]
        %1370 = vst [vmem:[#allocation1] ss:$4 sm:$0xff] %v621
        %1371 = vst [vmem:[%s1264] ss:$4 sm:$0xff] %v622
        %1372 = vst [vmem:[%s1266] ss:$4 sm:$0xff] %v623
        %1373 = vst [vmem:[%s1268] ss:$4 sm:$0xff] %v624
        %1374 = vst [vmem:[%s1270] ss:$4 sm:$0xff] %v625
        %1375 = vst [vmem:[%s1272] ss:$4 sm:$0xff] %v626
        %1376 = vst [vmem:[%s1274] ss:$4 sm:$0xff] %v627
        %1377 = vst [vmem:[%s1276] ss:$4 sm:$0xff] %v628
        %v1378 = vld.sshfl [vmem:[#allocation1] sm:$0xff pattern:$0x73625140]
        %v1379 = vld.sshfl [vmem:[#allocation1 + $0x20] sm:$0xff pattern:$0x73625140]
        %1380 = vst [vmem:[#allocation1] ss:$4 sm:$0xff] %v629
        %1381 = vst [vmem:[%s1264] ss:$4 sm:$0xff] %v630
        %1382 = vst [vmem:[%s1266] ss:$4 sm:$0xff] %v631
        %1383 = vst [vmem:[%s1268] ss:$4 sm:$0xff] %v632
        %1384 = vst [vmem:[%s1270] ss:$4 sm:$0xff] %v633
        %1385 = vst [vmem:[%s1272] ss:$4 sm:$0xff] %v634
        %1386 = vst [vmem:[%s1274] ss:$4 sm:$0xff] %v635
        %1387 = vst [vmem:[%s1276] ss:$4 sm:$0xff] %v636
        %v1388 = vld.sshfl [vmem:[#allocation1] sm:$0xff pattern:$0x73625140]
        %v1389 = vld.sshfl [vmem:[#allocation1 + $0x20] sm:$0xff pattern:$0x73625140]
        %1390 = vst [vmem:[#allocation1] ss:$4 sm:$0xff] %v621
        %1391 = vst [vmem:[%s1264] ss:$4 sm:$0xff] %v622
        %1392 = vst [vmem:[%s1266] ss:$4 sm:$0xff] %v623
        %1393 = vst [vmem:[%s1268] ss:$4 sm:$0xff] %v624
        %1394 = vst [vmem:[%s1270] ss:$4 sm:$0xff] %v625
        %1395 = vst [vmem:[%s1272] ss:$4 sm:$0xff] %v626
        %1396 = vst [vmem:[%s1274] ss:$4 sm:$0xff] %v627
        %1397 = vst [vmem:[%s1276] ss:$4 sm:$0xff] %v628
        %v1398 = vld.sshfl [vmem:[#allocation1] sm:$0xff pattern:$0x73625140]
        %v1399 = vld.sshfl [vmem:[#allocation1 + $0x20] sm:$0xff pattern:$0x73625140]
        %1400 = vst [vmem:[#allocation1] ss:$4 sm:$0xff] %v629
        %1401 = vst [vmem:[%s1264] ss:$4 sm:$0xff] %v630
        %1402 = vst [vmem:[%s1266] ss:$4 sm:$0xff] %v631
        %1403 = vst [vmem:[%s1268] ss:$4 sm:$0xff] %v632
        %1404 = vst [vmem:[%s1270] ss:$4 sm:$0xff] %v633
        %1405 = vst [vmem:[%s1272] ss:$4 sm:$0xff] %v634
        %1406 = vst [vmem:[%s1274] ss:$4 sm:$0xff] %v635
        %1407 = vst [vmem:[%s1276] ss:$4 sm:$0xff] %v636
        %v1408 = vld.sshfl [vmem:[#allocation1] sm:$0xff pattern:$0x73625140]
        %v1409 = vld.sshfl [vmem:[#allocation1 + $0x20] sm:$0xff pattern:$0x73625140]
        %1410 = vst [vmem:[#allocation1] ss:$4 sm:$0xff] %v637
        %1411 = vst [vmem:[%s1264] ss:$4 sm:$0xff] %v638
        %1412 = vst [vmem:[%s1266] ss:$4 sm:$0xff] %v639
        %1413 = vst [vmem:[%s1268] ss:$4 sm:$0xff] %v640
        %1414 = vst [vmem:[%s1270] ss:$4 sm:$0xff] %v641
        %1415 = vst [vmem:[%s1272] ss:$4 sm:$0xff] %v642
        %1416 = vst [vmem:[%s1274] ss:$4 sm:$0xff] %v643
        %1417 = vst [vmem:[%s1276] ss:$4 sm:$0xff] %v644
        %v1418 = vld.sshfl [vmem:[#allocation1] sm:$0xff pattern:$0x73625140]
        %v1419 = vld.sshfl [vmem:[#allocation1 + $0x20] sm:$0xff pattern:$0x73625140]
        %1420 = vst [vmem:[#allocation1] ss:$4 sm:$0xff] %v645
        %1421 = vst [vmem:[%s1264] ss:$4 sm:$0xff] %v646
        %1422 = vst [vmem:[%s1266] ss:$4 sm:$0xff] %v647
        %1423 = vst [vmem:[%s1268] ss:$4 sm:$0xff] %v648
        %1424 = vst [vmem:[%s1270] ss:$4 sm:$0xff] %v649
        %1425 = vst [vmem:[%s1272] ss:$4 sm:$0xff] %v650
        %1426 = vst [vmem:[%s1274] ss:$4 sm:$0xff] %v651
        %1427 = vst [vmem:[%s1276] ss:$4 sm:$0xff] %v652
        %v1428 = vld.sshfl [vmem:[#allocation1] sm:$0xff pattern:$0x73625140]
        %v1429 = vld.sshfl [vmem:[#allocation1 + $0x20] sm:$0xff pattern:$0x73625140]
        %1430 = vst [vmem:[#allocation1] ss:$4 sm:$0xff] %v637
        %1431 = vst [vmem:[%s1264] ss:$4 sm:$0xff] %v638
        %1432 = vst [vmem:[%s1266] ss:$4 sm:$0xff] %v639
        %1433 = vst [vmem:[%s1268] ss:$4 sm:$0xff] %v640
        %1434 = vst [vmem:[%s1270] ss:$4 sm:$0xff] %v641
        %1435 = vst [vmem:[%s1272] ss:$4 sm:$0xff] %v642
        %1436 = vst [vmem:[%s1274] ss:$4 sm:$0xff] %v643
        %1437 = vst [vmem:[%s1276] ss:$4 sm:$0xff] %v644
        %v1438 = vld.sshfl [vmem:[#allocation1] sm:$0xff pattern:$0x73625140]
        %v1439 = vld.sshfl [vmem:[#allocation1 + $0x20] sm:$0xff pattern:$0x73625140]
        %1440 = vst [vmem:[#allocation1] ss:$4 sm:$0xff] %v645
        %1441 = vst [vmem:[%s1264] ss:$4 sm:$0xff] %v646
        %1442 = vst [vmem:[%s1266] ss:$4 sm:$0xff] %v647
        %1443 = vst [vmem:[%s1268] ss:$4 sm:$0xff] %v648
        %1444 = vst [vmem:[%s1270] ss:$4 sm:$0xff] %v649
        %1445 = vst [vmem:[%s1272] ss:$4 sm:$0xff] %v650
        %1446 = vst [vmem:[%s1274] ss:$4 sm:$0xff] %v651
        %1447 = vst [vmem:[%s1276] ss:$4 sm:$0xff] %v652
        %v1448 = vld.sshfl [vmem:[#allocation1] sm:$0xff pattern:$0x73625140]
        %v1449 = vld.sshfl [vmem:[#allocation1 + $0x20] sm:$0xff pattern:$0x73625140]
        %1450 = vst [vmem:[#allocation1] ss:$4 sm:$0xff] %v653
        %1451 = vst [vmem:[%s1264] ss:$4 sm:$0xff] %v654
        %1452 = vst [vmem:[%s1266] ss:$4 sm:$0xff] %v655
        %1453 = vst [vmem:[%s1268] ss:$4 sm:$0xff] %v656
        %1454 = vst [vmem:[%s1270] ss:$4 sm:$0xff] %v657
        %1455 = vst [vmem:[%s1272] ss:$4 sm:$0xff] %v658
        %1456 = vst [vmem:[%s1274] ss:$4 sm:$0xff] %v659
        %1457 = vst [vmem:[%s1276] ss:$4 sm:$0xff] %v660
        %v1458 = vld.sshfl [vmem:[#allocation1] sm:$0xff pattern:$0x73625140]
        %v1459 = vld.sshfl [vmem:[#allocation1 + $0x20] sm:$0xff pattern:$0x73625140]
        %1460 = vst [vmem:[#allocation1] ss:$4 sm:$0xff] %v661
        %1461 = vst [vmem:[%s1264] ss:$4 sm:$0xff] %v662
        %1462 = vst [vmem:[%s1266] ss:$4 sm:$0xff] %v663
        %1463 = vst [vmem:[%s1268] ss:$4 sm:$0xff] %v664
        %1464 = vst [vmem:[%s1270] ss:$4 sm:$0xff] %v665
        %1465 = vst [vmem:[%s1272] ss:$4 sm:$0xff] %v666
        %1466 = vst [vmem:[%s1274] ss:$4 sm:$0xff] %v667
        %1467 = vst [vmem:[%s1276] ss:$4 sm:$0xff] %v668
        %v1468 = vld.sshfl [vmem:[#allocation1] sm:$0xff pattern:$0x73625140]
        %v1469 = vld.sshfl [vmem:[#allocation1 + $0x20] sm:$0xff pattern:$0x73625140]
        %1470 = vst [vmem:[#allocation1] ss:$4 sm:$0xff] %v653
        %1471 = vst [vmem:[%s1264] ss:$4 sm:$0xff] %v654
        %1472 = vst [vmem:[%s1266] ss:$4 sm:$0xff] %v655
        %1473 = vst [vmem:[%s1268] ss:$4 sm:$0xff] %v656
        %1474 = vst [vmem:[%s1270] ss:$4 sm:$0xff] %v657
        %1475 = vst [vmem:[%s1272] ss:$4 sm:$0xff] %v658
        %1476 = vst [vmem:[%s1274] ss:$4 sm:$0xff] %v659
        %1477 = vst [vmem:[%s1276] ss:$4 sm:$0xff] %v660
        %v1478 = vld.sshfl [vmem:[#allocation1] sm:$0xff pattern:$0x73625140]
        %v1479 = vld.sshfl [vmem:[#allocation1 + $0x20] sm:$0xff pattern:$0x73625140]
        %1480 = vst [vmem:[#allocation1] ss:$4 sm:$0xff] %v661
        %1481 = vst [vmem:[%s1264] ss:$4 sm:$0xff] %v662
        %1482 = vst [vmem:[%s1266] ss:$4 sm:$0xff] %v663
        %1483 = vst [vmem:[%s1268] ss:$4 sm:$0xff] %v664
        %1484 = vst [vmem:[%s1270] ss:$4 sm:$0xff] %v665
        %1485 = vst [vmem:[%s1272] ss:$4 sm:$0xff] %v666
        %1486 = vst [vmem:[%s1274] ss:$4 sm:$0xff] %v667
        %1487 = vst [vmem:[%s1276] ss:$4 sm:$0xff] %v668
        %v1488 = vld.sshfl [vmem:[#allocation1] sm:$0xff pattern:$0x73625140]
        %v1489 = vld.sshfl [vmem:[#allocation1 + $0x20] sm:$0xff pattern:$0x73625140]
        %1490 = vst [vmem:[#allocation1] ss:$4 sm:$0xff] %v669
        %1491 = vst [vmem:[%s1264] ss:$4 sm:$0xff] %v670
        %1492 = vst [vmem:[%s1266] ss:$4 sm:$0xff] %v671
        %1493 = vst [vmem:[%s1268] ss:$4 sm:$0xff] %v672
        %1494 = vst [vmem:[%s1270] ss:$4 sm:$0xff] %v673
        %1495 = vst [vmem:[%s1272] ss:$4 sm:$0xff] %v674
        %1496 = vst [vmem:[%s1274] ss:$4 sm:$0xff] %v675
        %1497 = vst [vmem:[%s1276] ss:$4 sm:$0xff] %v676
        %v1498 = vld.sshfl [vmem:[#allocation1] sm:$0xff pattern:$0x73625140]
        %v1499 = vld.sshfl [vmem:[#allocation1 + $0x20] sm:$0xff pattern:$0x73625140]
        %1500 = vst [vmem:[#allocation1] ss:$4 sm:$0xff] %v677
        %1501 = vst [vmem:[%s1264] ss:$4 sm:$0xff] %v678
        %1502 = vst [vmem:[%s1266] ss:$4 sm:$0xff] %v679
        %1503 = vst [vmem:[%s1268] ss:$4 sm:$0xff] %v680
        %1504 = vst [vmem:[%s1270] ss:$4 sm:$0xff] %v681
        %1505 = vst [vmem:[%s1272] ss:$4 sm:$0xff] %v682
        %1506 = vst [vmem:[%s1274] ss:$4 sm:$0xff] %v683
        %1507 = vst [vmem:[%s1276] ss:$4 sm:$0xff] %v684
        %v1508 = vld.sshfl [vmem:[#allocation1] sm:$0xff pattern:$0x73625140]
        %v1509 = vld.sshfl [vmem:[#allocation1 + $0x20] sm:$0xff pattern:$0x73625140]
        %1510 = vst [vmem:[#allocation1] ss:$4 sm:$0xff] %v669
        %1511 = vst [vmem:[%s1264] ss:$4 sm:$0xff] %v670
        %1512 = vst [vmem:[%s1266] ss:$4 sm:$0xff] %v671
        %1513 = vst [vmem:[%s1268] ss:$4 sm:$0xff] %v672
        %1514 = vst [vmem:[%s1270] ss:$4 sm:$0xff] %v673
        %1515 = vst [vmem:[%s1272] ss:$4 sm:$0xff] %v674
        %1516 = vst [vmem:[%s1274] ss:$4 sm:$0xff] %v675
        %1517 = vst [vmem:[%s1276] ss:$4 sm:$0xff] %v676
        %v1518 = vld.sshfl [vmem:[#allocation1] sm:$0xff pattern:$0x73625140]
        %v1519 = vld.sshfl [vmem:[#allocation1 + $0x20] sm:$0xff pattern:$0x73625140]
        %1520 = vst [vmem:[#allocation1] ss:$4 sm:$0xff] %v677
        %1521 = vst [vmem:[%s1264] ss:$4 sm:$0xff] %v678
        %1522 = vst [vmem:[%s1266] ss:$4 sm:$0xff] %v679
        %1523 = vst [vmem:[%s1268] ss:$4 sm:$0xff] %v680
        %1524 = vst [vmem:[%s1270] ss:$4 sm:$0xff] %v681
        %1525 = vst [vmem:[%s1272] ss:$4 sm:$0xff] %v682
        %1526 = vst [vmem:[%s1274] ss:$4 sm:$0xff] %v683
        %1527 = vst [vmem:[%s1276] ss:$4 sm:$0xff] %v684
        %v1528 = vld.sshfl [vmem:[#allocation1] sm:$0xff pattern:$0x73625140]
        %v1529 = vld.sshfl [vmem:[#allocation1 + $0x20] sm:$0xff pattern:$0x73625140]
        %1530 = vst [vmem:[#allocation1] ss:$4 sm:$0xff] %v685
        %1531 = vst [vmem:[%s1264] ss:$4 sm:$0xff] %v686
        %1532 = vst [vmem:[%s1266] ss:$4 sm:$0xff] %v687
        %1533 = vst [vmem:[%s1268] ss:$4 sm:$0xff] %v688
        %1534 = vst [vmem:[%s1270] ss:$4 sm:$0xff] %v689
        %1535 = vst [vmem:[%s1272] ss:$4 sm:$0xff] %v690
        %1536 = vst [vmem:[%s1274] ss:$4 sm:$0xff] %v691
        %1537 = vst [vmem:[%s1276] ss:$4 sm:$0xff] %v692
        %v1538 = vld.sshfl [vmem:[#allocation1] sm:$0xff pattern:$0x73625140]
        %v1539 = vld.sshfl [vmem:[#allocation1 + $0x20] sm:$0xff pattern:$0x73625140]
        %1540 = vst [vmem:[#allocation1] ss:$4 sm:$0xff] %v693
        %1541 = vst [vmem:[%s1264] ss:$4 sm:$0xff] %v694
        %1542 = vst [vmem:[%s1266] ss:$4 sm:$0xff] %v695
        %1543 = vst [vmem:[%s1268] ss:$4 sm:$0xff] %v696
        %1544 = vst [vmem:[%s1270] ss:$4 sm:$0xff] %v697
        %1545 = vst [vmem:[%s1272] ss:$4 sm:$0xff] %v698
        %1546 = vst [vmem:[%s1274] ss:$4 sm:$0xff] %v699
        %1547 = vst [vmem:[%s1276] ss:$4 sm:$0xff] %v700
        %v1548 = vld.sshfl [vmem:[#allocation1] sm:$0xff pattern:$0x73625140]
        %v1549 = vld.sshfl [vmem:[#allocation1 + $0x20] sm:$0xff pattern:$0x73625140]
        %1550 = vst [vmem:[#allocation1] ss:$4 sm:$0xff] %v685
        %1551 = vst [vmem:[%s1264] ss:$4 sm:$0xff] %v686
        %1552 = vst [vmem:[%s1266] ss:$4 sm:$0xff] %v687
        %1553 = vst [vmem:[%s1268] ss:$4 sm:$0xff] %v688
        %1554 = vst [vmem:[%s1270] ss:$4 sm:$0xff] %v689
        %1555 = vst [vmem:[%s1272] ss:$4 sm:$0xff] %v690
        %1556 = vst [vmem:[%s1274] ss:$4 sm:$0xff] %v691
        %1557 = vst [vmem:[%s1276] ss:$4 sm:$0xff] %v692
        %v1558 = vld.sshfl [vmem:[#allocation1] sm:$0xff pattern:$0x73625140]
        %v1559 = vld.sshfl [vmem:[#allocation1 + $0x20] sm:$0xff pattern:$0x73625140]
        %1560 = vst [vmem:[#allocation1] ss:$4 sm:$0xff] %v693
        %1561 = vst [vmem:[%s1264] ss:$4 sm:$0xff] %v694
        %1562 = vst [vmem:[%s1266] ss:$4 sm:$0xff] %v695
        %1563 = vst [vmem:[%s1268] ss:$4 sm:$0xff] %v696
        %1564 = vst [vmem:[%s1270] ss:$4 sm:$0xff] %v697
        %1565 = vst [vmem:[%s1272] ss:$4 sm:$0xff] %v698
        %1566 = vst [vmem:[%s1274] ss:$4 sm:$0xff] %v699
        %1567 = vst [vmem:[%s1276] ss:$4 sm:$0xff] %v700
        %v1568 = vld.sshfl [vmem:[#allocation1] sm:$0xff pattern:$0x73625140]
        %v1569 = vld.sshfl [vmem:[#allocation1 + $0x20] sm:$0xff pattern:$0x73625140]
        %1570 = vst [vmem:[#allocation1] ss:$4 sm:$0xff] %v701
        %1571 = vst [vmem:[%s1264] ss:$4 sm:$0xff] %v702
        %1572 = vst [vmem:[%s1266] ss:$4 sm:$0xff] %v703
        %1573 = vst [vmem:[%s1268] ss:$4 sm:$0xff] %v704
        %1574 = vst [vmem:[%s1270] ss:$4 sm:$0xff] %v705
        %1575 = vst [vmem:[%s1272] ss:$4 sm:$0xff] %v706
        %1576 = vst [vmem:[%s1274] ss:$4 sm:$0xff] %v707
        %1577 = vst [vmem:[%s1276] ss:$4 sm:$0xff] %v708
        %v1578 = vld.sshfl [vmem:[#allocation1] sm:$0xff pattern:$0x73625140]
        %v1579 = vld.sshfl [vmem:[#allocation1 + $0x20] sm:$0xff pattern:$0x73625140]
        %1580 = vst [vmem:[#allocation1] ss:$4 sm:$0xff] %v709
        %1581 = vst [vmem:[%s1264] ss:$4 sm:$0xff] %v710
        %1582 = vst [vmem:[%s1266] ss:$4 sm:$0xff] %v711
        %1583 = vst [vmem:[%s1268] ss:$4 sm:$0xff] %v712
        %1584 = vst [vmem:[%s1270] ss:$4 sm:$0xff] %v713
        %1585 = vst [vmem:[%s1272] ss:$4 sm:$0xff] %v714
        %1586 = vst [vmem:[%s1274] ss:$4 sm:$0xff] %v715
        %1587 = vst [vmem:[%s1276] ss:$4 sm:$0xff] %v716
        %v1588 = vld.sshfl [vmem:[#allocation1] sm:$0xff pattern:$0x73625140]
        %v1589 = vld.sshfl [vmem:[#allocation1 + $0x20] sm:$0xff pattern:$0x73625140]
        %1590 = vst [vmem:[#allocation1] ss:$4 sm:$0xff] %v701
        %1591 = vst [vmem:[%s1264] ss:$4 sm:$0xff] %v702
        %1592 = vst [vmem:[%s1266] ss:$4 sm:$0xff] %v703
        %1593 = vst [vmem:[%s1268] ss:$4 sm:$0xff] %v704
        %1594 = vst [vmem:[%s1270] ss:$4 sm:$0xff] %v705
        %1595 = vst [vmem:[%s1272] ss:$4 sm:$0xff] %v706
        %1596 = vst [vmem:[%s1274] ss:$4 sm:$0xff] %v707
        %1597 = vst [vmem:[%s1276] ss:$4 sm:$0xff] %v708
        %v1598 = vld.sshfl [vmem:[#allocation1] sm:$0xff pattern:$0x73625140]
        %v1599 = vld.sshfl [vmem:[#allocation1 + $0x20] sm:$0xff pattern:$0x73625140]
        %1600 = vst [vmem:[#allocation1] ss:$4 sm:$0xff] %v709
        %1601 = vst [vmem:[%s1264] ss:$4 sm:$0xff] %v710
        %1602 = vst [vmem:[%s1266] ss:$4 sm:$0xff] %v711
        %1603 = vst [vmem:[%s1268] ss:$4 sm:$0xff] %v712
        %1604 = vst [vmem:[%s1270] ss:$4 sm:$0xff] %v713
        %1605 = vst [vmem:[%s1272] ss:$4 sm:$0xff] %v714
        %1606 = vst [vmem:[%s1274] ss:$4 sm:$0xff] %v715
        %1607 = vst [vmem:[%s1276] ss:$4 sm:$0xff] %v716
        %v1608 = vld.sshfl [vmem:[#allocation1] sm:$0xff pattern:$0x73625140]
        %v1609 = vld.sshfl [vmem:[#allocation1 + $0x20] sm:$0xff pattern:$0x73625140]
        %1610 = vst [vmem:[#allocation1] ss:$4 sm:$0xff] %v717
        %1611 = vst [vmem:[%s1264] ss:$4 sm:$0xff] %v718
        %1612 = vst [vmem:[%s1266] ss:$4 sm:$0xff] %v719
        %1613 = vst [vmem:[%s1268] ss:$4 sm:$0xff] %v720
        %1614 = vst [vmem:[%s1270] ss:$4 sm:$0xff] %v721
        %1615 = vst [vmem:[%s1272] ss:$4 sm:$0xff] %v722
        %1616 = vst [vmem:[%s1274] ss:$4 sm:$0xff] %v723
        %1617 = vst [vmem:[%s1276] ss:$4 sm:$0xff] %v724
        %v1618 = vld.sshfl [vmem:[#allocation1] sm:$0xff pattern:$0x73625140]
        %v1619 = vld.sshfl [vmem:[#allocation1 + $0x20] sm:$0xff pattern:$0x73625140]
        %1620 = vst [vmem:[#allocation1] ss:$4 sm:$0xff] %v725
        %1621 = vst [vmem:[%s1264] ss:$4 sm:$0xff] %v726
        %1622 = vst [vmem:[%s1266] ss:$4 sm:$0xff] %v727
        %1623 = vst [vmem:[%s1268] ss:$4 sm:$0xff] %v728
        %1624 = vst [vmem:[%s1270] ss:$4 sm:$0xff] %v729
        %1625 = vst [vmem:[%s1272] ss:$4 sm:$0xff] %v730
        %1626 = vst [vmem:[%s1274] ss:$4 sm:$0xff] %v731
        %1627 = vst [vmem:[%s1276] ss:$4 sm:$0xff] %v732
        %v1628 = vld.sshfl [vmem:[#allocation1] sm:$0xff pattern:$0x73625140]
        %v1629 = vld.sshfl [vmem:[#allocation1 + $0x20] sm:$0xff pattern:$0x73625140]
        %vm1630 = vcmask 1046528
        %v1631 = vrot.slane %v1278, 1
        %v1632 = vrot.slane %v1279, 1
        %v1633 = vsel %vm1630, %v1631, %v1632
        %v1634 = vrot.slane %v1288, 1
        %v1635 = vsel %vm1630, %v1632, %v1634
        %v1636 = vrot.slane %v1289, 1
        %v1637 = vsel %vm1630, %v1634, %v1636
        %v1638 = vrot.slane %v1298, 1
        %v1639 = vrot.slane %v1299, 1
        %v1640 = vsel %vm1630, %v1638, %v1639
        %v1641 = vrot.slane %v1308, 1
        %v1642 = vsel %vm1630, %v1639, %v1641
        %v1643 = vrot.slane %v1309, 1
        %v1644 = vsel %vm1630, %v1641, %v1643
        %v1645 = vrot.slane %v1318, 1
        %v1646 = vrot.slane %v1319, 1
        %v1647 = vsel %vm1630, %v1645, %v1646
        %v1648 = vrot.slane %v1328, 1
        %v1649 = vsel %vm1630, %v1646, %v1648
        %v1650 = vrot.slane %v1329, 1
        %v1651 = vsel %vm1630, %v1648, %v1650
        %v1652 = vrot.slane %v1338, 1
        %v1653 = vrot.slane %v1339, 1
        %v1654 = vsel %vm1630, %v1652, %v1653
        %v1655 = vrot.slane %v1348, 1
        %v1656 = vsel %vm1630, %v1653, %v1655
        %v1657 = vrot.slane %v1349, 1
        %v1658 = vsel %vm1630, %v1655, %v1657
        %v1659 = vrot.slane %v1358, 1
        %v1660 = vrot.slane %v1359, 1
        %v1661 = vsel %vm1630, %v1659, %v1660
        %v1662 = vrot.slane %v1368, 1
        %v1663 = vsel %vm1630, %v1660, %v1662
        %v1664 = vrot.slane %v1369, 1
        %v1665 = vsel %vm1630, %v1662, %v1664
        %v1666 = vrot.slane %v1378, 1
        %v1667 = vrot.slane %v1379, 1
        %v1668 = vsel %vm1630, %v1666, %v1667
        %v1669 = vrot.slane %v1388, 1
        %v1670 = vsel %vm1630, %v1667, %v1669
        %v1671 = vrot.slane %v1389, 1
        %v1672 = vsel %vm1630, %v1669, %v1671
        %v1673 = vrot.slane %v1398, 1
        %v1674 = vrot.slane %v1399, 1
        %v1675 = vsel %vm1630, %v1673, %v1674
        %v1676 = vrot.slane %v1408, 1
        %v1677 = vsel %vm1630, %v1674, %v1676
        %v1678 = vrot.slane %v1409, 1
        %v1679 = vsel %vm1630, %v1676, %v1678
        %v1680 = vrot.slane %v1418, 1
        %v1681 = vrot.slane %v1419, 1
        %v1682 = vsel %vm1630, %v1680, %v1681
        %v1683 = vrot.slane %v1428, 1
        %v1684 = vsel %vm1630, %v1681, %v1683
        %v1685 = vrot.slane %v1429, 1
        %v1686 = vsel %vm1630, %v1683, %v1685
        %v1687 = vrot.slane %v1438, 1
        %v1688 = vrot.slane %v1439, 1
        %v1689 = vsel %vm1630, %v1687, %v1688
        %v1690 = vrot.slane %v1448, 1
        %v1691 = vsel %vm1630, %v1688, %v1690
        %v1692 = vrot.slane %v1449, 1
        %v1693 = vsel %vm1630, %v1690, %v1692
        %v1694 = vrot.slane %v1458, 1
        %v1695 = vrot.slane %v1459, 1
        %v1696 = vsel %vm1630, %v1694, %v1695
        %v1697 = vrot.slane %v1468, 1
        %v1698 = vsel %vm1630, %v1695, %v1697
        %v1699 = vrot.slane %v1469, 1
        %v1700 = vsel %vm1630, %v1697, %v1699
        %v1701 = vrot.slane %v1478, 1
        %v1702 = vrot.slane %v1479, 1
        %v1703 = vsel %vm1630, %v1701, %v1702
        %v1704 = vrot.slane %v1488, 1
        %v1705 = vsel %vm1630, %v1702, %v1704
        %v1706 = vrot.slane %v1489, 1
        %v1707 = vsel %vm1630, %v1704, %v1706
        %v1708 = vrot.slane %v1498, 1
        %v1709 = vrot.slane %v1499, 1
        %v1710 = vsel %vm1630, %v1708, %v1709
        %v1711 = vrot.slane %v1508, 1
        %v1712 = vsel %vm1630, %v1709, %v1711
        %v1713 = vrot.slane %v1509, 1
        %v1714 = vsel %vm1630, %v1711, %v1713
        %v1715 = vrot.slane %v1518, 1
        %v1716 = vrot.slane %v1519, 1
        %v1717 = vsel %vm1630, %v1715, %v1716
        %v1718 = vrot.slane %v1528, 1
        %v1719 = vsel %vm1630, %v1716, %v1718
        %v1720 = vrot.slane %v1529, 1
        %v1721 = vsel %vm1630, %v1718, %v1720
        %v1722 = vrot.slane %v1538, 1
        %v1723 = vrot.slane %v1539, 1
        %v1724 = vsel %vm1630, %v1722, %v1723
        %v1725 = vrot.slane %v1548, 1
        %v1726 = vsel %vm1630, %v1723, %v1725
        %v1727 = vrot.slane %v1549, 1
        %v1728 = vsel %vm1630, %v1725, %v1727
        %v1729 = vrot.slane %v1558, 1
        %v1730 = vrot.slane %v1559, 1
        %v1731 = vsel %vm1630, %v1729, %v1730
        %v1732 = vrot.slane %v1568, 1
        %v1733 = vsel %vm1630, %v1730, %v1732
        %v1734 = vrot.slane %v1569, 1
        %v1735 = vsel %vm1630, %v1732, %v1734
        %v1736 = vrot.slane %v1578, 1
        %v1737 = vrot.slane %v1579, 1
        %v1738 = vsel %vm1630, %v1736, %v1737
        %v1739 = vrot.slane %v1588, 1
        %v1740 = vsel %vm1630, %v1737, %v1739
        %v1741 = vrot.slane %v1589, 1
        %v1742 = vsel %vm1630, %v1739, %v1741
        %v1743 = vrot.slane %v1598, 1
        %v1744 = vrot.slane %v1599, 1
        %v1745 = vsel %vm1630, %v1743, %v1744
        %v1746 = vrot.slane %v1608, 1
        %v1747 = vsel %vm1630, %v1744, %v1746
        %v1748 = vrot.slane %v1609, 1
        %v1749 = vsel %vm1630, %v1746, %v1748
        %v1750 = vrot.slane %v1618, 1
        %v1751 = vrot.slane %v1619, 1
        %v1752 = vsel %vm1630, %v1750, %v1751
        %v1753 = vrot.slane %v1628, 1
        %v1754 = vsel %vm1630, %v1751, %v1753
        %v1755 = vrot.slane %v1629, 1
        %v1756 = vsel %vm1630, %v1753, %v1755
        %v1775 = vsel %vm1630, %v1636, 0.0
        %v1776 = vsel %vm1630, %v1643, 0.0
        %v1777 = vsel %vm1630, %v1650, 0.0
        %v1778 = vsel %vm1630, %v1657, 0.0
        %v1779 = vsel %vm1630, %v1664, 0.0
        %v1780 = vsel %vm1630, %v1671, 0.0
        %v1781 = vsel %vm1630, %v1678, 0.0
        %v1782 = vsel %vm1630, %v1685, 0.0
        %v1783 = vsel %vm1630, %v1692, 0.0
        %v1784 = vsel %vm1630, %v1699, 0.0
        %v1785 = vsel %vm1630, %v1706, 0.0
        %v1786 = vsel %vm1630, %v1713, 0.0
        %v1787 = vsel %vm1630, %v1720, 0.0
        %v1788 = vsel %vm1630, %v1727, 0.0
        %v1789 = vsel %vm1630, %v1734, 0.0
        %v1790 = vsel %vm1630, %v1741, 0.0
        %v1791 = vsel %vm1630, %v1748, 0.0
        %v1792 = vsel %vm1630, %v1755, 0.0
        %v1793 = vld [vmem:[%s3] sm:$0xff]
        %s1794 = scalar_lea.vmem %s3, 8
        %v1795 = vld [vmem:[%s1794] sm:$0xff]
        %1796 = vst [vmem:[#allocation1] ss:$4 sm:$0xff] %v573
        %s1797 = scalar_lea.vmem [#allocation1], 1
        %1798 = vst [vmem:[%s1797] ss:$4 sm:$0xff] %v574
        %s1799 = scalar_lea.vmem [#allocation1], 2
        %1800 = vst [vmem:[%s1799] ss:$4 sm:$0xff] %v575
        %s1801 = scalar_lea.vmem [#allocation1], 3
        %1802 = vst [vmem:[%s1801] ss:$4 sm:$0xff] %v576
        %s1803 = scalar_lea.vmem [#allocation1], 32
        %1804 = vst [vmem:[%s1803] ss:$4 sm:$0xff] %v577
        %s1805 = scalar_lea.vmem [#allocation1], 33
        %1806 = vst [vmem:[%s1805] ss:$4 sm:$0xff] %v578
        %s1807 = scalar_lea.vmem [#allocation1], 34
        %1808 = vst [vmem:[%s1807] ss:$4 sm:$0xff] %v579
        %s1809 = scalar_lea.vmem [#allocation1], 35
        %1810 = vst [vmem:[%s1809] ss:$4 sm:$0xff] %v580
        %v1811 = vld.sshfl [vmem:[#allocation1] sm:$0xff pattern:$0x73625140]
        %v1812 = vld.sshfl [vmem:[#allocation1 + $0x20] sm:$0xff pattern:$0x73625140]
        %1813 = vst [vmem:[#allocation1] ss:$4 sm:$0xff] %v581
        %1814 = vst [vmem:[%s1797] ss:$4 sm:$0xff] %v582
        %1815 = vst [vmem:[%s1799] ss:$4 sm:$0xff] %v583
        %1816 = vst [vmem:[%s1801] ss:$4 sm:$0xff] %v584
        %1817 = vst [vmem:[%s1803] ss:$4 sm:$0xff] %v585
        %1818 = vst [vmem:[%s1805] ss:$4 sm:$0xff] %v586
        %1819 = vst [vmem:[%s1807] ss:$4 sm:$0xff] %v587
        %1820 = vst [vmem:[%s1809] ss:$4 sm:$0xff] %v588
        %v1821 = vld.sshfl [vmem:[#allocation1] sm:$0xff pattern:$0x73625140]
        %v1822 = vld.sshfl [vmem:[#allocation1 + $0x20] sm:$0xff pattern:$0x73625140]
        %1823 = vst [vmem:[#allocation1] ss:$4 sm:$0xff] %v589
        %1824 = vst [vmem:[%s1797] ss:$4 sm:$0xff] %v590
        %1825 = vst [vmem:[%s1799] ss:$4 sm:$0xff] %v591
        %1826 = vst [vmem:[%s1801] ss:$4 sm:$0xff] %v592
        %1827 = vst [vmem:[%s1803] ss:$4 sm:$0xff] %v593
        %1828 = vst [vmem:[%s1805] ss:$4 sm:$0xff] %v594
        %1829 = vst [vmem:[%s1807] ss:$4 sm:$0xff] %v595
        %1830 = vst [vmem:[%s1809] ss:$4 sm:$0xff] %v596
        %v1831 = vld.sshfl [vmem:[#allocation1] sm:$0xff pattern:$0x73625140]
        %v1832 = vld.sshfl [vmem:[#allocation1 + $0x20] sm:$0xff pattern:$0x73625140]
        %1833 = vst [vmem:[#allocation1] ss:$4 sm:$0xff] %v597
        %1834 = vst [vmem:[%s1797] ss:$4 sm:$0xff] %v598
        %1835 = vst [vmem:[%s1799] ss:$4 sm:$0xff] %v599
        %1836 = vst [vmem:[%s1801] ss:$4 sm:$0xff] %v600
        %1837 = vst [vmem:[%s1803] ss:$4 sm:$0xff] %v601
        %1838 = vst [vmem:[%s1805] ss:$4 sm:$0xff] %v602
        %1839 = vst [vmem:[%s1807] ss:$4 sm:$0xff] %v603
        %1840 = vst [vmem:[%s1809] ss:$4 sm:$0xff] %v604
        %v1841 = vld.sshfl [vmem:[#allocation1] sm:$0xff pattern:$0x73625140]
        %v1842 = vld.sshfl [vmem:[#allocation1 + $0x20] sm:$0xff pattern:$0x73625140]
        %1843 = vst [vmem:[#allocation1] ss:$4 sm:$0xff] %v589
        %1844 = vst [vmem:[%s1797] ss:$4 sm:$0xff] %v590
        %1845 = vst [vmem:[%s1799] ss:$4 sm:$0xff] %v591
        %1846 = vst [vmem:[%s1801] ss:$4 sm:$0xff] %v592
        %1847 = vst [vmem:[%s1803] ss:$4 sm:$0xff] %v593
        %1848 = vst [vmem:[%s1805] ss:$4 sm:$0xff] %v594
        %1849 = vst [vmem:[%s1807] ss:$4 sm:$0xff] %v595
        %1850 = vst [vmem:[%s1809] ss:$4 sm:$0xff] %v596
        %v1851 = vld.sshfl [vmem:[#allocation1] sm:$0xff pattern:$0x73625140]
        %v1852 = vld.sshfl [vmem:[#allocation1 + $0x20] sm:$0xff pattern:$0x73625140]
        %1853 = vst [vmem:[#allocation1] ss:$4 sm:$0xff] %v597
        %1854 = vst [vmem:[%s1797] ss:$4 sm:$0xff] %v598
        %1855 = vst [vmem:[%s1799] ss:$4 sm:$0xff] %v599
        %1856 = vst [vmem:[%s1801] ss:$4 sm:$0xff] %v600
        %1857 = vst [vmem:[%s1803] ss:$4 sm:$0xff] %v601
        %1858 = vst [vmem:[%s1805] ss:$4 sm:$0xff] %v602
        %1859 = vst [vmem:[%s1807] ss:$4 sm:$0xff] %v603
        %1860 = vst [vmem:[%s1809] ss:$4 sm:$0xff] %v604
        %v1861 = vld.sshfl [vmem:[#allocation1] sm:$0xff pattern:$0x73625140]
        %v1862 = vld.sshfl [vmem:[#allocation1 + $0x20] sm:$0xff pattern:$0x73625140]
        %1863 = vst [vmem:[#allocation1] ss:$4 sm:$0xff] %v605
        %1864 = vst [vmem:[%s1797] ss:$4 sm:$0xff] %v606
        %1865 = vst [vmem:[%s1799] ss:$4 sm:$0xff] %v607
        %1866 = vst [vmem:[%s1801] ss:$4 sm:$0xff] %v608
        %1867 = vst [vmem:[%s1803] ss:$4 sm:$0xff] %v609
        %1868 = vst [vmem:[%s1805] ss:$4 sm:$0xff] %v610
        %1869 = vst [vmem:[%s1807] ss:$4 sm:$0xff] %v611
        %1870 = vst [vmem:[%s1809] ss:$4 sm:$0xff] %v612
        %v1871 = vld.sshfl [vmem:[#allocation1] sm:$0xff pattern:$0x73625140]
        %v1872 = vld.sshfl [vmem:[#allocation1 + $0x20] sm:$0xff pattern:$0x73625140]
        %1873 = vst [vmem:[#allocation1] ss:$4 sm:$0xff] %v613
        %1874 = vst [vmem:[%s1797] ss:$4 sm:$0xff] %v614
        %1875 = vst [vmem:[%s1799] ss:$4 sm:$0xff] %v615
        %1876 = vst [vmem:[%s1801] ss:$4 sm:$0xff] %v616
        %1877 = vst [vmem:[%s1803] ss:$4 sm:$0xff] %v617
        %1878 = vst [vmem:[%s1805] ss:$4 sm:$0xff] %v618
        %1879 = vst [vmem:[%s1807] ss:$4 sm:$0xff] %v619
        %1880 = vst [vmem:[%s1809] ss:$4 sm:$0xff] %v620
        %v1881 = vld.sshfl [vmem:[#allocation1] sm:$0xff pattern:$0x73625140]
        %v1882 = vld.sshfl [vmem:[#allocation1 + $0x20] sm:$0xff pattern:$0x73625140]
        %1883 = vst [vmem:[#allocation1] ss:$4 sm:$0xff] %v605
        %1884 = vst [vmem:[%s1797] ss:$4 sm:$0xff] %v606
        %1885 = vst [vmem:[%s1799] ss:$4 sm:$0xff] %v607
        %1886 = vst [vmem:[%s1801] ss:$4 sm:$0xff] %v608
        %1887 = vst [vmem:[%s1803] ss:$4 sm:$0xff] %v609
        %1888 = vst [vmem:[%s1805] ss:$4 sm:$0xff] %v610
        %1889 = vst [vmem:[%s1807] ss:$4 sm:$0xff] %v611
        %1890 = vst [vmem:[%s1809] ss:$4 sm:$0xff] %v612
        %v1891 = vld.sshfl [vmem:[#allocation1] sm:$0xff pattern:$0x73625140]
        %v1892 = vld.sshfl [vmem:[#allocation1 + $0x20] sm:$0xff pattern:$0x73625140]
        %1893 = vst [vmem:[#allocation1] ss:$4 sm:$0xff] %v613
        %1894 = vst [vmem:[%s1797] ss:$4 sm:$0xff] %v614
        %1895 = vst [vmem:[%s1799] ss:$4 sm:$0xff] %v615
        %1896 = vst [vmem:[%s1801] ss:$4 sm:$0xff] %v616
        %1897 = vst [vmem:[%s1803] ss:$4 sm:$0xff] %v617
        %1898 = vst [vmem:[%s1805] ss:$4 sm:$0xff] %v618
        %1899 = vst [vmem:[%s1807] ss:$4 sm:$0xff] %v619
        %1900 = vst [vmem:[%s1809] ss:$4 sm:$0xff] %v620
        %v1901 = vld.sshfl [vmem:[#allocation1] sm:$0xff pattern:$0x73625140]
        %v1902 = vld.sshfl [vmem:[#allocation1 + $0x20] sm:$0xff pattern:$0x73625140]
        %1903 = vst [vmem:[#allocation1] ss:$4 sm:$0xff] %v621
        %1904 = vst [vmem:[%s1797] ss:$4 sm:$0xff] %v622
        %1905 = vst [vmem:[%s1799] ss:$4 sm:$0xff] %v623
        %1906 = vst [vmem:[%s1801] ss:$4 sm:$0xff] %v624
        %1907 = vst [vmem:[%s1803] ss:$4 sm:$0xff] %v625
        %1908 = vst [vmem:[%s1805] ss:$4 sm:$0xff] %v626
        %1909 = vst [vmem:[%s1807] ss:$4 sm:$0xff] %v627
        %1910 = vst [vmem:[%s1809] ss:$4 sm:$0xff] %v628
        %v1911 = vld.sshfl [vmem:[#allocation1] sm:$0xff pattern:$0x73625140]
        %v1912 = vld.sshfl [vmem:[#allocation1 + $0x20] sm:$0xff pattern:$0x73625140]
        %1913 = vst [vmem:[#allocation1] ss:$4 sm:$0xff] %v629
        %1914 = vst [vmem:[%s1797] ss:$4 sm:$0xff] %v630
        %1915 = vst [vmem:[%s1799] ss:$4 sm:$0xff] %v631
        %1916 = vst [vmem:[%s1801] ss:$4 sm:$0xff] %v632
        %1917 = vst [vmem:[%s1803] ss:$4 sm:$0xff] %v633
        %1918 = vst [vmem:[%s1805] ss:$4 sm:$0xff] %v634
        %1919 = vst [vmem:[%s1807] ss:$4 sm:$0xff] %v635
        %1920 = vst [vmem:[%s1809] ss:$4 sm:$0xff] %v636
        %v1921 = vld.sshfl [vmem:[#allocation1] sm:$0xff pattern:$0x73625140]
        %v1922 = vld.sshfl [vmem:[#allocation1 + $0x20] sm:$0xff pattern:$0x73625140]
        %1923 = vst [vmem:[#allocation1] ss:$4 sm:$0xff] %v621
        %1924 = vst [vmem:[%s1797] ss:$4 sm:$0xff] %v622
        %1925 = vst [vmem:[%s1799] ss:$4 sm:$0xff] %v623
        %1926 = vst [vmem:[%s1801] ss:$4 sm:$0xff] %v624
        %1927 = vst [vmem:[%s1803] ss:$4 sm:$0xff] %v625
        %1928 = vst [vmem:[%s1805] ss:$4 sm:$0xff] %v626
        %1929 = vst [vmem:[%s1807] ss:$4 sm:$0xff] %v627
        %1930 = vst [vmem:[%s1809] ss:$4 sm:$0xff] %v628
        %v1931 = vld.sshfl [vmem:[#allocation1] sm:$0xff pattern:$0x73625140]
        %v1932 = vld.sshfl [vmem:[#allocation1 + $0x20] sm:$0xff pattern:$0x73625140]
        %1933 = vst [vmem:[#allocation1] ss:$4 sm:$0xff] %v629
        %1934 = vst [vmem:[%s1797] ss:$4 sm:$0xff] %v630
        %1935 = vst [vmem:[%s1799] ss:$4 sm:$0xff] %v631
        %1936 = vst [vmem:[%s1801] ss:$4 sm:$0xff] %v632
        %1937 = vst [vmem:[%s1803] ss:$4 sm:$0xff] %v633
        %1938 = vst [vmem:[%s1805] ss:$4 sm:$0xff] %v634
        %1939 = vst [vmem:[%s1807] ss:$4 sm:$0xff] %v635
        %1940 = vst [vmem:[%s1809] ss:$4 sm:$0xff] %v636
        %v1941 = vld.sshfl [vmem:[#allocation1] sm:$0xff pattern:$0x73625140]
        %v1942 = vld.sshfl [vmem:[#allocation1 + $0x20] sm:$0xff pattern:$0x73625140]
        %1943 = vst [vmem:[#allocation1] ss:$4 sm:$0xff] %v637
        %1944 = vst [vmem:[%s1797] ss:$4 sm:$0xff] %v638
        %1945 = vst [vmem:[%s1799] ss:$4 sm:$0xff] %v639
        %1946 = vst [vmem:[%s1801] ss:$4 sm:$0xff] %v640
        %1947 = vst [vmem:[%s1803] ss:$4 sm:$0xff] %v641
        %1948 = vst [vmem:[%s1805] ss:$4 sm:$0xff] %v642
        %1949 = vst [vmem:[%s1807] ss:$4 sm:$0xff] %v643
        %1950 = vst [vmem:[%s1809] ss:$4 sm:$0xff] %v644
        %v1951 = vld.sshfl [vmem:[#allocation1] sm:$0xff pattern:$0x73625140]
        %v1952 = vld.sshfl [vmem:[#allocation1 + $0x20] sm:$0xff pattern:$0x73625140]
        %1953 = vst [vmem:[#allocation1] ss:$4 sm:$0xff] %v645
        %1954 = vst [vmem:[%s1797] ss:$4 sm:$0xff] %v646
        %1955 = vst [vmem:[%s1799] ss:$4 sm:$0xff] %v647
        %1956 = vst [vmem:[%s1801] ss:$4 sm:$0xff] %v648
        %1957 = vst [vmem:[%s1803] ss:$4 sm:$0xff] %v649
        %1958 = vst [vmem:[%s1805] ss:$4 sm:$0xff] %v650
        %1959 = vst [vmem:[%s1807] ss:$4 sm:$0xff] %v651
        %1960 = vst [vmem:[%s1809] ss:$4 sm:$0xff] %v652
        %v1961 = vld.sshfl [vmem:[#allocation1] sm:$0xff pattern:$0x73625140]
        %v1962 = vld.sshfl [vmem:[#allocation1 + $0x20] sm:$0xff pattern:$0x73625140]
        %1963 = vst [vmem:[#allocation1] ss:$4 sm:$0xff] %v637
        %1964 = vst [vmem:[%s1797] ss:$4 sm:$0xff] %v638
        %1965 = vst [vmem:[%s1799] ss:$4 sm:$0xff] %v639
        %1966 = vst [vmem:[%s1801] ss:$4 sm:$0xff] %v640
        %1967 = vst [vmem:[%s1803] ss:$4 sm:$0xff] %v641
        %1968 = vst [vmem:[%s1805] ss:$4 sm:$0xff] %v642
        %1969 = vst [vmem:[%s1807] ss:$4 sm:$0xff] %v643
        %1970 = vst [vmem:[%s1809] ss:$4 sm:$0xff] %v644
        %v1971 = vld.sshfl [vmem:[#allocation1] sm:$0xff pattern:$0x73625140]
        %v1972 = vld.sshfl [vmem:[#allocation1 + $0x20] sm:$0xff pattern:$0x73625140]
        %1973 = vst [vmem:[#allocation1] ss:$4 sm:$0xff] %v645
        %1974 = vst [vmem:[%s1797] ss:$4 sm:$0xff] %v646
        %1975 = vst [vmem:[%s1799] ss:$4 sm:$0xff] %v647
        %1976 = vst [vmem:[%s1801] ss:$4 sm:$0xff] %v648
        %1977 = vst [vmem:[%s1803] ss:$4 sm:$0xff] %v649
        %1978 = vst [vmem:[%s1805] ss:$4 sm:$0xff] %v650
        %1979 = vst [vmem:[%s1807] ss:$4 sm:$0xff] %v651
        %1980 = vst [vmem:[%s1809] ss:$4 sm:$0xff] %v652
        %v1981 = vld.sshfl [vmem:[#allocation1] sm:$0xff pattern:$0x73625140]
        %v1982 = vld.sshfl [vmem:[#allocation1 + $0x20] sm:$0xff pattern:$0x73625140]
        %1983 = vst [vmem:[#allocation1] ss:$4 sm:$0xff] %v653
        %1984 = vst [vmem:[%s1797] ss:$4 sm:$0xff] %v654
        %1985 = vst [vmem:[%s1799] ss:$4 sm:$0xff] %v655
        %1986 = vst [vmem:[%s1801] ss:$4 sm:$0xff] %v656
        %1987 = vst [vmem:[%s1803] ss:$4 sm:$0xff] %v657
        %1988 = vst [vmem:[%s1805] ss:$4 sm:$0xff] %v658
        %1989 = vst [vmem:[%s1807] ss:$4 sm:$0xff] %v659
        %1990 = vst [vmem:[%s1809] ss:$4 sm:$0xff] %v660
        %v1991 = vld.sshfl [vmem:[#allocation1] sm:$0xff pattern:$0x73625140]
        %v1992 = vld.sshfl [vmem:[#allocation1 + $0x20] sm:$0xff pattern:$0x73625140]
        %1993 = vst [vmem:[#allocation1] ss:$4 sm:$0xff] %v661
        %1994 = vst [vmem:[%s1797] ss:$4 sm:$0xff] %v662
        %1995 = vst [vmem:[%s1799] ss:$4 sm:$0xff] %v663
        %1996 = vst [vmem:[%s1801] ss:$4 sm:$0xff] %v664
        %1997 = vst [vmem:[%s1803] ss:$4 sm:$0xff] %v665
        %1998 = vst [vmem:[%s1805] ss:$4 sm:$0xff] %v666
        %1999 = vst [vmem:[%s1807] ss:$4 sm:$0xff] %v667
        %2000 = vst [vmem:[%s1809] ss:$4 sm:$0xff] %v668
        %v2001 = vld.sshfl [vmem:[#allocation1] sm:$0xff pattern:$0x73625140]
        %v2002 = vld.sshfl [vmem:[#allocation1 + $0x20] sm:$0xff pattern:$0x73625140]
        %2003 = vst [vmem:[#allocation1] ss:$4 sm:$0xff] %v653
        %2004 = vst [vmem:[%s1797] ss:$4 sm:$0xff] %v654
        %2005 = vst [vmem:[%s1799] ss:$4 sm:$0xff] %v655
        %2006 = vst [vmem:[%s1801] ss:$4 sm:$0xff] %v656
        %2007 = vst [vmem:[%s1803] ss:$4 sm:$0xff] %v657
        %2008 = vst [vmem:[%s1805] ss:$4 sm:$0xff] %v658
        %2009 = vst [vmem:[%s1807] ss:$4 sm:$0xff] %v659
        %2010 = vst [vmem:[%s1809] ss:$4 sm:$0xff] %v660
        %v2011 = vld.sshfl [vmem:[#allocation1] sm:$0xff pattern:$0x73625140]
        %v2012 = vld.sshfl [vmem:[#allocation1 + $0x20] sm:$0xff pattern:$0x73625140]
        %2013 = vst [vmem:[#allocation1] ss:$4 sm:$0xff] %v661
        %2014 = vst [vmem:[%s1797] ss:$4 sm:$0xff] %v662
        %2015 = vst [vmem:[%s1799] ss:$4 sm:$0xff] %v663
        %2016 = vst [vmem:[%s1801] ss:$4 sm:$0xff] %v664
        %2017 = vst [vmem:[%s1803] ss:$4 sm:$0xff] %v665
        %2018 = vst [vmem:[%s1805] ss:$4 sm:$0xff] %v666
        %2019 = vst [vmem:[%s1807] ss:$4 sm:$0xff] %v667
        %2020 = vst [vmem:[%s1809] ss:$4 sm:$0xff] %v668
        %v2021 = vld.sshfl [vmem:[#allocation1] sm:$0xff pattern:$0x73625140]
        %v2022 = vld.sshfl [vmem:[#allocation1 + $0x20] sm:$0xff pattern:$0x73625140]
        %2023 = vst [vmem:[#allocation1] ss:$4 sm:$0xff] %v669
        %2024 = vst [vmem:[%s1797] ss:$4 sm:$0xff] %v670
        %2025 = vst [vmem:[%s1799] ss:$4 sm:$0xff] %v671
        %2026 = vst [vmem:[%s1801] ss:$4 sm:$0xff] %v672
        %2027 = vst [vmem:[%s1803] ss:$4 sm:$0xff] %v673
        %2028 = vst [vmem:[%s1805] ss:$4 sm:$0xff] %v674
        %2029 = vst [vmem:[%s1807] ss:$4 sm:$0xff] %v675
        %2030 = vst [vmem:[%s1809] ss:$4 sm:$0xff] %v676
        %v2031 = vld.sshfl [vmem:[#allocation1] sm:$0xff pattern:$0x73625140]
        %v2032 = vld.sshfl [vmem:[#allocation1 + $0x20] sm:$0xff pattern:$0x73625140]
        %2033 = vst [vmem:[#allocation1] ss:$4 sm:$0xff] %v677
        %2034 = vst [vmem:[%s1797] ss:$4 sm:$0xff] %v678
        %2035 = vst [vmem:[%s1799] ss:$4 sm:$0xff] %v679
        %2036 = vst [vmem:[%s1801] ss:$4 sm:$0xff] %v680
        %2037 = vst [vmem:[%s1803] ss:$4 sm:$0xff] %v681
        %2038 = vst [vmem:[%s1805] ss:$4 sm:$0xff] %v682
        %2039 = vst [vmem:[%s1807] ss:$4 sm:$0xff] %v683
        %2040 = vst [vmem:[%s1809] ss:$4 sm:$0xff] %v684
        %v2041 = vld.sshfl [vmem:[#allocation1] sm:$0xff pattern:$0x73625140]
        %v2042 = vld.sshfl [vmem:[#allocation1 + $0x20] sm:$0xff pattern:$0x73625140]
        %2043 = vst [vmem:[#allocation1] ss:$4 sm:$0xff] %v669
        %2044 = vst [vmem:[%s1797] ss:$4 sm:$0xff] %v670
        %2045 = vst [vmem:[%s1799] ss:$4 sm:$0xff] %v671
        %2046 = vst [vmem:[%s1801] ss:$4 sm:$0xff] %v672
        %2047 = vst [vmem:[%s1803] ss:$4 sm:$0xff] %v673
        %2048 = vst [vmem:[%s1805] ss:$4 sm:$0xff] %v674
        %2049 = vst [vmem:[%s1807] ss:$4 sm:$0xff] %v675
        %2050 = vst [vmem:[%s1809] ss:$4 sm:$0xff] %v676
        %v2051 = vld.sshfl [vmem:[#allocation1] sm:$0xff pattern:$0x73625140]
        %v2052 = vld.sshfl [vmem:[#allocation1 + $0x20] sm:$0xff pattern:$0x73625140]
        %2053 = vst [vmem:[#allocation1] ss:$4 sm:$0xff] %v677
        %2054 = vst [vmem:[%s1797] ss:$4 sm:$0xff] %v678
        %2055 = vst [vmem:[%s1799] ss:$4 sm:$0xff] %v679
        %2056 = vst [vmem:[%s1801] ss:$4 sm:$0xff] %v680
        %2057 = vst [vmem:[%s1803] ss:$4 sm:$0xff] %v681
        %2058 = vst [vmem:[%s1805] ss:$4 sm:$0xff] %v682
        %2059 = vst [vmem:[%s1807] ss:$4 sm:$0xff] %v683
        %2060 = vst [vmem:[%s1809] ss:$4 sm:$0xff] %v684
        %v2061 = vld.sshfl [vmem:[#allocation1] sm:$0xff pattern:$0x73625140]
        %v2062 = vld.sshfl [vmem:[#allocation1 + $0x20] sm:$0xff pattern:$0x73625140]
        %2063 = vst [vmem:[#allocation1] ss:$4 sm:$0xff] %v685
        %2064 = vst [vmem:[%s1797] ss:$4 sm:$0xff] %v686
        %2065 = vst [vmem:[%s1799] ss:$4 sm:$0xff] %v687
        %2066 = vst [vmem:[%s1801] ss:$4 sm:$0xff] %v688
        %2067 = vst [vmem:[%s1803] ss:$4 sm:$0xff] %v689
        %2068 = vst [vmem:[%s1805] ss:$4 sm:$0xff] %v690
        %2069 = vst [vmem:[%s1807] ss:$4 sm:$0xff] %v691
        %2070 = vst [vmem:[%s1809] ss:$4 sm:$0xff] %v692
        %v2071 = vld.sshfl [vmem:[#allocation1] sm:$0xff pattern:$0x73625140]
        %v2072 = vld.sshfl [vmem:[#allocation1 + $0x20] sm:$0xff pattern:$0x73625140]
        %2073 = vst [vmem:[#allocation1] ss:$4 sm:$0xff] %v693
        %2074 = vst [vmem:[%s1797] ss:$4 sm:$0xff] %v694
        %2075 = vst [vmem:[%s1799] ss:$4 sm:$0xff] %v695
        %2076 = vst [vmem:[%s1801] ss:$4 sm:$0xff] %v696
        %2077 = vst [vmem:[%s1803] ss:$4 sm:$0xff] %v697
        %2078 = vst [vmem:[%s1805] ss:$4 sm:$0xff] %v698
        %2079 = vst [vmem:[%s1807] ss:$4 sm:$0xff] %v699
        %2080 = vst [vmem:[%s1809] ss:$4 sm:$0xff] %v700
        %v2081 = vld.sshfl [vmem:[#allocation1] sm:$0xff pattern:$0x73625140]
        %v2082 = vld.sshfl [vmem:[#allocation1 + $0x20] sm:$0xff pattern:$0x73625140]
        %2083 = vst [vmem:[#allocation1] ss:$4 sm:$0xff] %v685
        %2084 = vst [vmem:[%s1797] ss:$4 sm:$0xff] %v686
        %2085 = vst [vmem:[%s1799] ss:$4 sm:$0xff] %v687
        %2086 = vst [vmem:[%s1801] ss:$4 sm:$0xff] %v688
        %2087 = vst [vmem:[%s1803] ss:$4 sm:$0xff] %v689
        %2088 = vst [vmem:[%s1805] ss:$4 sm:$0xff] %v690
        %2089 = vst [vmem:[%s1807] ss:$4 sm:$0xff] %v691
        %2090 = vst [vmem:[%s1809] ss:$4 sm:$0xff] %v692
        %v2091 = vld.sshfl [vmem:[#allocation1] sm:$0xff pattern:$0x73625140]
        %v2092 = vld.sshfl [vmem:[#allocation1 + $0x20] sm:$0xff pattern:$0x73625140]
        %2093 = vst [vmem:[#allocation1] ss:$4 sm:$0xff] %v693
        %2094 = vst [vmem:[%s1797] ss:$4 sm:$0xff] %v694
        %2095 = vst [vmem:[%s1799] ss:$4 sm:$0xff] %v695
        %2096 = vst [vmem:[%s1801] ss:$4 sm:$0xff] %v696
        %2097 = vst [vmem:[%s1803] ss:$4 sm:$0xff] %v697
        %2098 = vst [vmem:[%s1805] ss:$4 sm:$0xff] %v698
        %2099 = vst [vmem:[%s1807] ss:$4 sm:$0xff] %v699
        %2100 = vst [vmem:[%s1809] ss:$4 sm:$0xff] %v700
        %v2101 = vld.sshfl [vmem:[#allocation1] sm:$0xff pattern:$0x73625140]
        %v2102 = vld.sshfl [vmem:[#allocation1 + $0x20] sm:$0xff pattern:$0x73625140]
        %2103 = vst [vmem:[#allocation1] ss:$4 sm:$0xff] %v701
        %2104 = vst [vmem:[%s1797] ss:$4 sm:$0xff] %v702
        %2105 = vst [vmem:[%s1799] ss:$4 sm:$0xff] %v703
        %2106 = vst [vmem:[%s1801] ss:$4 sm:$0xff] %v704
        %2107 = vst [vmem:[%s1803] ss:$4 sm:$0xff] %v705
        %2108 = vst [vmem:[%s1805] ss:$4 sm:$0xff] %v706
        %2109 = vst [vmem:[%s1807] ss:$4 sm:$0xff] %v707
        %2110 = vst [vmem:[%s1809] ss:$4 sm:$0xff] %v708
        %v2111 = vld.sshfl [vmem:[#allocation1] sm:$0xff pattern:$0x73625140]
        %v2112 = vld.sshfl [vmem:[#allocation1 + $0x20] sm:$0xff pattern:$0x73625140]
        %2113 = vst [vmem:[#allocation1] ss:$4 sm:$0xff] %v709
        %2114 = vst [vmem:[%s1797] ss:$4 sm:$0xff] %v710
        %2115 = vst [vmem:[%s1799] ss:$4 sm:$0xff] %v711
        %2116 = vst [vmem:[%s1801] ss:$4 sm:$0xff] %v712
        %2117 = vst [vmem:[%s1803] ss:$4 sm:$0xff] %v713
        %2118 = vst [vmem:[%s1805] ss:$4 sm:$0xff] %v714
        %2119 = vst [vmem:[%s1807] ss:$4 sm:$0xff] %v715
        %2120 = vst [vmem:[%s1809] ss:$4 sm:$0xff] %v716
        %v2121 = vld.sshfl [vmem:[#allocation1] sm:$0xff pattern:$0x73625140]
        %v2122 = vld.sshfl [vmem:[#allocation1 + $0x20] sm:$0xff pattern:$0x73625140]
        %vm2123 = vcmask 31744
        %v2125 = vsel %vm2123, %v1795, 0
        %v2127 = vsel %vm2123, %v1811, 0
        %v2129 = vsel %vm2123, %v1812, 0
        %v2131 = vsel %vm2123, %v1821, 0
        %v2133 = vsel %vm2123, %v1822, 0
        %v2135 = vsel %vm2123, %v1831, 0
        %v2137 = vsel %vm2123, %v1832, 0
        %v2139 = vsel %vm2123, %v1841, 0
        %v2141 = vsel %vm2123, %v1842, 0
        %v2143 = vsel %vm2123, %v1851, 0
        %v2145 = vsel %vm2123, %v1852, 0
        %v2147 = vsel %vm2123, %v1861, 0
        %v2149 = vsel %vm2123, %v1862, 0
        %v2151 = vsel %vm2123, %v1871, 0
        %v2153 = vsel %vm2123, %v1872, 0
        %v2155 = vsel %vm2123, %v1881, 0
        %v2157 = vsel %vm2123, %v1882, 0
        %v2159 = vsel %vm2123, %v1891, 0
        %v2161 = vsel %vm2123, %v1892, 0
        %v2163 = vsel %vm2123, %v1901, 0
        %v2165 = vsel %vm2123, %v1902, 0
        %v2167 = vsel %vm2123, %v1911, 0
        %v2169 = vsel %vm2123, %v1912, 0
        %v2171 = vsel %vm2123, %v1921, 0
        %v2173 = vsel %vm2123, %v1922, 0
        %v2175 = vsel %vm2123, %v1931, 0
        %v2177 = vsel %vm2123, %v1932, 0
        %v2179 = vsel %vm2123, %v1941, 0
        %v2181 = vsel %vm2123, %v1942, 0
        %v2183 = vsel %vm2123, %v1951, 0
        %v2185 = vsel %vm2123, %v1952, 0
        %v2187 = vsel %vm2123, %v1961, 0
        %v2189 = vsel %vm2123, %v1962, 0
        %v2191 = vsel %vm2123, %v1971, 0
        %v2193 = vsel %vm2123, %v1972, 0
        %v2195 = vsel %vm2123, %v1981, 0
        %v2197 = vsel %vm2123, %v1982, 0
        %v2199 = vsel %vm2123, %v1991, 0
        %v2201 = vsel %vm2123, %v1992, 0
        %v2203 = vsel %vm2123, %v2001, 0
        %v2205 = vsel %vm2123, %v2002, 0
        %v2207 = vsel %vm2123, %v2011, 0
        %v2209 = vsel %vm2123, %v2012, 0
        %v2211 = vsel %vm2123, %v2021, 0
        %v2213 = vsel %vm2123, %v2022, 0
        %v2215 = vsel %vm2123, %v2031, 0
        %v2217 = vsel %vm2123, %v2032, 0
        %v2219 = vsel %vm2123, %v2041, 0
        %v2221 = vsel %vm2123, %v2042, 0
        %v2223 = vsel %vm2123, %v2051, 0
        %v2225 = vsel %vm2123, %v2052, 0
        %v2227 = vsel %vm2123, %v2061, 0
        %v2229 = vsel %vm2123, %v2062, 0
        %v2231 = vsel %vm2123, %v2071, 0
        %v2233 = vsel %vm2123, %v2072, 0
        %v2235 = vsel %vm2123, %v2081, 0
        %v2237 = vsel %vm2123, %v2082, 0
        %v2239 = vsel %vm2123, %v2091, 0
        %v2241 = vsel %vm2123, %v2092, 0
        %v2243 = vsel %vm2123, %v2101, 0
        %v2245 = vsel %vm2123, %v2102, 0
        %v2247 = vsel %vm2123, %v2111, 0
        %v2249 = vsel %vm2123, %v2112, 0
        %v2251 = vsel %vm2123, %v2121, 0
        %v2253 = vsel %vm2123, %v2122, 0
        %2255 = vmatpush.xpose.msra.mxu0 %v2157
        %2256 = vmatpush.xpose.msra.mxu0 %v2155
        %2257 = vmatpush.xpose.msra.mxu0 %v2153
        %2258 = vmatpush.xpose.msra.mxu0 %v2151
        %2259 = vmatpush.xpose.msra.mxu0 %v2149
        %2260 = vmatpush.xpose.msra.mxu0 %v2147
        %2261 = vmatpush.xpose.msra.mxu0 %v2145
        %2262 = vmatpush.xpose.msra.mxu0 %v2143
        %2263 = vmatpush.xpose.msra.mxu0 %v2141
        %2264 = vmatpush.xpose.msra.mxu0 %v2139
        %2265 = vmatpush.xpose.msra.mxu0 %v2137
        %2266 = vmatpush.xpose.msra.mxu0 %v2135
        %2267 = vmatpush.xpose.msra.mxu0 %v2133
        %2268 = vmatpush.xpose.msra.mxu0 %v2131
        %2269 = vmatpush.xpose.msra.mxu0 %v2129
        %2270 = vmatpush.xpose.msra.mxu0 %v2127
        %2271 = vmatmul.f32.gmra.mxu0 %v2125
        %v2272 = vpop.f32.mrf.mxu0
        %v2273 = vadd.f32 0.0, %v2272
        %2274 = vdwg.mxu0
        %2275 = vmatpush.xpose.msra.mxu0 %v2189
        %2276 = vmatpush.xpose.msra.mxu0 %v2187
        %2277 = vmatpush.xpose.msra.mxu0 %v2185
        %2278 = vmatpush.xpose.msra.mxu0 %v2183
        %2279 = vmatpush.xpose.msra.mxu0 %v2181
        %2280 = vmatpush.xpose.msra.mxu0 %v2179
        %2281 = vmatpush.xpose.msra.mxu0 %v2177
        %2282 = vmatpush.xpose.msra.mxu0 %v2175
        %2283 = vmatpush.xpose.msra.mxu0 %v2173
        %2284 = vmatpush.xpose.msra.mxu0 %v2171
        %2285 = vmatpush.xpose.msra.mxu0 %v2169
        %2286 = vmatpush.xpose.msra.mxu0 %v2167
        %2287 = vmatpush.xpose.msra.mxu0 %v2165
        %2288 = vmatpush.xpose.msra.mxu0 %v2163
        %2289 = vmatpush.xpose.msra.mxu0 %v2161
        %2290 = vmatpush.xpose.msra.mxu0 %v2159
        %2291 = vmatmul.f32.gmra.mxu0 %v2125
        %v2292 = vpop.f32.mrf.mxu0
        %v2293 = vadd.f32 0.0, %v2292
        %2294 = vdwg.mxu0
        %2295 = vmatpush.xpose.msra.mxu0 %v2221
        %2296 = vmatpush.xpose.msra.mxu0 %v2219
        %2297 = vmatpush.xpose.msra.mxu0 %v2217
        %2298 = vmatpush.xpose.msra.mxu0 %v2215
        %2299 = vmatpush.xpose.msra.mxu0 %v2213
        %2300 = vmatpush.xpose.msra.mxu0 %v2211
        %2301 = vmatpush.xpose.msra.mxu0 %v2209
        %2302 = vmatpush.xpose.msra.mxu0 %v2207
        %2303 = vmatpush.xpose.msra.mxu0 %v2205
        %2304 = vmatpush.xpose.msra.mxu0 %v2203
        %2305 = vmatpush.xpose.msra.mxu0 %v2201
        %2306 = vmatpush.xpose.msra.mxu0 %v2199
        %2307 = vmatpush.xpose.msra.mxu0 %v2197
        %2308 = vmatpush.xpose.msra.mxu0 %v2195
        %2309 = vmatpush.xpose.msra.mxu0 %v2193
        %2310 = vmatpush.xpose.msra.mxu0 %v2191
        %2311 = vmatmul.f32.gmra.mxu0 %v2125
        %v2312 = vpop.f32.mrf.mxu0
        %v2313 = vadd.f32 0.0, %v2312
        %2314 = vdwg.mxu0
        %2315 = vmatpush.xpose.msra.mxu0 %v2253
        %2316 = vmatpush.xpose.msra.mxu0 %v2251
        %2317 = vmatpush.xpose.msra.mxu0 %v2249
        %2318 = vmatpush.xpose.msra.mxu0 %v2247
        %2319 = vmatpush.xpose.msra.mxu0 %v2245
        %2320 = vmatpush.xpose.msra.mxu0 %v2243
        %2321 = vmatpush.xpose.msra.mxu0 %v2241
        %2322 = vmatpush.xpose.msra.mxu0 %v2239
        %2323 = vmatpush.xpose.msra.mxu0 %v2237
        %2324 = vmatpush.xpose.msra.mxu0 %v2235
        %2325 = vmatpush.xpose.msra.mxu0 %v2233
        %2326 = vmatpush.xpose.msra.mxu0 %v2231
        %2327 = vmatpush.xpose.msra.mxu0 %v2229
        %2328 = vmatpush.xpose.msra.mxu0 %v2227
        %2329 = vmatpush.xpose.msra.mxu0 %v2225
        %2330 = vmatpush.xpose.msra.mxu0 %v2223
        %2331 = vmatmul.f32.gmra.mxu0 %v2125
        %v2332 = vpop.f32.mrf.mxu0
        %v2333 = vadd.f32 0.0, %v2332
        %2334 = vdwg.mxu0
        %v2336 = vsel %vm2123, %v1793, 0
        %v2339 = vsel %vm2123, %v1245, 0
        %v2341 = vsel %vm2123, %v1103, 0
        %v2343 = vsel %vm2123, %v1105, 0
        %v2345 = vsel %vm2123, %v1107, 0
        %v2348 = vsel %vm2123, %v1246, 0
        %v2350 = vsel %vm2123, %v1110, 0
        %v2352 = vsel %vm2123, %v1112, 0
        %v2354 = vsel %vm2123, %v1114, 0
        %v2357 = vsel %vm2123, %v1247, 0
        %v2359 = vsel %vm2123, %v1117, 0
        %v2361 = vsel %vm2123, %v1119, 0
        %v2363 = vsel %vm2123, %v1121, 0
        %v2366 = vsel %vm2123, %v1248, 0
        %v2368 = vsel %vm2123, %v1124, 0
        %v2370 = vsel %vm2123, %v1126, 0
        %v2372 = vsel %vm2123, %v1128, 0
        %v2375 = vsel %vm2123, %v1249, 0
        %v2377 = vsel %vm2123, %v1131, 0
        %v2379 = vsel %vm2123, %v1133, 0
        %v2381 = vsel %vm2123, %v1135, 0
        %v2384 = vsel %vm2123, %v1250, 0
        %v2386 = vsel %vm2123, %v1138, 0
        %v2388 = vsel %vm2123, %v1140, 0
        %v2390 = vsel %vm2123, %v1142, 0
        %v2393 = vsel %vm2123, %v1251, 0
        %v2395 = vsel %vm2123, %v1145, 0
        %v2397 = vsel %vm2123, %v1147, 0
        %v2399 = vsel %vm2123, %v1149, 0
        %v2402 = vsel %vm2123, %v1252, 0
        %v2404 = vsel %vm2123, %v1152, 0
        %v2406 = vsel %vm2123, %v1154, 0
        %v2408 = vsel %vm2123, %v1156, 0
        %v2411 = vsel %vm2123, %v1253, 0
        %v2413 = vsel %vm2123, %v1159, 0
        %v2415 = vsel %vm2123, %v1161, 0
        %v2417 = vsel %vm2123, %v1163, 0
        %v2420 = vsel %vm2123, %v1254, 0
        %v2422 = vsel %vm2123, %v1166, 0
        %v2424 = vsel %vm2123, %v1168, 0
        %v2426 = vsel %vm2123, %v1170, 0
        %v2429 = vsel %vm2123, %v1255, 0
        %v2431 = vsel %vm2123, %v1173, 0
        %v2433 = vsel %vm2123, %v1175, 0
        %v2435 = vsel %vm2123, %v1177, 0
        %v2438 = vsel %vm2123, %v1256, 0
        %v2440 = vsel %vm2123, %v1180, 0
        %v2442 = vsel %vm2123, %v1182, 0
        %v2444 = vsel %vm2123, %v1184, 0
        %v2447 = vsel %vm2123, %v1257, 0
        %v2449 = vsel %vm2123, %v1187, 0
        %v2451 = vsel %vm2123, %v1189, 0
        %v2453 = vsel %vm2123, %v1191, 0
        %v2456 = vsel %vm2123, %v1258, 0
        %v2458 = vsel %vm2123, %v1194, 0
        %v2460 = vsel %vm2123, %v1196, 0
        %v2462 = vsel %vm2123, %v1198, 0
        %v2465 = vsel %vm2123, %v1259, 0
        %v2467 = vsel %vm2123, %v1201, 0
        %v2469 = vsel %vm2123, %v1203, 0
        %v2471 = vsel %vm2123, %v1205, 0
        %v2474 = vsel %vm2123, %v1260, 0
        %v2476 = vsel %vm2123, %v1208, 0
        %v2478 = vsel %vm2123, %v1210, 0
        %v2480 = vsel %vm2123, %v1212, 0
        %2482 = vmatpush.xpose.msra.mxu0 %v2372
        %2483 = vmatpush.xpose.msra.mxu0 %v2370
        %2484 = vmatpush.xpose.msra.mxu0 %v2368
        %2485 = vmatpush.xpose.msra.mxu0 %v2366
        %2486 = vmatpush.xpose.msra.mxu0 %v2363
        %2487 = vmatpush.xpose.msra.mxu0 %v2361
        %2488 = vmatpush.xpose.msra.mxu0 %v2359
        %2489 = vmatpush.xpose.msra.mxu0 %v2357
        %2490 = vmatpush.xpose.msra.mxu0 %v2354
        %2491 = vmatpush.xpose.msra.mxu0 %v2352
        %2492 = vmatpush.xpose.msra.mxu0 %v2350
        %2493 = vmatpush.xpose.msra.mxu0 %v2348
        %2494 = vmatpush.xpose.msra.mxu0 %v2345
        %2495 = vmatpush.xpose.msra.mxu0 %v2343
        %2496 = vmatpush.xpose.msra.mxu0 %v2341
        %2497 = vmatpush.xpose.msra.mxu0 %v2339
        %2498 = vmatmul.f32.gmra.mxu0 %v2336
        %v2499 = vpop.f32.mrf.mxu0
        %v2500 = vadd.f32 %v2273, %v2499
        %2501 = vdwg.mxu0
        %2502 = vmatpush.xpose.msra.mxu0 %v2408
        %2503 = vmatpush.xpose.msra.mxu0 %v2406
        %2504 = vmatpush.xpose.msra.mxu0 %v2404
        %2505 = vmatpush.xpose.msra.mxu0 %v2402
        %2506 = vmatpush.xpose.msra.mxu0 %v2399
        %2507 = vmatpush.xpose.msra.mxu0 %v2397
        %2508 = vmatpush.xpose.msra.mxu0 %v2395
        %2509 = vmatpush.xpose.msra.mxu0 %v2393
        %2510 = vmatpush.xpose.msra.mxu0 %v2390
        %2511 = vmatpush.xpose.msra.mxu0 %v2388
        %2512 = vmatpush.xpose.msra.mxu0 %v2386
        %2513 = vmatpush.xpose.msra.mxu0 %v2384
        %2514 = vmatpush.xpose.msra.mxu0 %v2381
        %2515 = vmatpush.xpose.msra.mxu0 %v2379
        %2516 = vmatpush.xpose.msra.mxu0 %v2377
        %2517 = vmatpush.xpose.msra.mxu0 %v2375
        %2518 = vmatmul.f32.gmra.mxu0 %v2336
        %v2519 = vpop.f32.mrf.mxu0
        %v2520 = vadd.f32 %v2293, %v2519
        %2521 = vdwg.mxu0
        %2522 = vmatpush.xpose.msra.mxu0 %v2444
        %2523 = vmatpush.xpose.msra.mxu0 %v2442
        %2524 = vmatpush.xpose.msra.mxu0 %v2440
        %2525 = vmatpush.xpose.msra.mxu0 %v2438
        %2526 = vmatpush.xpose.msra.mxu0 %v2435
        %2527 = vmatpush.xpose.msra.mxu0 %v2433
        %2528 = vmatpush.xpose.msra.mxu0 %v2431
        %2529 = vmatpush.xpose.msra.mxu0 %v2429
        %2530 = vmatpush.xpose.msra.mxu0 %v2426
        %2531 = vmatpush.xpose.msra.mxu0 %v2424
        %2532 = vmatpush.xpose.msra.mxu0 %v2422
        %2533 = vmatpush.xpose.msra.mxu0 %v2420
        %2534 = vmatpush.xpose.msra.mxu0 %v2417
        %2535 = vmatpush.xpose.msra.mxu0 %v2415
        %2536 = vmatpush.xpose.msra.mxu0 %v2413
        %2537 = vmatpush.xpose.msra.mxu0 %v2411
        %2538 = vmatmul.f32.gmra.mxu0 %v2336
        %v2539 = vpop.f32.mrf.mxu0
        %v2540 = vadd.f32 %v2313, %v2539
        %2541 = vdwg.mxu0
        %2542 = vmatpush.xpose.msra.mxu0 %v2480
        %2543 = vmatpush.xpose.msra.mxu0 %v2478
        %2544 = vmatpush.xpose.msra.mxu0 %v2476
        %2545 = vmatpush.xpose.msra.mxu0 %v2474
        %2546 = vmatpush.xpose.msra.mxu0 %v2471
        %2547 = vmatpush.xpose.msra.mxu0 %v2469
        %2548 = vmatpush.xpose.msra.mxu0 %v2467
        %2549 = vmatpush.xpose.msra.mxu0 %v2465
        %2550 = vmatpush.xpose.msra.mxu0 %v2462
        %2551 = vmatpush.xpose.msra.mxu0 %v2460
        %2552 = vmatpush.xpose.msra.mxu0 %v2458
        %2553 = vmatpush.xpose.msra.mxu0 %v2456
        %2554 = vmatpush.xpose.msra.mxu0 %v2453
        %2555 = vmatpush.xpose.msra.mxu0 %v2451
        %2556 = vmatpush.xpose.msra.mxu0 %v2449
        %2557 = vmatpush.xpose.msra.mxu0 %v2447
        %2558 = vmatmul.f32.gmra.mxu0 %v2336
        %v2559 = vpop.f32.mrf.mxu0
        %v2560 = vadd.f32 %v2333, %v2559
        %2561 = vdwg.mxu0
        %s2562 = scalar_lea.vmem %s3, 16
        %v2563 = vld [vmem:[%s2562] sm:$0xff]
        %v2565 = vsel %vm2123, %v2563, 0
        %v2567 = vsel %vm2123, %v1633, 0
        %v2569 = vsel %vm2123, %v1635, 0
        %v2571 = vsel %vm2123, %v1637, 0
        %v2574 = vsel %vm2123, %v1775, 0
        %v2576 = vsel %vm2123, %v1640, 0
        %v2578 = vsel %vm2123, %v1642, 0
        %v2580 = vsel %vm2123, %v1644, 0
        %v2583 = vsel %vm2123, %v1776, 0
        %v2585 = vsel %vm2123, %v1647, 0
        %v2587 = vsel %vm2123, %v1649, 0
        %v2589 = vsel %vm2123, %v1651, 0
        %v2592 = vsel %vm2123, %v1777, 0
        %v2594 = vsel %vm2123, %v1654, 0
        %v2596 = vsel %vm2123, %v1656, 0
        %v2598 = vsel %vm2123, %v1658, 0
        %v2601 = vsel %vm2123, %v1778, 0
        %v2603 = vsel %vm2123, %v1661, 0
        %v2605 = vsel %vm2123, %v1663, 0
        %v2607 = vsel %vm2123, %v1665, 0
        %v2610 = vsel %vm2123, %v1779, 0
        %v2612 = vsel %vm2123, %v1668, 0
        %v2614 = vsel %vm2123, %v1670, 0
        %v2616 = vsel %vm2123, %v1672, 0
        %v2619 = vsel %vm2123, %v1780, 0
        %v2621 = vsel %vm2123, %v1675, 0
        %v2623 = vsel %vm2123, %v1677, 0
        %v2625 = vsel %vm2123, %v1679, 0
        %v2628 = vsel %vm2123, %v1781, 0
        %v2630 = vsel %vm2123, %v1682, 0
        %v2632 = vsel %vm2123, %v1684, 0
        %v2634 = vsel %vm2123, %v1686, 0
        %v2637 = vsel %vm2123, %v1782, 0
        %v2639 = vsel %vm2123, %v1689, 0
        %v2641 = vsel %vm2123, %v1691, 0
        %v2643 = vsel %vm2123, %v1693, 0
        %v2646 = vsel %vm2123, %v1783, 0
        %v2648 = vsel %vm2123, %v1696, 0
        %v2650 = vsel %vm2123, %v1698, 0
        %v2652 = vsel %vm2123, %v1700, 0
        %v2655 = vsel %vm2123, %v1784, 0
        %v2657 = vsel %vm2123, %v1703, 0
        %v2659 = vsel %vm2123, %v1705, 0
        %v2661 = vsel %vm2123, %v1707, 0
        %v2664 = vsel %vm2123, %v1785, 0
        %v2666 = vsel %vm2123, %v1710, 0
        %v2668 = vsel %vm2123, %v1712, 0
        %v2670 = vsel %vm2123, %v1714, 0
        %v2673 = vsel %vm2123, %v1786, 0
        %v2675 = vsel %vm2123, %v1717, 0
        %v2677 = vsel %vm2123, %v1719, 0
        %v2679 = vsel %vm2123, %v1721, 0
        %v2682 = vsel %vm2123, %v1787, 0
        %v2684 = vsel %vm2123, %v1724, 0
        %v2686 = vsel %vm2123, %v1726, 0
        %v2688 = vsel %vm2123, %v1728, 0
        %v2691 = vsel %vm2123, %v1788, 0
        %v2693 = vsel %vm2123, %v1731, 0
        %v2695 = vsel %vm2123, %v1733, 0
        %v2697 = vsel %vm2123, %v1735, 0
        %v2700 = vsel %vm2123, %v1789, 0
        %v2702 = vsel %vm2123, %v1738, 0
        %v2704 = vsel %vm2123, %v1740, 0
        %v2706 = vsel %vm2123, %v1742, 0
        %v2709 = vsel %vm2123, %v1790, 0
        %2711 = vmatpush.xpose.msra.mxu0 %v2601
        %2712 = vmatpush.xpose.msra.mxu0 %v2598
        %2713 = vmatpush.xpose.msra.mxu0 %v2596
        %2714 = vmatpush.xpose.msra.mxu0 %v2594
        %2715 = vmatpush.xpose.msra.mxu0 %v2592
        %2716 = vmatpush.xpose.msra.mxu0 %v2589
        %2717 = vmatpush.xpose.msra.mxu0 %v2587
        %2718 = vmatpush.xpose.msra.mxu0 %v2585
        %2719 = vmatpush.xpose.msra.mxu0 %v2583
        %2720 = vmatpush.xpose.msra.mxu0 %v2580
        %2721 = vmatpush.xpose.msra.mxu0 %v2578
        %2722 = vmatpush.xpose.msra.mxu0 %v2576
        %2723 = vmatpush.xpose.msra.mxu0 %v2574
        %2724 = vmatpush.xpose.msra.mxu0 %v2571
        %2725 = vmatpush.xpose.msra.mxu0 %v2569
        %2726 = vmatpush.xpose.msra.mxu0 %v2567
        %2727 = vmatmul.f32.gmra.mxu0 %v2565
        %v2728 = vpop.f32.mrf.mxu0
        %v2729 = vadd.f32 0.0, %v2728
        %2730 = vdwg.mxu0
        %2731 = vmatpush.xpose.msra.mxu0 %v2637
        %2732 = vmatpush.xpose.msra.mxu0 %v2634
        %2733 = vmatpush.xpose.msra.mxu0 %v2632
        %2734 = vmatpush.xpose.msra.mxu0 %v2630
        %2735 = vmatpush.xpose.msra.mxu0 %v2628
        %2736 = vmatpush.xpose.msra.mxu0 %v2625
        %2737 = vmatpush.xpose.msra.mxu0 %v2623
        %2738 = vmatpush.xpose.msra.mxu0 %v2621
        %2739 = vmatpush.xpose.msra.mxu0 %v2619
        %2740 = vmatpush.xpose.msra.mxu0 %v2616
        %2741 = vmatpush.xpose.msra.mxu0 %v2614
        %2742 = vmatpush.xpose.msra.mxu0 %v2612
        %2743 = vmatpush.xpose.msra.mxu0 %v2610
        %2744 = vmatpush.xpose.msra.mxu0 %v2607
        %2745 = vmatpush.xpose.msra.mxu0 %v2605
        %2746 = vmatpush.xpose.msra.mxu0 %v2603
        %2747 = vmatmul.f32.gmra.mxu0 %v2565
        %v2748 = vpop.f32.mrf.mxu0
        %v2749 = vadd.f32 0.0, %v2748
        %2750 = vdwg.mxu0
        %2751 = vmatpush.xpose.msra.mxu0 %v2673
        %2752 = vmatpush.xpose.msra.mxu0 %v2670
        %2753 = vmatpush.xpose.msra.mxu0 %v2668
        %2754 = vmatpush.xpose.msra.mxu0 %v2666
        %2755 = vmatpush.xpose.msra.mxu0 %v2664
        %2756 = vmatpush.xpose.msra.mxu0 %v2661
        %2757 = vmatpush.xpose.msra.mxu0 %v2659
        %2758 = vmatpush.xpose.msra.mxu0 %v2657
        %2759 = vmatpush.xpose.msra.mxu0 %v2655
        %2760 = vmatpush.xpose.msra.mxu0 %v2652
        %2761 = vmatpush.xpose.msra.mxu0 %v2650
        %2762 = vmatpush.xpose.msra.mxu0 %v2648
        %2763 = vmatpush.xpose.msra.mxu0 %v2646
        %2764 = vmatpush.xpose.msra.mxu0 %v2643
        %2765 = vmatpush.xpose.msra.mxu0 %v2641
        %2766 = vmatpush.xpose.msra.mxu0 %v2639
        %2767 = vmatmul.f32.gmra.mxu0 %v2565
        %v2768 = vpop.f32.mrf.mxu0
        %v2769 = vadd.f32 0.0, %v2768
        %2770 = vdwg.mxu0
        %2771 = vmatpush.xpose.msra.mxu0 %v2709
        %2772 = vmatpush.xpose.msra.mxu0 %v2706
        %2773 = vmatpush.xpose.msra.mxu0 %v2704
        %2774 = vmatpush.xpose.msra.mxu0 %v2702
        %2775 = vmatpush.xpose.msra.mxu0 %v2700
        %2776 = vmatpush.xpose.msra.mxu0 %v2697
        %2777 = vmatpush.xpose.msra.mxu0 %v2695
        %2778 = vmatpush.xpose.msra.mxu0 %v2693
        %2779 = vmatpush.xpose.msra.mxu0 %v2691
        %2780 = vmatpush.xpose.msra.mxu0 %v2688
        %2781 = vmatpush.xpose.msra.mxu0 %v2686
        %2782 = vmatpush.xpose.msra.mxu0 %v2684
        %2783 = vmatpush.xpose.msra.mxu0 %v2682
        %2784 = vmatpush.xpose.msra.mxu0 %v2679
        %2785 = vmatpush.xpose.msra.mxu0 %v2677
        %2786 = vmatpush.xpose.msra.mxu0 %v2675
        %2787 = vmatmul.f32.gmra.mxu0 %v2565
        %v2788 = vpop.f32.mrf.mxu0
        %v2789 = vadd.f32 0.0, %v2788
        %2790 = vdwg.mxu0
        %v2791 = vadd.f32 %v2500, %v2729
        %v2792 = vadd.f32 %v2520, %v2749
        %v2793 = vadd.f32 %v2540, %v2769
        %v2794 = vadd.f32 %v2560, %v2789
        %s2795 = scalar_lea.vmem %s3, 24
        %v2796 = vld [vmem:[%s2795] sm:$0xff]
        %v2798 = vsel %vm2123, %v2796, 0
        %v2801 = vsel %vm2123, %v1261, 0
        %v2803 = vsel %vm2123, %v1215, 0
        %v2805 = vsel %vm2123, %v1217, 0
        %v2807 = vsel %vm2123, %v1219, 0
        %2809 = vmatpush.xpose.msra.mxu0 %v2381
        %2810 = vmatpush.xpose.msra.mxu0 %v2379
        %2811 = vmatpush.xpose.msra.mxu0 %v2377
        %2812 = vmatpush.xpose.msra.mxu0 %v2375
        %2813 = vmatpush.xpose.msra.mxu0 %v2372
        %2814 = vmatpush.xpose.msra.mxu0 %v2370
        %2815 = vmatpush.xpose.msra.mxu0 %v2368
        %2816 = vmatpush.xpose.msra.mxu0 %v2366
        %2817 = vmatpush.xpose.msra.mxu0 %v2363
        %2818 = vmatpush.xpose.msra.mxu0 %v2361
        %2819 = vmatpush.xpose.msra.mxu0 %v2359
        %2820 = vmatpush.xpose.msra.mxu0 %v2357
        %2821 = vmatpush.xpose.msra.mxu0 %v2354
        %2822 = vmatpush.xpose.msra.mxu0 %v2352
        %2823 = vmatpush.xpose.msra.mxu0 %v2350
        %2824 = vmatpush.xpose.msra.mxu0 %v2348
        %2825 = vmatmul.f32.gmra.mxu0 %v2798
        %v2826 = vpop.f32.mrf.mxu0
        %v2827 = vadd.f32 0.0, %v2826
        %2828 = vdwg.mxu0
        %2829 = vmatpush.xpose.msra.mxu0 %v2417
        %2830 = vmatpush.xpose.msra.mxu0 %v2415
        %2831 = vmatpush.xpose.msra.mxu0 %v2413
        %2832 = vmatpush.xpose.msra.mxu0 %v2411
        %2833 = vmatpush.xpose.msra.mxu0 %v2408
        %2834 = vmatpush.xpose.msra.mxu0 %v2406
        %2835 = vmatpush.xpose.msra.mxu0 %v2404
        %2836 = vmatpush.xpose.msra.mxu0 %v2402
        %2837 = vmatpush.xpose.msra.mxu0 %v2399
        %2838 = vmatpush.xpose.msra.mxu0 %v2397
        %2839 = vmatpush.xpose.msra.mxu0 %v2395
        %2840 = vmatpush.xpose.msra.mxu0 %v2393
        %2841 = vmatpush.xpose.msra.mxu0 %v2390
        %2842 = vmatpush.xpose.msra.mxu0 %v2388
        %2843 = vmatpush.xpose.msra.mxu0 %v2386
        %2844 = vmatpush.xpose.msra.mxu0 %v2384
        %2845 = vmatmul.f32.gmra.mxu0 %v2798
        %v2846 = vpop.f32.mrf.mxu0
        %v2847 = vadd.f32 0.0, %v2846
        %2848 = vdwg.mxu0
        %2849 = vmatpush.xpose.msra.mxu0 %v2453
        %2850 = vmatpush.xpose.msra.mxu0 %v2451
        %2851 = vmatpush.xpose.msra.mxu0 %v2449
        %2852 = vmatpush.xpose.msra.mxu0 %v2447
        %2853 = vmatpush.xpose.msra.mxu0 %v2444
        %2854 = vmatpush.xpose.msra.mxu0 %v2442
        %2855 = vmatpush.xpose.msra.mxu0 %v2440
        %2856 = vmatpush.xpose.msra.mxu0 %v2438
        %2857 = vmatpush.xpose.msra.mxu0 %v2435
        %2858 = vmatpush.xpose.msra.mxu0 %v2433
        %2859 = vmatpush.xpose.msra.mxu0 %v2431
        %2860 = vmatpush.xpose.msra.mxu0 %v2429
        %2861 = vmatpush.xpose.msra.mxu0 %v2426
        %2862 = vmatpush.xpose.msra.mxu0 %v2424
        %2863 = vmatpush.xpose.msra.mxu0 %v2422
        %2864 = vmatpush.xpose.msra.mxu0 %v2420
        %2865 = vmatmul.f32.gmra.mxu0 %v2798
        %v2866 = vpop.f32.mrf.mxu0
        %v2867 = vadd.f32 0.0, %v2866
        %2868 = vdwg.mxu0
        %2869 = vmatpush.xpose.msra.mxu0 %v2807
        %2870 = vmatpush.xpose.msra.mxu0 %v2805
        %2871 = vmatpush.xpose.msra.mxu0 %v2803
        %2872 = vmatpush.xpose.msra.mxu0 %v2801
        %2873 = vmatpush.xpose.msra.mxu0 %v2480
        %2874 = vmatpush.xpose.msra.mxu0 %v2478
        %2875 = vmatpush.xpose.msra.mxu0 %v2476
        %2876 = vmatpush.xpose.msra.mxu0 %v2474
        %2877 = vmatpush.xpose.msra.mxu0 %v2471
        %2878 = vmatpush.xpose.msra.mxu0 %v2469
        %2879 = vmatpush.xpose.msra.mxu0 %v2467
        %2880 = vmatpush.xpose.msra.mxu0 %v2465
        %2881 = vmatpush.xpose.msra.mxu0 %v2462
        %2882 = vmatpush.xpose.msra.mxu0 %v2460
        %2883 = vmatpush.xpose.msra.mxu0 %v2458
        %2884 = vmatpush.xpose.msra.mxu0 %v2456
        %2885 = vmatmul.f32.gmra.mxu0 %v2798
        %v2886 = vpop.f32.mrf.mxu0
        %v2887 = vadd.f32 0.0, %v2886
        %2888 = vdwg.mxu0
        %v2889 = vadd.f32 %v2791, %v2827
        %v2890 = vadd.f32 %v2792, %v2847
        %v2891 = vadd.f32 %v2793, %v2867
        %v2892 = vadd.f32 %v2794, %v2887
        %s2893 = scalar_lea.vmem %s3, 32
        %v2894 = vld [vmem:[%s2893] sm:$0xff]
        %2895 = vst [vmem:[#allocation1] ss:$4 sm:$0xff] %v589
        %s2896 = scalar_lea.vmem [#allocation1], 1
        %2897 = vst [vmem:[%s2896] ss:$4 sm:$0xff] %v590
        %s2898 = scalar_lea.vmem [#allocation1], 2
        %2899 = vst [vmem:[%s2898] ss:$4 sm:$0xff] %v591
        %s2900 = scalar_lea.vmem [#allocation1], 3
        %2901 = vst [vmem:[%s2900] ss:$4 sm:$0xff] %v592
        %s2902 = scalar_lea.vmem [#allocation1], 32
        %2903 = vst [vmem:[%s2902] ss:$4 sm:$0xff] %v593
        %s2904 = scalar_lea.vmem [#allocation1], 33
        %2905 = vst [vmem:[%s2904] ss:$4 sm:$0xff] %v594
        %s2906 = scalar_lea.vmem [#allocation1], 34
        %2907 = vst [vmem:[%s2906] ss:$4 sm:$0xff] %v595
        %s2908 = scalar_lea.vmem [#allocation1], 35
        %2909 = vst [vmem:[%s2908] ss:$4 sm:$0xff] %v596
        %v2910 = vld.sshfl [vmem:[#allocation1] sm:$0xff pattern:$0x73625140]
        %v2911 = vld.sshfl [vmem:[#allocation1 + $0x20] sm:$0xff pattern:$0x73625140]
        %2912 = vst [vmem:[#allocation1] ss:$4 sm:$0xff] %v597
        %2913 = vst [vmem:[%s2896] ss:$4 sm:$0xff] %v598
        %2914 = vst [vmem:[%s2898] ss:$4 sm:$0xff] %v599
        %2915 = vst [vmem:[%s2900] ss:$4 sm:$0xff] %v600
        %2916 = vst [vmem:[%s2902] ss:$4 sm:$0xff] %v601
        %2917 = vst [vmem:[%s2904] ss:$4 sm:$0xff] %v602
        %2918 = vst [vmem:[%s2906] ss:$4 sm:$0xff] %v603
        %2919 = vst [vmem:[%s2908] ss:$4 sm:$0xff] %v604
        %v2920 = vld.sshfl [vmem:[#allocation1] sm:$0xff pattern:$0x73625140]
        %v2921 = vld.sshfl [vmem:[#allocation1 + $0x20] sm:$0xff pattern:$0x73625140]
        %2922 = vst [vmem:[#allocation1] ss:$4 sm:$0xff] %v589
        %2923 = vst [vmem:[%s2896] ss:$4 sm:$0xff] %v590
        %2924 = vst [vmem:[%s2898] ss:$4 sm:$0xff] %v591
        %2925 = vst [vmem:[%s2900] ss:$4 sm:$0xff] %v592
        %2926 = vst [vmem:[%s2902] ss:$4 sm:$0xff] %v593
        %2927 = vst [vmem:[%s2904] ss:$4 sm:$0xff] %v594
        %2928 = vst [vmem:[%s2906] ss:$4 sm:$0xff] %v595
        %2929 = vst [vmem:[%s2908] ss:$4 sm:$0xff] %v596
        %v2930 = vld.sshfl [vmem:[#allocation1] sm:$0xff pattern:$0x73625140]
        %v2931 = vld.sshfl [vmem:[#allocation1 + $0x20] sm:$0xff pattern:$0x73625140]
        %2932 = vst [vmem:[#allocation1] ss:$4 sm:$0xff] %v597
        %2933 = vst [vmem:[%s2896] ss:$4 sm:$0xff] %v598
        %2934 = vst [vmem:[%s2898] ss:$4 sm:$0xff] %v599
        %2935 = vst [vmem:[%s2900] ss:$4 sm:$0xff] %v600
        %2936 = vst [vmem:[%s2902] ss:$4 sm:$0xff] %v601
        %2937 = vst [vmem:[%s2904] ss:$4 sm:$0xff] %v602
        %2938 = vst [vmem:[%s2906] ss:$4 sm:$0xff] %v603
        %2939 = vst [vmem:[%s2908] ss:$4 sm:$0xff] %v604
        %v2940 = vld.sshfl [vmem:[#allocation1] sm:$0xff pattern:$0x73625140]
        %v2941 = vld.sshfl [vmem:[#allocation1 + $0x20] sm:$0xff pattern:$0x73625140]
        %2942 = vst [vmem:[#allocation1] ss:$4 sm:$0xff] %v605
        %2943 = vst [vmem:[%s2896] ss:$4 sm:$0xff] %v606
        %2944 = vst [vmem:[%s2898] ss:$4 sm:$0xff] %v607
        %2945 = vst [vmem:[%s2900] ss:$4 sm:$0xff] %v608
        %2946 = vst [vmem:[%s2902] ss:$4 sm:$0xff] %v609
        %2947 = vst [vmem:[%s2904] ss:$4 sm:$0xff] %v610
        %2948 = vst [vmem:[%s2906] ss:$4 sm:$0xff] %v611
        %2949 = vst [vmem:[%s2908] ss:$4 sm:$0xff] %v612
        %v2950 = vld.sshfl [vmem:[#allocation1] sm:$0xff pattern:$0x73625140]
        %v2951 = vld.sshfl [vmem:[#allocation1 + $0x20] sm:$0xff pattern:$0x73625140]
        %2952 = vst [vmem:[#allocation1] ss:$4 sm:$0xff] %v613
        %2953 = vst [vmem:[%s2896] ss:$4 sm:$0xff] %v614
        %2954 = vst [vmem:[%s2898] ss:$4 sm:$0xff] %v615
        %2955 = vst [vmem:[%s2900] ss:$4 sm:$0xff] %v616
        %2956 = vst [vmem:[%s2902] ss:$4 sm:$0xff] %v617
        %2957 = vst [vmem:[%s2904] ss:$4 sm:$0xff] %v618
        %2958 = vst [vmem:[%s2906] ss:$4 sm:$0xff] %v619
        %2959 = vst [vmem:[%s2908] ss:$4 sm:$0xff] %v620
        %v2960 = vld.sshfl [vmem:[#allocation1] sm:$0xff pattern:$0x73625140]
        %v2961 = vld.sshfl [vmem:[#allocation1 + $0x20] sm:$0xff pattern:$0x73625140]
        %2962 = vst [vmem:[#allocation1] ss:$4 sm:$0xff] %v605
        %2963 = vst [vmem:[%s2896] ss:$4 sm:$0xff] %v606
        %2964 = vst [vmem:[%s2898] ss:$4 sm:$0xff] %v607
        %2965 = vst [vmem:[%s2900] ss:$4 sm:$0xff] %v608
        %2966 = vst [vmem:[%s2902] ss:$4 sm:$0xff] %v609
        %2967 = vst [vmem:[%s2904] ss:$4 sm:$0xff] %v610
        %2968 = vst [vmem:[%s2906] ss:$4 sm:$0xff] %v611
        %2969 = vst [vmem:[%s2908] ss:$4 sm:$0xff] %v612
        %v2970 = vld.sshfl [vmem:[#allocation1] sm:$0xff pattern:$0x73625140]
        %v2971 = vld.sshfl [vmem:[#allocation1 + $0x20] sm:$0xff pattern:$0x73625140]
        %2972 = vst [vmem:[#allocation1] ss:$4 sm:$0xff] %v613
        %2973 = vst [vmem:[%s2896] ss:$4 sm:$0xff] %v614
        %2974 = vst [vmem:[%s2898] ss:$4 sm:$0xff] %v615
        %2975 = vst [vmem:[%s2900] ss:$4 sm:$0xff] %v616
        %2976 = vst [vmem:[%s2902] ss:$4 sm:$0xff] %v617
        %2977 = vst [vmem:[%s2904] ss:$4 sm:$0xff] %v618
        %2978 = vst [vmem:[%s2906] ss:$4 sm:$0xff] %v619
        %2979 = vst [vmem:[%s2908] ss:$4 sm:$0xff] %v620
        %v2980 = vld.sshfl [vmem:[#allocation1] sm:$0xff pattern:$0x73625140]
        %v2981 = vld.sshfl [vmem:[#allocation1 + $0x20] sm:$0xff pattern:$0x73625140]
        %2982 = vst [vmem:[#allocation1] ss:$4 sm:$0xff] %v621
        %2983 = vst [vmem:[%s2896] ss:$4 sm:$0xff] %v622
        %2984 = vst [vmem:[%s2898] ss:$4 sm:$0xff] %v623
        %2985 = vst [vmem:[%s2900] ss:$4 sm:$0xff] %v624
        %2986 = vst [vmem:[%s2902] ss:$4 sm:$0xff] %v625
        %2987 = vst [vmem:[%s2904] ss:$4 sm:$0xff] %v626
        %2988 = vst [vmem:[%s2906] ss:$4 sm:$0xff] %v627
        %2989 = vst [vmem:[%s2908] ss:$4 sm:$0xff] %v628
        %v2990 = vld.sshfl [vmem:[#allocation1] sm:$0xff pattern:$0x73625140]
        %v2991 = vld.sshfl [vmem:[#allocation1 + $0x20] sm:$0xff pattern:$0x73625140]
        %2992 = vst [vmem:[#allocation1] ss:$4 sm:$0xff] %v629
        %2993 = vst [vmem:[%s2896] ss:$4 sm:$0xff] %v630
        %2994 = vst [vmem:[%s2898] ss:$4 sm:$0xff] %v631
        %2995 = vst [vmem:[%s2900] ss:$4 sm:$0xff] %v632
        %2996 = vst [vmem:[%s2902] ss:$4 sm:$0xff] %v633
        %2997 = vst [vmem:[%s2904] ss:$4 sm:$0xff] %v634
        %2998 = vst [vmem:[%s2906] ss:$4 sm:$0xff] %v635
        %2999 = vst [vmem:[%s2908] ss:$4 sm:$0xff] %v636
        %v3000 = vld.sshfl [vmem:[#allocation1] sm:$0xff pattern:$0x73625140]
        %v3001 = vld.sshfl [vmem:[#allocation1 + $0x20] sm:$0xff pattern:$0x73625140]
        %3002 = vst [vmem:[#allocation1] ss:$4 sm:$0xff] %v621
        %3003 = vst [vmem:[%s2896] ss:$4 sm:$0xff] %v622
        %3004 = vst [vmem:[%s2898] ss:$4 sm:$0xff] %v623
        %3005 = vst [vmem:[%s2900] ss:$4 sm:$0xff] %v624
        %3006 = vst [vmem:[%s2902] ss:$4 sm:$0xff] %v625
        %3007 = vst [vmem:[%s2904] ss:$4 sm:$0xff] %v626
        %3008 = vst [vmem:[%s2906] ss:$4 sm:$0xff] %v627
        %3009 = vst [vmem:[%s2908] ss:$4 sm:$0xff] %v628
        %v3010 = vld.sshfl [vmem:[#allocation1] sm:$0xff pattern:$0x73625140]
        %v3011 = vld.sshfl [vmem:[#allocation1 + $0x20] sm:$0xff pattern:$0x73625140]
        %3012 = vst [vmem:[#allocation1] ss:$4 sm:$0xff] %v629
        %3013 = vst [vmem:[%s2896] ss:$4 sm:$0xff] %v630
        %3014 = vst [vmem:[%s2898] ss:$4 sm:$0xff] %v631
        %3015 = vst [vmem:[%s2900] ss:$4 sm:$0xff] %v632
        %3016 = vst [vmem:[%s2902] ss:$4 sm:$0xff] %v633
        %3017 = vst [vmem:[%s2904] ss:$4 sm:$0xff] %v634
        %3018 = vst [vmem:[%s2906] ss:$4 sm:$0xff] %v635
        %3019 = vst [vmem:[%s2908] ss:$4 sm:$0xff] %v636
        %v3020 = vld.sshfl [vmem:[#allocation1] sm:$0xff pattern:$0x73625140]
        %v3021 = vld.sshfl [vmem:[#allocation1 + $0x20] sm:$0xff pattern:$0x73625140]
        %3022 = vst [vmem:[#allocation1] ss:$4 sm:$0xff] %v637
        %3023 = vst [vmem:[%s2896] ss:$4 sm:$0xff] %v638
        %3024 = vst [vmem:[%s2898] ss:$4 sm:$0xff] %v639
        %3025 = vst [vmem:[%s2900] ss:$4 sm:$0xff] %v640
        %3026 = vst [vmem:[%s2902] ss:$4 sm:$0xff] %v641
        %3027 = vst [vmem:[%s2904] ss:$4 sm:$0xff] %v642
        %3028 = vst [vmem:[%s2906] ss:$4 sm:$0xff] %v643
        %3029 = vst [vmem:[%s2908] ss:$4 sm:$0xff] %v644
        %v3030 = vld.sshfl [vmem:[#allocation1] sm:$0xff pattern:$0x73625140]
        %v3031 = vld.sshfl [vmem:[#allocation1 + $0x20] sm:$0xff pattern:$0x73625140]
        %3032 = vst [vmem:[#allocation1] ss:$4 sm:$0xff] %v645
        %3033 = vst [vmem:[%s2896] ss:$4 sm:$0xff] %v646
        %3034 = vst [vmem:[%s2898] ss:$4 sm:$0xff] %v647
        %3035 = vst [vmem:[%s2900] ss:$4 sm:$0xff] %v648
        %3036 = vst [vmem:[%s2902] ss:$4 sm:$0xff] %v649
        %3037 = vst [vmem:[%s2904] ss:$4 sm:$0xff] %v650
        %3038 = vst [vmem:[%s2906] ss:$4 sm:$0xff] %v651
        %3039 = vst [vmem:[%s2908] ss:$4 sm:$0xff] %v652
        %v3040 = vld.sshfl [vmem:[#allocation1] sm:$0xff pattern:$0x73625140]
        %v3041 = vld.sshfl [vmem:[#allocation1 + $0x20] sm:$0xff pattern:$0x73625140]
        %3042 = vst [vmem:[#allocation1] ss:$4 sm:$0xff] %v637
        %3043 = vst [vmem:[%s2896] ss:$4 sm:$0xff] %v638
        %3044 = vst [vmem:[%s2898] ss:$4 sm:$0xff] %v639
        %3045 = vst [vmem:[%s2900] ss:$4 sm:$0xff] %v640
        %3046 = vst [vmem:[%s2902] ss:$4 sm:$0xff] %v641
        %3047 = vst [vmem:[%s2904] ss:$4 sm:$0xff] %v642
        %3048 = vst [vmem:[%s2906] ss:$4 sm:$0xff] %v643
        %3049 = vst [vmem:[%s2908] ss:$4 sm:$0xff] %v644
        %v3050 = vld.sshfl [vmem:[#allocation1] sm:$0xff pattern:$0x73625140]
        %v3051 = vld.sshfl [vmem:[#allocation1 + $0x20] sm:$0xff pattern:$0x73625140]
        %3052 = vst [vmem:[#allocation1] ss:$4 sm:$0xff] %v645
        %3053 = vst [vmem:[%s2896] ss:$4 sm:$0xff] %v646
        %3054 = vst [vmem:[%s2898] ss:$4 sm:$0xff] %v647
        %3055 = vst [vmem:[%s2900] ss:$4 sm:$0xff] %v648
        %3056 = vst [vmem:[%s2902] ss:$4 sm:$0xff] %v649
        %3057 = vst [vmem:[%s2904] ss:$4 sm:$0xff] %v650
        %3058 = vst [vmem:[%s2906] ss:$4 sm:$0xff] %v651
        %3059 = vst [vmem:[%s2908] ss:$4 sm:$0xff] %v652
        %v3060 = vld.sshfl [vmem:[#allocation1] sm:$0xff pattern:$0x73625140]
        %v3061 = vld.sshfl [vmem:[#allocation1 + $0x20] sm:$0xff pattern:$0x73625140]
        %3062 = vst [vmem:[#allocation1] ss:$4 sm:$0xff] %v653
        %3063 = vst [vmem:[%s2896] ss:$4 sm:$0xff] %v654
        %3064 = vst [vmem:[%s2898] ss:$4 sm:$0xff] %v655
        %3065 = vst [vmem:[%s2900] ss:$4 sm:$0xff] %v656
        %3066 = vst [vmem:[%s2902] ss:$4 sm:$0xff] %v657
        %3067 = vst [vmem:[%s2904] ss:$4 sm:$0xff] %v658
        %3068 = vst [vmem:[%s2906] ss:$4 sm:$0xff] %v659
        %3069 = vst [vmem:[%s2908] ss:$4 sm:$0xff] %v660
        %v3070 = vld.sshfl [vmem:[#allocation1] sm:$0xff pattern:$0x73625140]
        %v3071 = vld.sshfl [vmem:[#allocation1 + $0x20] sm:$0xff pattern:$0x73625140]
        %3072 = vst [vmem:[#allocation1] ss:$4 sm:$0xff] %v661
        %3073 = vst [vmem:[%s2896] ss:$4 sm:$0xff] %v662
        %3074 = vst [vmem:[%s2898] ss:$4 sm:$0xff] %v663
        %3075 = vst [vmem:[%s2900] ss:$4 sm:$0xff] %v664
        %3076 = vst [vmem:[%s2902] ss:$4 sm:$0xff] %v665
        %3077 = vst [vmem:[%s2904] ss:$4 sm:$0xff] %v666
        %3078 = vst [vmem:[%s2906] ss:$4 sm:$0xff] %v667
        %3079 = vst [vmem:[%s2908] ss:$4 sm:$0xff] %v668
        %v3080 = vld.sshfl [vmem:[#allocation1] sm:$0xff pattern:$0x73625140]
        %v3081 = vld.sshfl [vmem:[#allocation1 + $0x20] sm:$0xff pattern:$0x73625140]
        %3082 = vst [vmem:[#allocation1] ss:$4 sm:$0xff] %v653
        %3083 = vst [vmem:[%s2896] ss:$4 sm:$0xff] %v654
        %3084 = vst [vmem:[%s2898] ss:$4 sm:$0xff] %v655
        %3085 = vst [vmem:[%s2900] ss:$4 sm:$0xff] %v656
        %3086 = vst [vmem:[%s2902] ss:$4 sm:$0xff] %v657
        %3087 = vst [vmem:[%s2904] ss:$4 sm:$0xff] %v658
        %3088 = vst [vmem:[%s2906] ss:$4 sm:$0xff] %v659
        %3089 = vst [vmem:[%s2908] ss:$4 sm:$0xff] %v660
        %v3090 = vld.sshfl [vmem:[#allocation1] sm:$0xff pattern:$0x73625140]
        %v3091 = vld.sshfl [vmem:[#allocation1 + $0x20] sm:$0xff pattern:$0x73625140]
        %3092 = vst [vmem:[#allocation1] ss:$4 sm:$0xff] %v661
        %3093 = vst [vmem:[%s2896] ss:$4 sm:$0xff] %v662
        %3094 = vst [vmem:[%s2898] ss:$4 sm:$0xff] %v663
        %3095 = vst [vmem:[%s2900] ss:$4 sm:$0xff] %v664
        %3096 = vst [vmem:[%s2902] ss:$4 sm:$0xff] %v665
        %3097 = vst [vmem:[%s2904] ss:$4 sm:$0xff] %v666
        %3098 = vst [vmem:[%s2906] ss:$4 sm:$0xff] %v667
        %3099 = vst [vmem:[%s2908] ss:$4 sm:$0xff] %v668
        %v3100 = vld.sshfl [vmem:[#allocation1] sm:$0xff pattern:$0x73625140]
        %v3101 = vld.sshfl [vmem:[#allocation1 + $0x20] sm:$0xff pattern:$0x73625140]
        %3102 = vst [vmem:[#allocation1] ss:$4 sm:$0xff] %v669
        %3103 = vst [vmem:[%s2896] ss:$4 sm:$0xff] %v670
        %3104 = vst [vmem:[%s2898] ss:$4 sm:$0xff] %v671
        %3105 = vst [vmem:[%s2900] ss:$4 sm:$0xff] %v672
        %3106 = vst [vmem:[%s2902] ss:$4 sm:$0xff] %v673
        %3107 = vst [vmem:[%s2904] ss:$4 sm:$0xff] %v674
        %3108 = vst [vmem:[%s2906] ss:$4 sm:$0xff] %v675
        %3109 = vst [vmem:[%s2908] ss:$4 sm:$0xff] %v676
        %v3110 = vld.sshfl [vmem:[#allocation1] sm:$0xff pattern:$0x73625140]
        %v3111 = vld.sshfl [vmem:[#allocation1 + $0x20] sm:$0xff pattern:$0x73625140]
        %3112 = vst [vmem:[#allocation1] ss:$4 sm:$0xff] %v677
        %3113 = vst [vmem:[%s2896] ss:$4 sm:$0xff] %v678
        %3114 = vst [vmem:[%s2898] ss:$4 sm:$0xff] %v679
        %3115 = vst [vmem:[%s2900] ss:$4 sm:$0xff] %v680
        %3116 = vst [vmem:[%s2902] ss:$4 sm:$0xff] %v681
        %3117 = vst [vmem:[%s2904] ss:$4 sm:$0xff] %v682
        %3118 = vst [vmem:[%s2906] ss:$4 sm:$0xff] %v683
        %3119 = vst [vmem:[%s2908] ss:$4 sm:$0xff] %v684
        %v3120 = vld.sshfl [vmem:[#allocation1] sm:$0xff pattern:$0x73625140]
        %v3121 = vld.sshfl [vmem:[#allocation1 + $0x20] sm:$0xff pattern:$0x73625140]
        %3122 = vst [vmem:[#allocation1] ss:$4 sm:$0xff] %v669
        %3123 = vst [vmem:[%s2896] ss:$4 sm:$0xff] %v670
        %3124 = vst [vmem:[%s2898] ss:$4 sm:$0xff] %v671
        %3125 = vst [vmem:[%s2900] ss:$4 sm:$0xff] %v672
        %3126 = vst [vmem:[%s2902] ss:$4 sm:$0xff] %v673
        %3127 = vst [vmem:[%s2904] ss:$4 sm:$0xff] %v674
        %3128 = vst [vmem:[%s2906] ss:$4 sm:$0xff] %v675
        %3129 = vst [vmem:[%s2908] ss:$4 sm:$0xff] %v676
        %v3130 = vld.sshfl [vmem:[#allocation1] sm:$0xff pattern:$0x73625140]
        %v3131 = vld.sshfl [vmem:[#allocation1 + $0x20] sm:$0xff pattern:$0x73625140]
        %3132 = vst [vmem:[#allocation1] ss:$4 sm:$0xff] %v677
        %3133 = vst [vmem:[%s2896] ss:$4 sm:$0xff] %v678
        %3134 = vst [vmem:[%s2898] ss:$4 sm:$0xff] %v679
        %3135 = vst [vmem:[%s2900] ss:$4 sm:$0xff] %v680
        %3136 = vst [vmem:[%s2902] ss:$4 sm:$0xff] %v681
        %3137 = vst [vmem:[%s2904] ss:$4 sm:$0xff] %v682
        %3138 = vst [vmem:[%s2906] ss:$4 sm:$0xff] %v683
        %3139 = vst [vmem:[%s2908] ss:$4 sm:$0xff] %v684
        %v3140 = vld.sshfl [vmem:[#allocation1] sm:$0xff pattern:$0x73625140]
        %v3141 = vld.sshfl [vmem:[#allocation1 + $0x20] sm:$0xff pattern:$0x73625140]
        %3142 = vst [vmem:[#allocation1] ss:$4 sm:$0xff] %v685
        %3143 = vst [vmem:[%s2896] ss:$4 sm:$0xff] %v686
        %3144 = vst [vmem:[%s2898] ss:$4 sm:$0xff] %v687
        %3145 = vst [vmem:[%s2900] ss:$4 sm:$0xff] %v688
        %3146 = vst [vmem:[%s2902] ss:$4 sm:$0xff] %v689
        %3147 = vst [vmem:[%s2904] ss:$4 sm:$0xff] %v690
        %3148 = vst [vmem:[%s2906] ss:$4 sm:$0xff] %v691
        %3149 = vst [vmem:[%s2908] ss:$4 sm:$0xff] %v692
        %v3150 = vld.sshfl [vmem:[#allocation1] sm:$0xff pattern:$0x73625140]
        %v3151 = vld.sshfl [vmem:[#allocation1 + $0x20] sm:$0xff pattern:$0x73625140]
        %3152 = vst [vmem:[#allocation1] ss:$4 sm:$0xff] %v693
        %3153 = vst [vmem:[%s2896] ss:$4 sm:$0xff] %v694
        %3154 = vst [vmem:[%s2898] ss:$4 sm:$0xff] %v695
        %3155 = vst [vmem:[%s2900] ss:$4 sm:$0xff] %v696
        %3156 = vst [vmem:[%s2902] ss:$4 sm:$0xff] %v697
        %3157 = vst [vmem:[%s2904] ss:$4 sm:$0xff] %v698
        %3158 = vst [vmem:[%s2906] ss:$4 sm:$0xff] %v699
        %3159 = vst [vmem:[%s2908] ss:$4 sm:$0xff] %v700
        %v3160 = vld.sshfl [vmem:[#allocation1] sm:$0xff pattern:$0x73625140]
        %v3161 = vld.sshfl [vmem:[#allocation1 + $0x20] sm:$0xff pattern:$0x73625140]
        %3162 = vst [vmem:[#allocation1] ss:$4 sm:$0xff] %v685
        %3163 = vst [vmem:[%s2896] ss:$4 sm:$0xff] %v686
        %3164 = vst [vmem:[%s2898] ss:$4 sm:$0xff] %v687
        %3165 = vst [vmem:[%s2900] ss:$4 sm:$0xff] %v688
        %3166 = vst [vmem:[%s2902] ss:$4 sm:$0xff] %v689
        %3167 = vst [vmem:[%s2904] ss:$4 sm:$0xff] %v690
        %3168 = vst [vmem:[%s2906] ss:$4 sm:$0xff] %v691
        %3169 = vst [vmem:[%s2908] ss:$4 sm:$0xff] %v692
        %v3170 = vld.sshfl [vmem:[#allocation1] sm:$0xff pattern:$0x73625140]
        %v3171 = vld.sshfl [vmem:[#allocation1 + $0x20] sm:$0xff pattern:$0x73625140]
        %3172 = vst [vmem:[#allocation1] ss:$4 sm:$0xff] %v693
        %3173 = vst [vmem:[%s2896] ss:$4 sm:$0xff] %v694
        %3174 = vst [vmem:[%s2898] ss:$4 sm:$0xff] %v695
        %3175 = vst [vmem:[%s2900] ss:$4 sm:$0xff] %v696
        %3176 = vst [vmem:[%s2902] ss:$4 sm:$0xff] %v697
        %3177 = vst [vmem:[%s2904] ss:$4 sm:$0xff] %v698
        %3178 = vst [vmem:[%s2906] ss:$4 sm:$0xff] %v699
        %3179 = vst [vmem:[%s2908] ss:$4 sm:$0xff] %v700
        %v3180 = vld.sshfl [vmem:[#allocation1] sm:$0xff pattern:$0x73625140]
        %v3181 = vld.sshfl [vmem:[#allocation1 + $0x20] sm:$0xff pattern:$0x73625140]
        %3182 = vst [vmem:[#allocation1] ss:$4 sm:$0xff] %v701
        %3183 = vst [vmem:[%s2896] ss:$4 sm:$0xff] %v702
        %3184 = vst [vmem:[%s2898] ss:$4 sm:$0xff] %v703
        %3185 = vst [vmem:[%s2900] ss:$4 sm:$0xff] %v704
        %3186 = vst [vmem:[%s2902] ss:$4 sm:$0xff] %v705
        %3187 = vst [vmem:[%s2904] ss:$4 sm:$0xff] %v706
        %3188 = vst [vmem:[%s2906] ss:$4 sm:$0xff] %v707
        %3189 = vst [vmem:[%s2908] ss:$4 sm:$0xff] %v708
        %v3190 = vld.sshfl [vmem:[#allocation1] sm:$0xff pattern:$0x73625140]
        %v3191 = vld.sshfl [vmem:[#allocation1 + $0x20] sm:$0xff pattern:$0x73625140]
        %3192 = vst [vmem:[#allocation1] ss:$4 sm:$0xff] %v709
        %3193 = vst [vmem:[%s2896] ss:$4 sm:$0xff] %v710
        %3194 = vst [vmem:[%s2898] ss:$4 sm:$0xff] %v711
        %3195 = vst [vmem:[%s2900] ss:$4 sm:$0xff] %v712
        %3196 = vst [vmem:[%s2902] ss:$4 sm:$0xff] %v713
        %3197 = vst [vmem:[%s2904] ss:$4 sm:$0xff] %v714
        %3198 = vst [vmem:[%s2906] ss:$4 sm:$0xff] %v715
        %3199 = vst [vmem:[%s2908] ss:$4 sm:$0xff] %v716
        %v3200 = vld.sshfl [vmem:[#allocation1] sm:$0xff pattern:$0x73625140]
        %v3201 = vld.sshfl [vmem:[#allocation1 + $0x20] sm:$0xff pattern:$0x73625140]
        %3202 = vst [vmem:[#allocation1] ss:$4 sm:$0xff] %v701
        %3203 = vst [vmem:[%s2896] ss:$4 sm:$0xff] %v702
        %3204 = vst [vmem:[%s2898] ss:$4 sm:$0xff] %v703
        %3205 = vst [vmem:[%s2900] ss:$4 sm:$0xff] %v704
        %3206 = vst [vmem:[%s2902] ss:$4 sm:$0xff] %v705
        %3207 = vst [vmem:[%s2904] ss:$4 sm:$0xff] %v706
        %3208 = vst [vmem:[%s2906] ss:$4 sm:$0xff] %v707
        %3209 = vst [vmem:[%s2908] ss:$4 sm:$0xff] %v708
        %v3210 = vld.sshfl [vmem:[#allocation1] sm:$0xff pattern:$0x73625140]
        %v3211 = vld.sshfl [vmem:[#allocation1 + $0x20] sm:$0xff pattern:$0x73625140]
        %3212 = vst [vmem:[#allocation1] ss:$4 sm:$0xff] %v709
        %3213 = vst [vmem:[%s2896] ss:$4 sm:$0xff] %v710
        %3214 = vst [vmem:[%s2898] ss:$4 sm:$0xff] %v711
        %3215 = vst [vmem:[%s2900] ss:$4 sm:$0xff] %v712
        %3216 = vst [vmem:[%s2902] ss:$4 sm:$0xff] %v713
        %3217 = vst [vmem:[%s2904] ss:$4 sm:$0xff] %v714
        %3218 = vst [vmem:[%s2906] ss:$4 sm:$0xff] %v715
        %3219 = vst [vmem:[%s2908] ss:$4 sm:$0xff] %v716
        %v3220 = vld.sshfl [vmem:[#allocation1] sm:$0xff pattern:$0x73625140]
        %v3221 = vld.sshfl [vmem:[#allocation1 + $0x20] sm:$0xff pattern:$0x73625140]
        %v3223 = vsel %vm2123, %v2894, 0
        %v3225 = vsel %vm2123, %v2910, 0
        %v3227 = vsel %vm2123, %v2911, 0
        %v3229 = vsel %vm2123, %v2920, 0
        %v3231 = vsel %vm2123, %v2921, 0
        %v3233 = vsel %vm2123, %v2930, 0
        %v3235 = vsel %vm2123, %v2931, 0
        %v3237 = vsel %vm2123, %v2940, 0
        %v3239 = vsel %vm2123, %v2941, 0
        %v3241 = vsel %vm2123, %v2950, 0
        %v3243 = vsel %vm2123, %v2951, 0
        %v3245 = vsel %vm2123, %v2960, 0
        %v3247 = vsel %vm2123, %v2961, 0
        %v3249 = vsel %vm2123, %v2970, 0
        %v3251 = vsel %vm2123, %v2971, 0
        %v3253 = vsel %vm2123, %v2980, 0
        %v3255 = vsel %vm2123, %v2981, 0
        %v3257 = vsel %vm2123, %v2990, 0
        %v3259 = vsel %vm2123, %v2991, 0
        %v3261 = vsel %vm2123, %v3000, 0
        %v3263 = vsel %vm2123, %v3001, 0
        %v3265 = vsel %vm2123, %v3010, 0
        %v3267 = vsel %vm2123, %v3011, 0
        %v3269 = vsel %vm2123, %v3020, 0
        %v3271 = vsel %vm2123, %v3021, 0
        %v3273 = vsel %vm2123, %v3030, 0
        %v3275 = vsel %vm2123, %v3031, 0
        %v3277 = vsel %vm2123, %v3040, 0
        %v3279 = vsel %vm2123, %v3041, 0
        %v3281 = vsel %vm2123, %v3050, 0
        %v3283 = vsel %vm2123, %v3051, 0
        %v3285 = vsel %vm2123, %v3060, 0
        %v3287 = vsel %vm2123, %v3061, 0
        %v3289 = vsel %vm2123, %v3070, 0
        %v3291 = vsel %vm2123, %v3071, 0
        %v3293 = vsel %vm2123, %v3080, 0
        %v3295 = vsel %vm2123, %v3081, 0
        %v3297 = vsel %vm2123, %v3090, 0
        %v3299 = vsel %vm2123, %v3091, 0
        %v3301 = vsel %vm2123, %v3100, 0
        %v3303 = vsel %vm2123, %v3101, 0
        %v3305 = vsel %vm2123, %v3110, 0
        %v3307 = vsel %vm2123, %v3111, 0
        %v3309 = vsel %vm2123, %v3120, 0
        %v3311 = vsel %vm2123, %v3121, 0
        %v3313 = vsel %vm2123, %v3130, 0
        %v3315 = vsel %vm2123, %v3131, 0
        %v3317 = vsel %vm2123, %v3140, 0
        %v3319 = vsel %vm2123, %v3141, 0
        %v3321 = vsel %vm2123, %v3150, 0
        %v3323 = vsel %vm2123, %v3151, 0
        %v3325 = vsel %vm2123, %v3160, 0
        %v3327 = vsel %vm2123, %v3161, 0
        %v3329 = vsel %vm2123, %v3170, 0
        %v3331 = vsel %vm2123, %v3171, 0
        %v3333 = vsel %vm2123, %v3180, 0
        %v3335 = vsel %vm2123, %v3181, 0
        %v3337 = vsel %vm2123, %v3190, 0
        %v3339 = vsel %vm2123, %v3191, 0
        %v3341 = vsel %vm2123, %v3200, 0
        %v3343 = vsel %vm2123, %v3201, 0
        %v3345 = vsel %vm2123, %v3210, 0
        %v3347 = vsel %vm2123, %v3211, 0
        %v3349 = vsel %vm2123, %v3220, 0
        %v3351 = vsel %vm2123, %v3221, 0
        %3353 = vmatpush.xpose.msra.mxu0 %v3255
        %3354 = vmatpush.xpose.msra.mxu0 %v3253
        %3355 = vmatpush.xpose.msra.mxu0 %v3251
        %3356 = vmatpush.xpose.msra.mxu0 %v3249
        %3357 = vmatpush.xpose.msra.mxu0 %v3247
        %3358 = vmatpush.xpose.msra.mxu0 %v3245
        %3359 = vmatpush.xpose.msra.mxu0 %v3243
        %3360 = vmatpush.xpose.msra.mxu0 %v3241
        %3361 = vmatpush.xpose.msra.mxu0 %v3239
        %3362 = vmatpush.xpose.msra.mxu0 %v3237
        %3363 = vmatpush.xpose.msra.mxu0 %v3235
        %3364 = vmatpush.xpose.msra.mxu0 %v3233
        %3365 = vmatpush.xpose.msra.mxu0 %v3231
        %3366 = vmatpush.xpose.msra.mxu0 %v3229
        %3367 = vmatpush.xpose.msra.mxu0 %v3227
        %3368 = vmatpush.xpose.msra.mxu0 %v3225
        %3369 = vmatmul.f32.gmra.mxu0 %v3223
        %v3370 = vpop.f32.mrf.mxu0
        %v3371 = vadd.f32 0.0, %v3370
        %3372 = vdwg.mxu0
        %3373 = vmatpush.xpose.msra.mxu0 %v3287
        %3374 = vmatpush.xpose.msra.mxu0 %v3285
        %3375 = vmatpush.xpose.msra.mxu0 %v3283
        %3376 = vmatpush.xpose.msra.mxu0 %v3281
        %3377 = vmatpush.xpose.msra.mxu0 %v3279
        %3378 = vmatpush.xpose.msra.mxu0 %v3277
        %3379 = vmatpush.xpose.msra.mxu0 %v3275
        %3380 = vmatpush.xpose.msra.mxu0 %v3273
        %3381 = vmatpush.xpose.msra.mxu0 %v3271
        %3382 = vmatpush.xpose.msra.mxu0 %v3269
        %3383 = vmatpush.xpose.msra.mxu0 %v3267
        %3384 = vmatpush.xpose.msra.mxu0 %v3265
        %3385 = vmatpush.xpose.msra.mxu0 %v3263
        %3386 = vmatpush.xpose.msra.mxu0 %v3261
        %3387 = vmatpush.xpose.msra.mxu0 %v3259
        %3388 = vmatpush.xpose.msra.mxu0 %v3257
        %3389 = vmatmul.f32.gmra.mxu0 %v3223
        %v3390 = vpop.f32.mrf.mxu0
        %v3391 = vadd.f32 0.0, %v3390
        %3392 = vdwg.mxu0
        %3393 = vmatpush.xpose.msra.mxu0 %v3319
        %3394 = vmatpush.xpose.msra.mxu0 %v3317
        %3395 = vmatpush.xpose.msra.mxu0 %v3315
        %3396 = vmatpush.xpose.msra.mxu0 %v3313
        %3397 = vmatpush.xpose.msra.mxu0 %v3311
        %3398 = vmatpush.xpose.msra.mxu0 %v3309
        %3399 = vmatpush.xpose.msra.mxu0 %v3307
        %3400 = vmatpush.xpose.msra.mxu0 %v3305
        %3401 = vmatpush.xpose.msra.mxu0 %v3303
        %3402 = vmatpush.xpose.msra.mxu0 %v3301
        %3403 = vmatpush.xpose.msra.mxu0 %v3299
        %3404 = vmatpush.xpose.msra.mxu0 %v3297
        %3405 = vmatpush.xpose.msra.mxu0 %v3295
        %3406 = vmatpush.xpose.msra.mxu0 %v3293
        %3407 = vmatpush.xpose.msra.mxu0 %v3291
        %3408 = vmatpush.xpose.msra.mxu0 %v3289
        %3409 = vmatmul.f32.gmra.mxu0 %v3223
        %v3410 = vpop.f32.mrf.mxu0
        %v3411 = vadd.f32 0.0, %v3410
        %3412 = vdwg.mxu0
        %3413 = vmatpush.xpose.msra.mxu0 %v3351
        %3414 = vmatpush.xpose.msra.mxu0 %v3349
        %3415 = vmatpush.xpose.msra.mxu0 %v3347
        %3416 = vmatpush.xpose.msra.mxu0 %v3345
        %3417 = vmatpush.xpose.msra.mxu0 %v3343
        %3418 = vmatpush.xpose.msra.mxu0 %v3341
        %3419 = vmatpush.xpose.msra.mxu0 %v3339
        %3420 = vmatpush.xpose.msra.mxu0 %v3337
        %3421 = vmatpush.xpose.msra.mxu0 %v3335
        %3422 = vmatpush.xpose.msra.mxu0 %v3333
        %3423 = vmatpush.xpose.msra.mxu0 %v3331
        %3424 = vmatpush.xpose.msra.mxu0 %v3329
        %3425 = vmatpush.xpose.msra.mxu0 %v3327
        %3426 = vmatpush.xpose.msra.mxu0 %v3325
        %3427 = vmatpush.xpose.msra.mxu0 %v3323
        %3428 = vmatpush.xpose.msra.mxu0 %v3321
        %3429 = vmatmul.f32.gmra.mxu0 %v3223
        %v3430 = vpop.f32.mrf.mxu0
        %v3431 = vadd.f32 0.0, %v3430
        %3432 = vdwg.mxu0
        %v3433 = vadd.f32 %v2889, %v3371
        %v3434 = vadd.f32 %v2890, %v3391
        %v3435 = vadd.f32 %v2891, %v3411
        %v3436 = vadd.f32 %v2892, %v3431
        %s3437 = scalar_lea.vmem %s3, 40
        %v3438 = vld [vmem:[%s3437] sm:$0xff]
        %v3440 = vsel %vm2123, %v3438, 0
        %v3442 = vsel %vm2123, %v1745, 0
        %v3444 = vsel %vm2123, %v1747, 0
        %v3446 = vsel %vm2123, %v1749, 0
        %v3449 = vsel %vm2123, %v1791, 0
        %3451 = vmatpush.xpose.msra.mxu0 %v2610
        %3452 = vmatpush.xpose.msra.mxu0 %v2607
        %3453 = vmatpush.xpose.msra.mxu0 %v2605
        %3454 = vmatpush.xpose.msra.mxu0 %v2603
        %3455 = vmatpush.xpose.msra.mxu0 %v2601
        %3456 = vmatpush.xpose.msra.mxu0 %v2598
        %3457 = vmatpush.xpose.msra.mxu0 %v2596
        %3458 = vmatpush.xpose.msra.mxu0 %v2594
        %3459 = vmatpush.xpose.msra.mxu0 %v2592
        %3460 = vmatpush.xpose.msra.mxu0 %v2589
        %3461 = vmatpush.xpose.msra.mxu0 %v2587
        %3462 = vmatpush.xpose.msra.mxu0 %v2585
        %3463 = vmatpush.xpose.msra.mxu0 %v2583
        %3464 = vmatpush.xpose.msra.mxu0 %v2580
        %3465 = vmatpush.xpose.msra.mxu0 %v2578
        %3466 = vmatpush.xpose.msra.mxu0 %v2576
        %3467 = vmatmul.f32.gmra.mxu0 %v3440
        %v3468 = vpop.f32.mrf.mxu0
        %v3469 = vadd.f32 0.0, %v3468
        %3470 = vdwg.mxu0
        %3471 = vmatpush.xpose.msra.mxu0 %v2646
        %3472 = vmatpush.xpose.msra.mxu0 %v2643
        %3473 = vmatpush.xpose.msra.mxu0 %v2641
        %3474 = vmatpush.xpose.msra.mxu0 %v2639
        %3475 = vmatpush.xpose.msra.mxu0 %v2637
        %3476 = vmatpush.xpose.msra.mxu0 %v2634
        %3477 = vmatpush.xpose.msra.mxu0 %v2632
        %3478 = vmatpush.xpose.msra.mxu0 %v2630
        %3479 = vmatpush.xpose.msra.mxu0 %v2628
        %3480 = vmatpush.xpose.msra.mxu0 %v2625
        %3481 = vmatpush.xpose.msra.mxu0 %v2623
        %3482 = vmatpush.xpose.msra.mxu0 %v2621
        %3483 = vmatpush.xpose.msra.mxu0 %v2619
        %3484 = vmatpush.xpose.msra.mxu0 %v2616
        %3485 = vmatpush.xpose.msra.mxu0 %v2614
        %3486 = vmatpush.xpose.msra.mxu0 %v2612
        %3487 = vmatmul.f32.gmra.mxu0 %v3440
        %v3488 = vpop.f32.mrf.mxu0
        %v3489 = vadd.f32 0.0, %v3488
        %3490 = vdwg.mxu0
        %3491 = vmatpush.xpose.msra.mxu0 %v2682
        %3492 = vmatpush.xpose.msra.mxu0 %v2679
        %3493 = vmatpush.xpose.msra.mxu0 %v2677
        %3494 = vmatpush.xpose.msra.mxu0 %v2675
        %3495 = vmatpush.xpose.msra.mxu0 %v2673
        %3496 = vmatpush.xpose.msra.mxu0 %v2670
        %3497 = vmatpush.xpose.msra.mxu0 %v2668
        %3498 = vmatpush.xpose.msra.mxu0 %v2666
        %3499 = vmatpush.xpose.msra.mxu0 %v2664
        %3500 = vmatpush.xpose.msra.mxu0 %v2661
        %3501 = vmatpush.xpose.msra.mxu0 %v2659
        %3502 = vmatpush.xpose.msra.mxu0 %v2657
        %3503 = vmatpush.xpose.msra.mxu0 %v2655
        %3504 = vmatpush.xpose.msra.mxu0 %v2652
        %3505 = vmatpush.xpose.msra.mxu0 %v2650
        %3506 = vmatpush.xpose.msra.mxu0 %v2648
        %3507 = vmatmul.f32.gmra.mxu0 %v3440
        %v3508 = vpop.f32.mrf.mxu0
        %v3509 = vadd.f32 0.0, %v3508
        %3510 = vdwg.mxu0
        %3511 = vmatpush.xpose.msra.mxu0 %v3449
        %3512 = vmatpush.xpose.msra.mxu0 %v3446
        %3513 = vmatpush.xpose.msra.mxu0 %v3444
        %3514 = vmatpush.xpose.msra.mxu0 %v3442
        %3515 = vmatpush.xpose.msra.mxu0 %v2709
        %3516 = vmatpush.xpose.msra.mxu0 %v2706
        %3517 = vmatpush.xpose.msra.mxu0 %v2704
        %3518 = vmatpush.xpose.msra.mxu0 %v2702
        %3519 = vmatpush.xpose.msra.mxu0 %v2700
        %3520 = vmatpush.xpose.msra.mxu0 %v2697
        %3521 = vmatpush.xpose.msra.mxu0 %v2695
        %3522 = vmatpush.xpose.msra.mxu0 %v2693
        %3523 = vmatpush.xpose.msra.mxu0 %v2691
        %3524 = vmatpush.xpose.msra.mxu0 %v2688
        %3525 = vmatpush.xpose.msra.mxu0 %v2686
        %3526 = vmatpush.xpose.msra.mxu0 %v2684
        %3527 = vmatmul.f32.gmra.mxu0 %v3440
        %v3528 = vpop.f32.mrf.mxu0
        %v3529 = vadd.f32 0.0, %v3528
        %3530 = vdwg.mxu0
        %v3531 = vadd.f32 %v3433, %v3469
        %v3532 = vadd.f32 %v3434, %v3489
        %v3533 = vadd.f32 %v3435, %v3509
        %v3534 = vadd.f32 %v3436, %v3529
        %s3535 = scalar_lea.vmem %s3, 48
        %v3536 = vld [vmem:[%s3535] sm:$0xff]
        %v3538 = vsel %vm2123, %v3536, 0
        %v3541 = vsel %vm2123, %v1262, 0
        %v3543 = vsel %vm2123, %v1222, 0
        %v3545 = vsel %vm2123, %v1224, 0
        %v3547 = vsel %vm2123, %v1226, 0
        %3549 = vmatpush.xpose.msra.mxu0 %v2390
        %3550 = vmatpush.xpose.msra.mxu0 %v2388
        %3551 = vmatpush.xpose.msra.mxu0 %v2386
        %3552 = vmatpush.xpose.msra.mxu0 %v2384
        %3553 = vmatpush.xpose.msra.mxu0 %v2381
        %3554 = vmatpush.xpose.msra.mxu0 %v2379
        %3555 = vmatpush.xpose.msra.mxu0 %v2377
        %3556 = vmatpush.xpose.msra.mxu0 %v2375
        %3557 = vmatpush.xpose.msra.mxu0 %v2372
        %3558 = vmatpush.xpose.msra.mxu0 %v2370
        %3559 = vmatpush.xpose.msra.mxu0 %v2368
        %3560 = vmatpush.xpose.msra.mxu0 %v2366
        %3561 = vmatpush.xpose.msra.mxu0 %v2363
        %3562 = vmatpush.xpose.msra.mxu0 %v2361
        %3563 = vmatpush.xpose.msra.mxu0 %v2359
        %3564 = vmatpush.xpose.msra.mxu0 %v2357
        %3565 = vmatmul.f32.gmra.mxu0 %v3538
        %v3566 = vpop.f32.mrf.mxu0
        %v3567 = vadd.f32 0.0, %v3566
        %3568 = vdwg.mxu0
        %3569 = vmatpush.xpose.msra.mxu0 %v2426
        %3570 = vmatpush.xpose.msra.mxu0 %v2424
        %3571 = vmatpush.xpose.msra.mxu0 %v2422
        %3572 = vmatpush.xpose.msra.mxu0 %v2420
        %3573 = vmatpush.xpose.msra.mxu0 %v2417
        %3574 = vmatpush.xpose.msra.mxu0 %v2415
        %3575 = vmatpush.xpose.msra.mxu0 %v2413
        %3576 = vmatpush.xpose.msra.mxu0 %v2411
        %3577 = vmatpush.xpose.msra.mxu0 %v2408
        %3578 = vmatpush.xpose.msra.mxu0 %v2406
        %3579 = vmatpush.xpose.msra.mxu0 %v2404
        %3580 = vmatpush.xpose.msra.mxu0 %v2402
        %3581 = vmatpush.xpose.msra.mxu0 %v2399
        %3582 = vmatpush.xpose.msra.mxu0 %v2397
        %3583 = vmatpush.xpose.msra.mxu0 %v2395
        %3584 = vmatpush.xpose.msra.mxu0 %v2393
        %3585 = vmatmul.f32.gmra.mxu0 %v3538
        %v3586 = vpop.f32.mrf.mxu0
        %v3587 = vadd.f32 0.0, %v3586
        %3588 = vdwg.mxu0
        %3589 = vmatpush.xpose.msra.mxu0 %v2462
        %3590 = vmatpush.xpose.msra.mxu0 %v2460
        %3591 = vmatpush.xpose.msra.mxu0 %v2458
        %3592 = vmatpush.xpose.msra.mxu0 %v2456
        %3593 = vmatpush.xpose.msra.mxu0 %v2453
        %3594 = vmatpush.xpose.msra.mxu0 %v2451
        %3595 = vmatpush.xpose.msra.mxu0 %v2449
        %3596 = vmatpush.xpose.msra.mxu0 %v2447
        %3597 = vmatpush.xpose.msra.mxu0 %v2444
        %3598 = vmatpush.xpose.msra.mxu0 %v2442
        %3599 = vmatpush.xpose.msra.mxu0 %v2440
        %3600 = vmatpush.xpose.msra.mxu0 %v2438
        %3601 = vmatpush.xpose.msra.mxu0 %v2435
        %3602 = vmatpush.xpose.msra.mxu0 %v2433
        %3603 = vmatpush.xpose.msra.mxu0 %v2431
        %3604 = vmatpush.xpose.msra.mxu0 %v2429
        %3605 = vmatmul.f32.gmra.mxu0 %v3538
        %v3606 = vpop.f32.mrf.mxu0
        %v3607 = vadd.f32 0.0, %v3606
        %3608 = vdwg.mxu0
        %3609 = vmatpush.xpose.msra.mxu0 %v3547
        %3610 = vmatpush.xpose.msra.mxu0 %v3545
        %3611 = vmatpush.xpose.msra.mxu0 %v3543
        %3612 = vmatpush.xpose.msra.mxu0 %v3541
        %3613 = vmatpush.xpose.msra.mxu0 %v2807
        %3614 = vmatpush.xpose.msra.mxu0 %v2805
        %3615 = vmatpush.xpose.msra.mxu0 %v2803
        %3616 = vmatpush.xpose.msra.mxu0 %v2801
        %3617 = vmatpush.xpose.msra.mxu0 %v2480
        %3618 = vmatpush.xpose.msra.mxu0 %v2478
        %3619 = vmatpush.xpose.msra.mxu0 %v2476
        %3620 = vmatpush.xpose.msra.mxu0 %v2474
        %3621 = vmatpush.xpose.msra.mxu0 %v2471
        %3622 = vmatpush.xpose.msra.mxu0 %v2469
        %3623 = vmatpush.xpose.msra.mxu0 %v2467
        %3624 = vmatpush.xpose.msra.mxu0 %v2465
        %3625 = vmatmul.f32.gmra.mxu0 %v3538
        %v3626 = vpop.f32.mrf.mxu0
        %v3627 = vadd.f32 0.0, %v3626
        %3628 = vdwg.mxu0
        %v3629 = vadd.f32 %v3531, %v3567
        %v3630 = vadd.f32 %v3532, %v3587
        %v3631 = vadd.f32 %v3533, %v3607
        %v3632 = vadd.f32 %v3534, %v3627
        %s3633 = scalar_lea.vmem %s3, 56
        %v3634 = vld [vmem:[%s3633] sm:$0xff]
        %3635 = vst [vmem:[#allocation1] ss:$4 sm:$0xff] %v589
        %s3636 = scalar_lea.vmem [#allocation1], 1
        %3637 = vst [vmem:[%s3636] ss:$4 sm:$0xff] %v590
        %s3638 = scalar_lea.vmem [#allocation1], 2
        %3639 = vst [vmem:[%s3638] ss:$4 sm:$0xff] %v591
        %s3640 = scalar_lea.vmem [#allocation1], 3
        %3641 = vst [vmem:[%s3640] ss:$4 sm:$0xff] %v592
        %s3642 = scalar_lea.vmem [#allocation1], 32
        %3643 = vst [vmem:[%s3642] ss:$4 sm:$0xff] %v593
        %s3644 = scalar_lea.vmem [#allocation1], 33
        %3645 = vst [vmem:[%s3644] ss:$4 sm:$0xff] %v594
        %s3646 = scalar_lea.vmem [#allocation1], 34
        %3647 = vst [vmem:[%s3646] ss:$4 sm:$0xff] %v595
        %s3648 = scalar_lea.vmem [#allocation1], 35
        %3649 = vst [vmem:[%s3648] ss:$4 sm:$0xff] %v596
        %v3650 = vld.sshfl [vmem:[#allocation1] sm:$0xff pattern:$0x73625140]
        %v3651 = vld.sshfl [vmem:[#allocation1 + $0x20] sm:$0xff pattern:$0x73625140]
        %3652 = vst [vmem:[#allocation1] ss:$4 sm:$0xff] %v597
        %3653 = vst [vmem:[%s3636] ss:$4 sm:$0xff] %v598
        %3654 = vst [vmem:[%s3638] ss:$4 sm:$0xff] %v599
        %3655 = vst [vmem:[%s3640] ss:$4 sm:$0xff] %v600
        %3656 = vst [vmem:[%s3642] ss:$4 sm:$0xff] %v601
        %3657 = vst [vmem:[%s3644] ss:$4 sm:$0xff] %v602
        %3658 = vst [vmem:[%s3646] ss:$4 sm:$0xff] %v603
        %3659 = vst [vmem:[%s3648] ss:$4 sm:$0xff] %v604
        %v3660 = vld.sshfl [vmem:[#allocation1] sm:$0xff pattern:$0x73625140]
        %v3661 = vld.sshfl [vmem:[#allocation1 + $0x20] sm:$0xff pattern:$0x73625140]
        %3662 = vst [vmem:[#allocation1] ss:$4 sm:$0xff] %v605
        %3663 = vst [vmem:[%s3636] ss:$4 sm:$0xff] %v606
        %3664 = vst [vmem:[%s3638] ss:$4 sm:$0xff] %v607
        %3665 = vst [vmem:[%s3640] ss:$4 sm:$0xff] %v608
        %3666 = vst [vmem:[%s3642] ss:$4 sm:$0xff] %v609
        %3667 = vst [vmem:[%s3644] ss:$4 sm:$0xff] %v610
        %3668 = vst [vmem:[%s3646] ss:$4 sm:$0xff] %v611
        %3669 = vst [vmem:[%s3648] ss:$4 sm:$0xff] %v612
        %v3670 = vld.sshfl [vmem:[#allocation1] sm:$0xff pattern:$0x73625140]
        %v3671 = vld.sshfl [vmem:[#allocation1 + $0x20] sm:$0xff pattern:$0x73625140]
        %3672 = vst [vmem:[#allocation1] ss:$4 sm:$0xff] %v613
        %3673 = vst [vmem:[%s3636] ss:$4 sm:$0xff] %v614
        %3674 = vst [vmem:[%s3638] ss:$4 sm:$0xff] %v615
        %3675 = vst [vmem:[%s3640] ss:$4 sm:$0xff] %v616
        %3676 = vst [vmem:[%s3642] ss:$4 sm:$0xff] %v617
        %3677 = vst [vmem:[%s3644] ss:$4 sm:$0xff] %v618
        %3678 = vst [vmem:[%s3646] ss:$4 sm:$0xff] %v619
        %3679 = vst [vmem:[%s3648] ss:$4 sm:$0xff] %v620
        %v3680 = vld.sshfl [vmem:[#allocation1] sm:$0xff pattern:$0x73625140]
        %v3681 = vld.sshfl [vmem:[#allocation1 + $0x20] sm:$0xff pattern:$0x73625140]
        %3682 = vst [vmem:[#allocation1] ss:$4 sm:$0xff] %v605
        %3683 = vst [vmem:[%s3636] ss:$4 sm:$0xff] %v606
        %3684 = vst [vmem:[%s3638] ss:$4 sm:$0xff] %v607
        %3685 = vst [vmem:[%s3640] ss:$4 sm:$0xff] %v608
        %3686 = vst [vmem:[%s3642] ss:$4 sm:$0xff] %v609
        %3687 = vst [vmem:[%s3644] ss:$4 sm:$0xff] %v610
        %3688 = vst [vmem:[%s3646] ss:$4 sm:$0xff] %v611
        %3689 = vst [vmem:[%s3648] ss:$4 sm:$0xff] %v612
        %v3690 = vld.sshfl [vmem:[#allocation1] sm:$0xff pattern:$0x73625140]
        %v3691 = vld.sshfl [vmem:[#allocation1 + $0x20] sm:$0xff pattern:$0x73625140]
        %3692 = vst [vmem:[#allocation1] ss:$4 sm:$0xff] %v613
        %3693 = vst [vmem:[%s3636] ss:$4 sm:$0xff] %v614
        %3694 = vst [vmem:[%s3638] ss:$4 sm:$0xff] %v615
        %3695 = vst [vmem:[%s3640] ss:$4 sm:$0xff] %v616
        %3696 = vst [vmem:[%s3642] ss:$4 sm:$0xff] %v617
        %3697 = vst [vmem:[%s3644] ss:$4 sm:$0xff] %v618
        %3698 = vst [vmem:[%s3646] ss:$4 sm:$0xff] %v619
        %3699 = vst [vmem:[%s3648] ss:$4 sm:$0xff] %v620
        %v3700 = vld.sshfl [vmem:[#allocation1] sm:$0xff pattern:$0x73625140]
        %v3701 = vld.sshfl [vmem:[#allocation1 + $0x20] sm:$0xff pattern:$0x73625140]
        %3702 = vst [vmem:[#allocation1] ss:$4 sm:$0xff] %v621
        %3703 = vst [vmem:[%s3636] ss:$4 sm:$0xff] %v622
        %3704 = vst [vmem:[%s3638] ss:$4 sm:$0xff] %v623
        %3705 = vst [vmem:[%s3640] ss:$4 sm:$0xff] %v624
        %3706 = vst [vmem:[%s3642] ss:$4 sm:$0xff] %v625
        %3707 = vst [vmem:[%s3644] ss:$4 sm:$0xff] %v626
        %3708 = vst [vmem:[%s3646] ss:$4 sm:$0xff] %v627
        %3709 = vst [vmem:[%s3648] ss:$4 sm:$0xff] %v628
        %v3710 = vld.sshfl [vmem:[#allocation1] sm:$0xff pattern:$0x73625140]
        %v3711 = vld.sshfl [vmem:[#allocation1 + $0x20] sm:$0xff pattern:$0x73625140]
        %3712 = vst [vmem:[#allocation1] ss:$4 sm:$0xff] %v629
        %3713 = vst [vmem:[%s3636] ss:$4 sm:$0xff] %v630
        %3714 = vst [vmem:[%s3638] ss:$4 sm:$0xff] %v631
        %3715 = vst [vmem:[%s3640] ss:$4 sm:$0xff] %v632
        %3716 = vst [vmem:[%s3642] ss:$4 sm:$0xff] %v633
        %3717 = vst [vmem:[%s3644] ss:$4 sm:$0xff] %v634
        %3718 = vst [vmem:[%s3646] ss:$4 sm:$0xff] %v635
        %3719 = vst [vmem:[%s3648] ss:$4 sm:$0xff] %v636
        %v3720 = vld.sshfl [vmem:[#allocation1] sm:$0xff pattern:$0x73625140]
        %v3721 = vld.sshfl [vmem:[#allocation1 + $0x20] sm:$0xff pattern:$0x73625140]
        %3722 = vst [vmem:[#allocation1] ss:$4 sm:$0xff] %v621
        %3723 = vst [vmem:[%s3636] ss:$4 sm:$0xff] %v622
        %3724 = vst [vmem:[%s3638] ss:$4 sm:$0xff] %v623
        %3725 = vst [vmem:[%s3640] ss:$4 sm:$0xff] %v624
        %3726 = vst [vmem:[%s3642] ss:$4 sm:$0xff] %v625
        %3727 = vst [vmem:[%s3644] ss:$4 sm:$0xff] %v626
        %3728 = vst [vmem:[%s3646] ss:$4 sm:$0xff] %v627
        %3729 = vst [vmem:[%s3648] ss:$4 sm:$0xff] %v628
        %v3730 = vld.sshfl [vmem:[#allocation1] sm:$0xff pattern:$0x73625140]
        %v3731 = vld.sshfl [vmem:[#allocation1 + $0x20] sm:$0xff pattern:$0x73625140]
        %3732 = vst [vmem:[#allocation1] ss:$4 sm:$0xff] %v629
        %3733 = vst [vmem:[%s3636] ss:$4 sm:$0xff] %v630
        %3734 = vst [vmem:[%s3638] ss:$4 sm:$0xff] %v631
        %3735 = vst [vmem:[%s3640] ss:$4 sm:$0xff] %v632
        %3736 = vst [vmem:[%s3642] ss:$4 sm:$0xff] %v633
        %3737 = vst [vmem:[%s3644] ss:$4 sm:$0xff] %v634
        %3738 = vst [vmem:[%s3646] ss:$4 sm:$0xff] %v635
        %3739 = vst [vmem:[%s3648] ss:$4 sm:$0xff] %v636
        %v3740 = vld.sshfl [vmem:[#allocation1] sm:$0xff pattern:$0x73625140]
        %v3741 = vld.sshfl [vmem:[#allocation1 + $0x20] sm:$0xff pattern:$0x73625140]
        %3742 = vst [vmem:[#allocation1] ss:$4 sm:$0xff] %v637
        %3743 = vst [vmem:[%s3636] ss:$4 sm:$0xff] %v638
        %3744 = vst [vmem:[%s3638] ss:$4 sm:$0xff] %v639
        %3745 = vst [vmem:[%s3640] ss:$4 sm:$0xff] %v640
        %3746 = vst [vmem:[%s3642] ss:$4 sm:$0xff] %v641
        %3747 = vst [vmem:[%s3644] ss:$4 sm:$0xff] %v642
        %3748 = vst [vmem:[%s3646] ss:$4 sm:$0xff] %v643
        %3749 = vst [vmem:[%s3648] ss:$4 sm:$0xff] %v644
        %v3750 = vld.sshfl [vmem:[#allocation1] sm:$0xff pattern:$0x73625140]
        %v3751 = vld.sshfl [vmem:[#allocation1 + $0x20] sm:$0xff pattern:$0x73625140]
        %3752 = vst [vmem:[#allocation1] ss:$4 sm:$0xff] %v645
        %3753 = vst [vmem:[%s3636] ss:$4 sm:$0xff] %v646
        %3754 = vst [vmem:[%s3638] ss:$4 sm:$0xff] %v647
        %3755 = vst [vmem:[%s3640] ss:$4 sm:$0xff] %v648
        %3756 = vst [vmem:[%s3642] ss:$4 sm:$0xff] %v649
        %3757 = vst [vmem:[%s3644] ss:$4 sm:$0xff] %v650
        %3758 = vst [vmem:[%s3646] ss:$4 sm:$0xff] %v651
        %3759 = vst [vmem:[%s3648] ss:$4 sm:$0xff] %v652
        %v3760 = vld.sshfl [vmem:[#allocation1] sm:$0xff pattern:$0x73625140]
        %v3761 = vld.sshfl [vmem:[#allocation1 + $0x20] sm:$0xff pattern:$0x73625140]
        %3762 = vst [vmem:[#allocation1] ss:$4 sm:$0xff] %v637
        %3763 = vst [vmem:[%s3636] ss:$4 sm:$0xff] %v638
        %3764 = vst [vmem:[%s3638] ss:$4 sm:$0xff] %v639
        %3765 = vst [vmem:[%s3640] ss:$4 sm:$0xff] %v640
        %3766 = vst [vmem:[%s3642] ss:$4 sm:$0xff] %v641
        %3767 = vst [vmem:[%s3644] ss:$4 sm:$0xff] %v642
        %3768 = vst [vmem:[%s3646] ss:$4 sm:$0xff] %v643
        %3769 = vst [vmem:[%s3648] ss:$4 sm:$0xff] %v644
        %v3770 = vld.sshfl [vmem:[#allocation1] sm:$0xff pattern:$0x73625140]
        %v3771 = vld.sshfl [vmem:[#allocation1 + $0x20] sm:$0xff pattern:$0x73625140]
        %3772 = vst [vmem:[#allocation1] ss:$4 sm:$0xff] %v645
        %3773 = vst [vmem:[%s3636] ss:$4 sm:$0xff] %v646
        %3774 = vst [vmem:[%s3638] ss:$4 sm:$0xff] %v647
        %3775 = vst [vmem:[%s3640] ss:$4 sm:$0xff] %v648
        %3776 = vst [vmem:[%s3642] ss:$4 sm:$0xff] %v649
        %3777 = vst [vmem:[%s3644] ss:$4 sm:$0xff] %v650
        %3778 = vst [vmem:[%s3646] ss:$4 sm:$0xff] %v651
        %3779 = vst [vmem:[%s3648] ss:$4 sm:$0xff] %v652
        %v3780 = vld.sshfl [vmem:[#allocation1] sm:$0xff pattern:$0x73625140]
        %v3781 = vld.sshfl [vmem:[#allocation1 + $0x20] sm:$0xff pattern:$0x73625140]
        %3782 = vst [vmem:[#allocation1] ss:$4 sm:$0xff] %v653
        %3783 = vst [vmem:[%s3636] ss:$4 sm:$0xff] %v654
        %3784 = vst [vmem:[%s3638] ss:$4 sm:$0xff] %v655
        %3785 = vst [vmem:[%s3640] ss:$4 sm:$0xff] %v656
        %3786 = vst [vmem:[%s3642] ss:$4 sm:$0xff] %v657
        %3787 = vst [vmem:[%s3644] ss:$4 sm:$0xff] %v658
        %3788 = vst [vmem:[%s3646] ss:$4 sm:$0xff] %v659
        %3789 = vst [vmem:[%s3648] ss:$4 sm:$0xff] %v660
        %v3790 = vld.sshfl [vmem:[#allocation1] sm:$0xff pattern:$0x73625140]
        %v3791 = vld.sshfl [vmem:[#allocation1 + $0x20] sm:$0xff pattern:$0x73625140]
        %3792 = vst [vmem:[#allocation1] ss:$4 sm:$0xff] %v661
        %3793 = vst [vmem:[%s3636] ss:$4 sm:$0xff] %v662
        %3794 = vst [vmem:[%s3638] ss:$4 sm:$0xff] %v663
        %3795 = vst [vmem:[%s3640] ss:$4 sm:$0xff] %v664
        %3796 = vst [vmem:[%s3642] ss:$4 sm:$0xff] %v665
        %3797 = vst [vmem:[%s3644] ss:$4 sm:$0xff] %v666
        %3798 = vst [vmem:[%s3646] ss:$4 sm:$0xff] %v667
        %3799 = vst [vmem:[%s3648] ss:$4 sm:$0xff] %v668
        %v3800 = vld.sshfl [vmem:[#allocation1] sm:$0xff pattern:$0x73625140]
        %v3801 = vld.sshfl [vmem:[#allocation1 + $0x20] sm:$0xff pattern:$0x73625140]
        %3802 = vst [vmem:[#allocation1] ss:$4 sm:$0xff] %v653
        %3803 = vst [vmem:[%s3636] ss:$4 sm:$0xff] %v654
        %3804 = vst [vmem:[%s3638] ss:$4 sm:$0xff] %v655
        %3805 = vst [vmem:[%s3640] ss:$4 sm:$0xff] %v656
        %3806 = vst [vmem:[%s3642] ss:$4 sm:$0xff] %v657
        %3807 = vst [vmem:[%s3644] ss:$4 sm:$0xff] %v658
        %3808 = vst [vmem:[%s3646] ss:$4 sm:$0xff] %v659
        %3809 = vst [vmem:[%s3648] ss:$4 sm:$0xff] %v660
        %v3810 = vld.sshfl [vmem:[#allocation1] sm:$0xff pattern:$0x73625140]
        %v3811 = vld.sshfl [vmem:[#allocation1 + $0x20] sm:$0xff pattern:$0x73625140]
        %3812 = vst [vmem:[#allocation1] ss:$4 sm:$0xff] %v661
        %3813 = vst [vmem:[%s3636] ss:$4 sm:$0xff] %v662
        %3814 = vst [vmem:[%s3638] ss:$4 sm:$0xff] %v663
        %3815 = vst [vmem:[%s3640] ss:$4 sm:$0xff] %v664
        %3816 = vst [vmem:[%s3642] ss:$4 sm:$0xff] %v665
        %3817 = vst [vmem:[%s3644] ss:$4 sm:$0xff] %v666
        %3818 = vst [vmem:[%s3646] ss:$4 sm:$0xff] %v667
        %3819 = vst [vmem:[%s3648] ss:$4 sm:$0xff] %v668
        %v3820 = vld.sshfl [vmem:[#allocation1] sm:$0xff pattern:$0x73625140]
        %v3821 = vld.sshfl [vmem:[#allocation1 + $0x20] sm:$0xff pattern:$0x73625140]
        %3822 = vst [vmem:[#allocation1] ss:$4 sm:$0xff] %v669
        %3823 = vst [vmem:[%s3636] ss:$4 sm:$0xff] %v670
        %3824 = vst [vmem:[%s3638] ss:$4 sm:$0xff] %v671
        %3825 = vst [vmem:[%s3640] ss:$4 sm:$0xff] %v672
        %3826 = vst [vmem:[%s3642] ss:$4 sm:$0xff] %v673
        %3827 = vst [vmem:[%s3644] ss:$4 sm:$0xff] %v674
        %3828 = vst [vmem:[%s3646] ss:$4 sm:$0xff] %v675
        %3829 = vst [vmem:[%s3648] ss:$4 sm:$0xff] %v676
        %v3830 = vld.sshfl [vmem:[#allocation1] sm:$0xff pattern:$0x73625140]
        %v3831 = vld.sshfl [vmem:[#allocation1 + $0x20] sm:$0xff pattern:$0x73625140]
        %3832 = vst [vmem:[#allocation1] ss:$4 sm:$0xff] %v677
        %3833 = vst [vmem:[%s3636] ss:$4 sm:$0xff] %v678
        %3834 = vst [vmem:[%s3638] ss:$4 sm:$0xff] %v679
        %3835 = vst [vmem:[%s3640] ss:$4 sm:$0xff] %v680
        %3836 = vst [vmem:[%s3642] ss:$4 sm:$0xff] %v681
        %3837 = vst [vmem:[%s3644] ss:$4 sm:$0xff] %v682
        %3838 = vst [vmem:[%s3646] ss:$4 sm:$0xff] %v683
        %3839 = vst [vmem:[%s3648] ss:$4 sm:$0xff] %v684
        %v3840 = vld.sshfl [vmem:[#allocation1] sm:$0xff pattern:$0x73625140]
        %v3841 = vld.sshfl [vmem:[#allocation1 + $0x20] sm:$0xff pattern:$0x73625140]
        %3842 = vst [vmem:[#allocation1] ss:$4 sm:$0xff] %v669
        %3843 = vst [vmem:[%s3636] ss:$4 sm:$0xff] %v670
        %3844 = vst [vmem:[%s3638] ss:$4 sm:$0xff] %v671
        %3845 = vst [vmem:[%s3640] ss:$4 sm:$0xff] %v672
        %3846 = vst [vmem:[%s3642] ss:$4 sm:$0xff] %v673
        %3847 = vst [vmem:[%s3644] ss:$4 sm:$0xff] %v674
        %3848 = vst [vmem:[%s3646] ss:$4 sm:$0xff] %v675
        %3849 = vst [vmem:[%s3648] ss:$4 sm:$0xff] %v676
        %v3850 = vld.sshfl [vmem:[#allocation1] sm:$0xff pattern:$0x73625140]
        %v3851 = vld.sshfl [vmem:[#allocation1 + $0x20] sm:$0xff pattern:$0x73625140]
        %3852 = vst [vmem:[#allocation1] ss:$4 sm:$0xff] %v677
        %3853 = vst [vmem:[%s3636] ss:$4 sm:$0xff] %v678
        %3854 = vst [vmem:[%s3638] ss:$4 sm:$0xff] %v679
        %3855 = vst [vmem:[%s3640] ss:$4 sm:$0xff] %v680
        %3856 = vst [vmem:[%s3642] ss:$4 sm:$0xff] %v681
        %3857 = vst [vmem:[%s3644] ss:$4 sm:$0xff] %v682
        %3858 = vst [vmem:[%s3646] ss:$4 sm:$0xff] %v683
        %3859 = vst [vmem:[%s3648] ss:$4 sm:$0xff] %v684
        %v3860 = vld.sshfl [vmem:[#allocation1] sm:$0xff pattern:$0x73625140]
        %v3861 = vld.sshfl [vmem:[#allocation1 + $0x20] sm:$0xff pattern:$0x73625140]
        %3862 = vst [vmem:[#allocation1] ss:$4 sm:$0xff] %v685
        %3863 = vst [vmem:[%s3636] ss:$4 sm:$0xff] %v686
        %3864 = vst [vmem:[%s3638] ss:$4 sm:$0xff] %v687
        %3865 = vst [vmem:[%s3640] ss:$4 sm:$0xff] %v688
        %3866 = vst [vmem:[%s3642] ss:$4 sm:$0xff] %v689
        %3867 = vst [vmem:[%s3644] ss:$4 sm:$0xff] %v690
        %3868 = vst [vmem:[%s3646] ss:$4 sm:$0xff] %v691
        %3869 = vst [vmem:[%s3648] ss:$4 sm:$0xff] %v692
        %v3870 = vld.sshfl [vmem:[#allocation1] sm:$0xff pattern:$0x73625140]
        %v3871 = vld.sshfl [vmem:[#allocation1 + $0x20] sm:$0xff pattern:$0x73625140]
        %3872 = vst [vmem:[#allocation1] ss:$4 sm:$0xff] %v693
        %3873 = vst [vmem:[%s3636] ss:$4 sm:$0xff] %v694
        %3874 = vst [vmem:[%s3638] ss:$4 sm:$0xff] %v695
        %3875 = vst [vmem:[%s3640] ss:$4 sm:$0xff] %v696
        %3876 = vst [vmem:[%s3642] ss:$4 sm:$0xff] %v697
        %3877 = vst [vmem:[%s3644] ss:$4 sm:$0xff] %v698
        %3878 = vst [vmem:[%s3646] ss:$4 sm:$0xff] %v699
        %3879 = vst [vmem:[%s3648] ss:$4 sm:$0xff] %v700
        %v3880 = vld.sshfl [vmem:[#allocation1] sm:$0xff pattern:$0x73625140]
        %v3881 = vld.sshfl [vmem:[#allocation1 + $0x20] sm:$0xff pattern:$0x73625140]
        %3882 = vst [vmem:[#allocation1] ss:$4 sm:$0xff] %v685
        %3883 = vst [vmem:[%s3636] ss:$4 sm:$0xff] %v686
        %3884 = vst [vmem:[%s3638] ss:$4 sm:$0xff] %v687
        %3885 = vst [vmem:[%s3640] ss:$4 sm:$0xff] %v688
        %3886 = vst [vmem:[%s3642] ss:$4 sm:$0xff] %v689
        %3887 = vst [vmem:[%s3644] ss:$4 sm:$0xff] %v690
        %3888 = vst [vmem:[%s3646] ss:$4 sm:$0xff] %v691
        %3889 = vst [vmem:[%s3648] ss:$4 sm:$0xff] %v692
        %v3890 = vld.sshfl [vmem:[#allocation1] sm:$0xff pattern:$0x73625140]
        %v3891 = vld.sshfl [vmem:[#allocation1 + $0x20] sm:$0xff pattern:$0x73625140]
        %3892 = vst [vmem:[#allocation1] ss:$4 sm:$0xff] %v693
        %3893 = vst [vmem:[%s3636] ss:$4 sm:$0xff] %v694
        %3894 = vst [vmem:[%s3638] ss:$4 sm:$0xff] %v695
        %3895 = vst [vmem:[%s3640] ss:$4 sm:$0xff] %v696
        %3896 = vst [vmem:[%s3642] ss:$4 sm:$0xff] %v697
        %3897 = vst [vmem:[%s3644] ss:$4 sm:$0xff] %v698
        %3898 = vst [vmem:[%s3646] ss:$4 sm:$0xff] %v699
        %3899 = vst [vmem:[%s3648] ss:$4 sm:$0xff] %v700
        %v3900 = vld.sshfl [vmem:[#allocation1] sm:$0xff pattern:$0x73625140]
        %v3901 = vld.sshfl [vmem:[#allocation1 + $0x20] sm:$0xff pattern:$0x73625140]
        %3902 = vst [vmem:[#allocation1] ss:$4 sm:$0xff] %v701
        %3903 = vst [vmem:[%s3636] ss:$4 sm:$0xff] %v702
        %3904 = vst [vmem:[%s3638] ss:$4 sm:$0xff] %v703
        %3905 = vst [vmem:[%s3640] ss:$4 sm:$0xff] %v704
        %3906 = vst [vmem:[%s3642] ss:$4 sm:$0xff] %v705
        %3907 = vst [vmem:[%s3644] ss:$4 sm:$0xff] %v706
        %3908 = vst [vmem:[%s3646] ss:$4 sm:$0xff] %v707
        %3909 = vst [vmem:[%s3648] ss:$4 sm:$0xff] %v708
        %v3910 = vld.sshfl [vmem:[#allocation1] sm:$0xff pattern:$0x73625140]
        %v3911 = vld.sshfl [vmem:[#allocation1 + $0x20] sm:$0xff pattern:$0x73625140]
        %3912 = vst [vmem:[#allocation1] ss:$4 sm:$0xff] %v709
        %3913 = vst [vmem:[%s3636] ss:$4 sm:$0xff] %v710
        %3914 = vst [vmem:[%s3638] ss:$4 sm:$0xff] %v711
        %3915 = vst [vmem:[%s3640] ss:$4 sm:$0xff] %v712
        %3916 = vst [vmem:[%s3642] ss:$4 sm:$0xff] %v713
        %3917 = vst [vmem:[%s3644] ss:$4 sm:$0xff] %v714
        %3918 = vst [vmem:[%s3646] ss:$4 sm:$0xff] %v715
        %3919 = vst [vmem:[%s3648] ss:$4 sm:$0xff] %v716
        %v3920 = vld.sshfl [vmem:[#allocation1] sm:$0xff pattern:$0x73625140]
        %v3921 = vld.sshfl [vmem:[#allocation1 + $0x20] sm:$0xff pattern:$0x73625140]
        %3922 = vst [vmem:[#allocation1] ss:$4 sm:$0xff] %v701
        %3923 = vst [vmem:[%s3636] ss:$4 sm:$0xff] %v702
        %3924 = vst [vmem:[%s3638] ss:$4 sm:$0xff] %v703
        %3925 = vst [vmem:[%s3640] ss:$4 sm:$0xff] %v704
        %3926 = vst [vmem:[%s3642] ss:$4 sm:$0xff] %v705
        %3927 = vst [vmem:[%s3644] ss:$4 sm:$0xff] %v706
        %3928 = vst [vmem:[%s3646] ss:$4 sm:$0xff] %v707
        %3929 = vst [vmem:[%s3648] ss:$4 sm:$0xff] %v708
        %v3930 = vld.sshfl [vmem:[#allocation1] sm:$0xff pattern:$0x73625140]
        %v3931 = vld.sshfl [vmem:[#allocation1 + $0x20] sm:$0xff pattern:$0x73625140]
        %3932 = vst [vmem:[#allocation1] ss:$4 sm:$0xff] %v709
        %3933 = vst [vmem:[%s3636] ss:$4 sm:$0xff] %v710
        %3934 = vst [vmem:[%s3638] ss:$4 sm:$0xff] %v711
        %3935 = vst [vmem:[%s3640] ss:$4 sm:$0xff] %v712
        %3936 = vst [vmem:[%s3642] ss:$4 sm:$0xff] %v713
        %3937 = vst [vmem:[%s3644] ss:$4 sm:$0xff] %v714
        %3938 = vst [vmem:[%s3646] ss:$4 sm:$0xff] %v715
        %3939 = vst [vmem:[%s3648] ss:$4 sm:$0xff] %v716
        %v3940 = vld.sshfl [vmem:[#allocation1] sm:$0xff pattern:$0x73625140]
        %v3941 = vld.sshfl [vmem:[#allocation1 + $0x20] sm:$0xff pattern:$0x73625140]
        %3942 = vst [vmem:[#allocation1] ss:$4 sm:$0xff] %v717
        %3943 = vst [vmem:[%s3636] ss:$4 sm:$0xff] %v718
        %3944 = vst [vmem:[%s3638] ss:$4 sm:$0xff] %v719
        %3945 = vst [vmem:[%s3640] ss:$4 sm:$0xff] %v720
        %3946 = vst [vmem:[%s3642] ss:$4 sm:$0xff] %v721
        %3947 = vst [vmem:[%s3644] ss:$4 sm:$0xff] %v722
        %3948 = vst [vmem:[%s3646] ss:$4 sm:$0xff] %v723
        %3949 = vst [vmem:[%s3648] ss:$4 sm:$0xff] %v724
        %v3950 = vld.sshfl [vmem:[#allocation1] sm:$0xff pattern:$0x73625140]
        %v3951 = vld.sshfl [vmem:[#allocation1 + $0x20] sm:$0xff pattern:$0x73625140]
        %3952 = vst [vmem:[#allocation1] ss:$4 sm:$0xff] %v725
        %3953 = vst [vmem:[%s3636] ss:$4 sm:$0xff] %v726
        %3954 = vst [vmem:[%s3638] ss:$4 sm:$0xff] %v727
        %3955 = vst [vmem:[%s3640] ss:$4 sm:$0xff] %v728
        %3956 = vst [vmem:[%s3642] ss:$4 sm:$0xff] %v729
        %3957 = vst [vmem:[%s3644] ss:$4 sm:$0xff] %v730
        %3958 = vst [vmem:[%s3646] ss:$4 sm:$0xff] %v731
        %3959 = vst [vmem:[%s3648] ss:$4 sm:$0xff] %v732
        %v3960 = vld.sshfl [vmem:[#allocation1] sm:$0xff pattern:$0x73625140]
        %v3961 = vld.sshfl [vmem:[#allocation1 + $0x20] sm:$0xff pattern:$0x73625140]
        %v3963 = vsel %vm2123, %v3634, 0
        %v3965 = vsel %vm2123, %v3650, 0
        %v3967 = vsel %vm2123, %v3651, 0
        %v3969 = vsel %vm2123, %v3660, 0
        %v3971 = vsel %vm2123, %v3661, 0
        %v3973 = vsel %vm2123, %v3670, 0
        %v3975 = vsel %vm2123, %v3671, 0
        %v3977 = vsel %vm2123, %v3680, 0
        %v3979 = vsel %vm2123, %v3681, 0
        %v3981 = vsel %vm2123, %v3690, 0
        %v3983 = vsel %vm2123, %v3691, 0
        %v3985 = vsel %vm2123, %v3700, 0
        %v3987 = vsel %vm2123, %v3701, 0
        %v3989 = vsel %vm2123, %v3710, 0
        %v3991 = vsel %vm2123, %v3711, 0
        %v3993 = vsel %vm2123, %v3720, 0
        %v3995 = vsel %vm2123, %v3721, 0
        %v3997 = vsel %vm2123, %v3730, 0
        %v3999 = vsel %vm2123, %v3731, 0
        %v4001 = vsel %vm2123, %v3740, 0
        %v4003 = vsel %vm2123, %v3741, 0
        %v4005 = vsel %vm2123, %v3750, 0
        %v4007 = vsel %vm2123, %v3751, 0
        %v4009 = vsel %vm2123, %v3760, 0
        %v4011 = vsel %vm2123, %v3761, 0
        %v4013 = vsel %vm2123, %v3770, 0
        %v4015 = vsel %vm2123, %v3771, 0
        %v4017 = vsel %vm2123, %v3780, 0
        %v4019 = vsel %vm2123, %v3781, 0
        %v4021 = vsel %vm2123, %v3790, 0
        %v4023 = vsel %vm2123, %v3791, 0
        %v4025 = vsel %vm2123, %v3800, 0
        %v4027 = vsel %vm2123, %v3801, 0
        %v4029 = vsel %vm2123, %v3810, 0
        %v4031 = vsel %vm2123, %v3811, 0
        %v4033 = vsel %vm2123, %v3820, 0
        %v4035 = vsel %vm2123, %v3821, 0
        %v4037 = vsel %vm2123, %v3830, 0
        %v4039 = vsel %vm2123, %v3831, 0
        %v4041 = vsel %vm2123, %v3840, 0
        %v4043 = vsel %vm2123, %v3841, 0
        %v4045 = vsel %vm2123, %v3850, 0
        %v4047 = vsel %vm2123, %v3851, 0
        %v4049 = vsel %vm2123, %v3860, 0
        %v4051 = vsel %vm2123, %v3861, 0
        %v4053 = vsel %vm2123, %v3870, 0
        %v4055 = vsel %vm2123, %v3871, 0
        %v4057 = vsel %vm2123, %v3880, 0
        %v4059 = vsel %vm2123, %v3881, 0
        %v4061 = vsel %vm2123, %v3890, 0
        %v4063 = vsel %vm2123, %v3891, 0
        %v4065 = vsel %vm2123, %v3900, 0
        %v4067 = vsel %vm2123, %v3901, 0
        %v4069 = vsel %vm2123, %v3910, 0
        %v4071 = vsel %vm2123, %v3911, 0
        %v4073 = vsel %vm2123, %v3920, 0
        %v4075 = vsel %vm2123, %v3921, 0
        %v4077 = vsel %vm2123, %v3930, 0
        %v4079 = vsel %vm2123, %v3931, 0
        %v4081 = vsel %vm2123, %v3940, 0
        %v4083 = vsel %vm2123, %v3941, 0
        %v4085 = vsel %vm2123, %v3950, 0
        %v4087 = vsel %vm2123, %v3951, 0
        %v4089 = vsel %vm2123, %v3960, 0
        %v4091 = vsel %vm2123, %v3961, 0
        %4093 = vmatpush.xpose.msra.mxu0 %v3995
        %4094 = vmatpush.xpose.msra.mxu0 %v3993
        %4095 = vmatpush.xpose.msra.mxu0 %v3991
        %4096 = vmatpush.xpose.msra.mxu0 %v3989
        %4097 = vmatpush.xpose.msra.mxu0 %v3987
        %4098 = vmatpush.xpose.msra.mxu0 %v3985
        %4099 = vmatpush.xpose.msra.mxu0 %v3983
        %4100 = vmatpush.xpose.msra.mxu0 %v3981
        %4101 = vmatpush.xpose.msra.mxu0 %v3979
        %4102 = vmatpush.xpose.msra.mxu0 %v3977
        %4103 = vmatpush.xpose.msra.mxu0 %v3975
        %4104 = vmatpush.xpose.msra.mxu0 %v3973
        %4105 = vmatpush.xpose.msra.mxu0 %v3971
        %4106 = vmatpush.xpose.msra.mxu0 %v3969
        %4107 = vmatpush.xpose.msra.mxu0 %v3967
        %4108 = vmatpush.xpose.msra.mxu0 %v3965
        %4109 = vmatmul.f32.gmra.mxu0 %v3963
        %v4110 = vpop.f32.mrf.mxu0
        %v4111 = vadd.f32 0.0, %v4110
        %4112 = vdwg.mxu0
        %4113 = vmatpush.xpose.msra.mxu0 %v4027
        %4114 = vmatpush.xpose.msra.mxu0 %v4025
        %4115 = vmatpush.xpose.msra.mxu0 %v4023
        %4116 = vmatpush.xpose.msra.mxu0 %v4021
        %4117 = vmatpush.xpose.msra.mxu0 %v4019
        %4118 = vmatpush.xpose.msra.mxu0 %v4017
        %4119 = vmatpush.xpose.msra.mxu0 %v4015
        %4120 = vmatpush.xpose.msra.mxu0 %v4013
        %4121 = vmatpush.xpose.msra.mxu0 %v4011
        %4122 = vmatpush.xpose.msra.mxu0 %v4009
        %4123 = vmatpush.xpose.msra.mxu0 %v4007
        %4124 = vmatpush.xpose.msra.mxu0 %v4005
        %4125 = vmatpush.xpose.msra.mxu0 %v4003
        %4126 = vmatpush.xpose.msra.mxu0 %v4001
        %4127 = vmatpush.xpose.msra.mxu0 %v3999
        %4128 = vmatpush.xpose.msra.mxu0 %v3997
        %4129 = vmatmul.f32.gmra.mxu0 %v3963
        %v4130 = vpop.f32.mrf.mxu0
        %v4131 = vadd.f32 0.0, %v4130
        %4132 = vdwg.mxu0
        %4133 = vmatpush.xpose.msra.mxu0 %v4059
        %4134 = vmatpush.xpose.msra.mxu0 %v4057
        %4135 = vmatpush.xpose.msra.mxu0 %v4055
        %4136 = vmatpush.xpose.msra.mxu0 %v4053
        %4137 = vmatpush.xpose.msra.mxu0 %v4051
        %4138 = vmatpush.xpose.msra.mxu0 %v4049
        %4139 = vmatpush.xpose.msra.mxu0 %v4047
        %4140 = vmatpush.xpose.msra.mxu0 %v4045
        %4141 = vmatpush.xpose.msra.mxu0 %v4043
        %4142 = vmatpush.xpose.msra.mxu0 %v4041
        %4143 = vmatpush.xpose.msra.mxu0 %v4039
        %4144 = vmatpush.xpose.msra.mxu0 %v4037
        %4145 = vmatpush.xpose.msra.mxu0 %v4035
        %4146 = vmatpush.xpose.msra.mxu0 %v4033
        %4147 = vmatpush.xpose.msra.mxu0 %v4031
        %4148 = vmatpush.xpose.msra.mxu0 %v4029
        %4149 = vmatmul.f32.gmra.mxu0 %v3963
        %v4150 = vpop.f32.mrf.mxu0
        %v4151 = vadd.f32 0.0, %v4150
        %4152 = vdwg.mxu0
        %4153 = vmatpush.xpose.msra.mxu0 %v4091
        %4154 = vmatpush.xpose.msra.mxu0 %v4089
        %4155 = vmatpush.xpose.msra.mxu0 %v4087
        %4156 = vmatpush.xpose.msra.mxu0 %v4085
        %4157 = vmatpush.xpose.msra.mxu0 %v4083
        %4158 = vmatpush.xpose.msra.mxu0 %v4081
        %4159 = vmatpush.xpose.msra.mxu0 %v4079
        %4160 = vmatpush.xpose.msra.mxu0 %v4077
        %4161 = vmatpush.xpose.msra.mxu0 %v4075
        %4162 = vmatpush.xpose.msra.mxu0 %v4073
        %4163 = vmatpush.xpose.msra.mxu0 %v4071
        %4164 = vmatpush.xpose.msra.mxu0 %v4069
        %4165 = vmatpush.xpose.msra.mxu0 %v4067
        %4166 = vmatpush.xpose.msra.mxu0 %v4065
        %4167 = vmatpush.xpose.msra.mxu0 %v4063
        %4168 = vmatpush.xpose.msra.mxu0 %v4061
        %4169 = vmatmul.f32.gmra.mxu0 %v3963
        %v4170 = vpop.f32.mrf.mxu0
        %v4171 = vadd.f32 0.0, %v4170
        %4172 = vdwg.mxu0
        %v4173 = vadd.f32 %v3629, %v4111
        %v4174 = vadd.f32 %v3630, %v4131
        %v4175 = vadd.f32 %v3631, %v4151
        %v4176 = vadd.f32 %v3632, %v4171
        %s4177 = scalar_lea.vmem %s3, 64
        %v4178 = vld [vmem:[%s4177] sm:$0xff]
        %v4180 = vsel %vm2123, %v4178, 0
        %v4182 = vsel %vm2123, %v1752, 0
        %v4184 = vsel %vm2123, %v1754, 0
        %v4186 = vsel %vm2123, %v1756, 0
        %v4189 = vsel %vm2123, %v1792, 0
        %4191 = vmatpush.xpose.msra.mxu0 %v2619
        %4192 = vmatpush.xpose.msra.mxu0 %v2616
        %4193 = vmatpush.xpose.msra.mxu0 %v2614
        %4194 = vmatpush.xpose.msra.mxu0 %v2612
        %4195 = vmatpush.xpose.msra.mxu0 %v2610
        %4196 = vmatpush.xpose.msra.mxu0 %v2607
        %4197 = vmatpush.xpose.msra.mxu0 %v2605
        %4198 = vmatpush.xpose.msra.mxu0 %v2603
        %4199 = vmatpush.xpose.msra.mxu0 %v2601
        %4200 = vmatpush.xpose.msra.mxu0 %v2598
        %4201 = vmatpush.xpose.msra.mxu0 %v2596
        %4202 = vmatpush.xpose.msra.mxu0 %v2594
        %4203 = vmatpush.xpose.msra.mxu0 %v2592
        %4204 = vmatpush.xpose.msra.mxu0 %v2589
        %4205 = vmatpush.xpose.msra.mxu0 %v2587
        %4206 = vmatpush.xpose.msra.mxu0 %v2585
        %4207 = vmatmul.f32.gmra.mxu0 %v4180
        %v4208 = vpop.f32.mrf.mxu0
        %v4209 = vadd.f32 0.0, %v4208
        %4210 = vdwg.mxu0
        %4211 = vmatpush.xpose.msra.mxu0 %v2655
        %4212 = vmatpush.xpose.msra.mxu0 %v2652
        %4213 = vmatpush.xpose.msra.mxu0 %v2650
        %4214 = vmatpush.xpose.msra.mxu0 %v2648
        %4215 = vmatpush.xpose.msra.mxu0 %v2646
        %4216 = vmatpush.xpose.msra.mxu0 %v2643
        %4217 = vmatpush.xpose.msra.mxu0 %v2641
        %4218 = vmatpush.xpose.msra.mxu0 %v2639
        %4219 = vmatpush.xpose.msra.mxu0 %v2637
        %4220 = vmatpush.xpose.msra.mxu0 %v2634
        %4221 = vmatpush.xpose.msra.mxu0 %v2632
        %4222 = vmatpush.xpose.msra.mxu0 %v2630
        %4223 = vmatpush.xpose.msra.mxu0 %v2628
        %4224 = vmatpush.xpose.msra.mxu0 %v2625
        %4225 = vmatpush.xpose.msra.mxu0 %v2623
        %4226 = vmatpush.xpose.msra.mxu0 %v2621
        %4227 = vmatmul.f32.gmra.mxu0 %v4180
        %v4228 = vpop.f32.mrf.mxu0
        %v4229 = vadd.f32 0.0, %v4228
        %4230 = vdwg.mxu0
        %4231 = vmatpush.xpose.msra.mxu0 %v2691
        %4232 = vmatpush.xpose.msra.mxu0 %v2688
        %4233 = vmatpush.xpose.msra.mxu0 %v2686
        %4234 = vmatpush.xpose.msra.mxu0 %v2684
        %4235 = vmatpush.xpose.msra.mxu0 %v2682
        %4236 = vmatpush.xpose.msra.mxu0 %v2679
        %4237 = vmatpush.xpose.msra.mxu0 %v2677
        %4238 = vmatpush.xpose.msra.mxu0 %v2675
        %4239 = vmatpush.xpose.msra.mxu0 %v2673
        %4240 = vmatpush.xpose.msra.mxu0 %v2670
        %4241 = vmatpush.xpose.msra.mxu0 %v2668
        %4242 = vmatpush.xpose.msra.mxu0 %v2666
        %4243 = vmatpush.xpose.msra.mxu0 %v2664
        %4244 = vmatpush.xpose.msra.mxu0 %v2661
        %4245 = vmatpush.xpose.msra.mxu0 %v2659
        %4246 = vmatpush.xpose.msra.mxu0 %v2657
        %4247 = vmatmul.f32.gmra.mxu0 %v4180
        %v4248 = vpop.f32.mrf.mxu0
        %v4249 = vadd.f32 0.0, %v4248
        %4250 = vdwg.mxu0
        %4251 = vmatpush.xpose.msra.mxu0 %v4189
        %4252 = vmatpush.xpose.msra.mxu0 %v4186
        %4253 = vmatpush.xpose.msra.mxu0 %v4184
        %4254 = vmatpush.xpose.msra.mxu0 %v4182
        %4255 = vmatpush.xpose.msra.mxu0 %v3449
        %4256 = vmatpush.xpose.msra.mxu0 %v3446
        %4257 = vmatpush.xpose.msra.mxu0 %v3444
        %4258 = vmatpush.xpose.msra.mxu0 %v3442
        %4259 = vmatpush.xpose.msra.mxu0 %v2709
        %4260 = vmatpush.xpose.msra.mxu0 %v2706
        %4261 = vmatpush.xpose.msra.mxu0 %v2704
        %4262 = vmatpush.xpose.msra.mxu0 %v2702
        %4263 = vmatpush.xpose.msra.mxu0 %v2700
        %4264 = vmatpush.xpose.msra.mxu0 %v2697
        %4265 = vmatpush.xpose.msra.mxu0 %v2695
        %4266 = vmatpush.xpose.msra.mxu0 %v2693
        %4267 = vmatmul.f32.gmra.mxu0 %v4180
        %v4268 = vpop.f32.mrf.mxu0
        %v4269 = vadd.f32 0.0, %v4268
        %4270 = vdwg.mxu0
        %v4271 = vadd.f32 %v4173, %v4209
        %v4272 = vadd.f32 %v4174, %v4229
        %v4273 = vadd.f32 %v4175, %v4249
        %v4274 = vadd.f32 %v4176, %v4269
        %v4275 = vld [vmem:[%s4] sm:$0xff]
        %4277 = vset.pattern.permute.xlu0 0
        %4278 = vperm.xlu0 %4277, %v4275
        %v4279 = vpop.permute.xlu0 %4278
        %v4281 = vadd.f32 %v4271, %v4279
        %v4282 = vadd.f32 %v4272, %v4279
        %v4283 = vadd.f32 %v4273, %v4279
        %v4284 = vadd.f32 %v4274, %v4279
        %v4285 = vmax.f32 %v4281, 0.0
        %v4286 = vmax.f32 %v4282, 0.0
        %v4287 = vmax.f32 %v4283, 0.0
        %v4288 = vmax.f32 %v4284, 0.0
        %4289 = vst [vmem:[%s334] sm:$0xff] %v4285
        %4290 = vst [vmem:[%s334 + $0x8] sm:$0xff] %v4286
        %4291 = vst [vmem:[%s334 + $0x10] sm:$0xff] %v4287
        %4292 = vst [vmem:[%s334 + $0x18] sm:$0xff] %v4288
        %s4293 = sand.u32 %s183, 1
        %s4294 = scalar_lea.sflag [#allocation3], %s4293
        %s4295 = sand.u32 %s183, 1
        %s4296 = smul.addr %s4295, 32
        %s4297 = scalar_lea.vmem [#allocation2], %s4296
        // Predicated region
        $region41: #{tpu_custom_call.1} parent=39 // pred_check
          %p4298 = pneg %p193
        $region42: #{tpu_custom_call.1} parent=39 // pred_check_branch
          %4300 = sbr.rel (%p4298) target = $region44
        $region43: #{tpu_custom_call.1} parent=39 // pred_region
          %s4301 = smul.u32 4, %s24
          %4303 = vsyncadd %s4294, 0
          %s4304 = smul.addr %s23, 8
          %s4305 = sadd.s32 %s4301, %s4304
          %s4306 = smul.addr %s4305, 8
          %s4307 = scalar_lea.hbm %s5, %s4306
          %s4309 = sshll.u32 %s4297, 4
          %s4310 = int_to_ptr.vmem [resolvable:$true] %s4309
          %s4311 = sshll.u32 %s4307, 4
          %s4312 = int_to_ptr.hbm [resolvable:$true] %s4311
          %4314 = dma.vmem_to_hbm [thread:$0]  %s4310, 512, %s4312, %s4294
        $region44: #{tpu_custom_call.1} parent=39 // pred_fallthru
          _
      $region40: #{tpu_custom_call.1} parent=5 // pred_fallthru
        _
      %p4315 = scmp.le.s32.totalorder 2, %s14
      // Predicated region
      $region45: #{tpu_custom_call.1} parent=5 // pred_check
        %p4316 = pneg %p4315
      $region46: #{tpu_custom_call.1} parent=5 // pred_check_branch
        %4318 = sbr.rel (%p4316) target = $region48
      $region47: #{tpu_custom_call.1} parent=5 // pred_region
        %s4319 = ssub.s32 %s14, 2
        // Predicated region
        $region49: #{tpu_custom_call.1} parent=47 // pred_check
          %p4320 = pneg %p199
        $region50: #{tpu_custom_call.1} parent=47 // pred_check_branch
          %4322 = sbr.rel (%p4320) target = $region52
        $region51: #{tpu_custom_call.1} parent=47 // pred_region
          %s4323 = sand.u32 %s184, 1
          %s4324 = scalar_lea.sflag [#allocation3], %s4323
          %s4325 = sand.u32 %s184, 1
          %s4326 = smul.addr %s4325, 32
          %s4327 = scalar_lea.vmem [#allocation2], %s4326
          %4329 = dma.done %s4324, 512
        $region52: #{tpu_custom_call.1} parent=47 // pred_fallthru
          _
      $region48: #{tpu_custom_call.1} parent=5 // pred_fallthru
        _
    $region6: #{tpu_custom_call.1} parent=1 // loop_footer
      %s18 = sadd.s32 1, %s14
    $region7: #{tpu_custom_call.1} parent=1 // loop_footer_branch
      %13 = sbr.rel target = $region3
    $region8: #{tpu_custom_call.1} parent=1 // loop_exit
      _
    %4330 = vsyncpa [#allocation3], 1
    %s4331 = scalar_lea.sflag [#allocation3], 1
    %4332 = vsyncpa %s4331, 1

</llo_original>
